<compile_context>
chip_gen: v6e
topology: v6e:2x2x1
jax: 0.10.0
libtpu: 0.0.40
codegen_flags: <defaults>
</compile_context>

<pallas_src>
import functools

import jax
import jax.numpy as jnp
from jax.experimental import pallas as pl
from jax.experimental.pallas import tpu as pltpu

_BN_EPS = 1e-3
_SE_RATIO = 0.25
_STEM_CH = 32
_HEAD_CH = 1280
_ACT_DTYPE = jnp.bfloat16

# EfficientNet-b0 block arguments: (repeats, kernel, stride, expand, c_in, c_out)
_B0_BLOCKS = [
    (1, 3, 1, 1, 32, 16),
    (2, 3, 2, 6, 16, 24),
    (2, 5, 2, 6, 24, 40),
    (3, 3, 2, 6, 40, 80),
    (3, 5, 1, 6, 80, 112),
    (4, 5, 2, 6, 112, 192),
    (1, 3, 1, 6, 192, 320),
]


# ---------------------------------------------------------------------------
# Per-generation VMEM / tiling budgets
# ---------------------------------------------------------------------------
def _vmem_capacity_bytes():
    try:
        return int(pltpu.get_tpu_info().vmem_capacity_bytes)
    except Exception:
        return 64 * 1024 * 1024            # conservative fallback (v7x per-core)


_VMEM_CAP = _vmem_capacity_bytes()
# 96 MiB limit / 8 MiB tiles on 128-MiB parts (v5e/v6e); 48 MiB / 4 MiB on v7x.
_VMEM_LIMIT = min(_VMEM_CAP * 3 // 4, 112 * 1024 * 1024)
_TILE_BUDGET = _VMEM_CAP // 16


def _pick_rows(total_rows, bytes_per_row, budget=None):
    """Largest divisor of total_rows within budget that satisfies the TPU
    sublane rule (multiple of 8, or the full extent)."""
    if budget is None:
        budget = _TILE_BUDGET
    max_rows = max(1, budget // max(1, bytes_per_row))
    if total_rows <= max_rows:
        return total_rows
    best = 0
    for d in range(8, min(total_rows, max_rows) + 1, 8):
        if total_rows % d == 0:
            best = d
    return best if best > 0 else total_rows


def _pick_bm(m, k, n, out_itemsize):
    """Row-tile for the matmul kernels, sized by bytes (not a fixed 512) so
    small-K/small-N layers amortize the per-grid-step overhead."""
    per_row = 2 * (2 * k + out_itemsize * n)      # double-buffered x-row + out-row
    bm = (_TILE_BUDGET // max(per_row, 1)) // 256 * 256
    bm = max(256, min(bm, 8192))
    return m if m <= bm else bm


# ---------------------------------------------------------------------------
# Pallas kernels
# ---------------------------------------------------------------------------
def _matmul_bn_act_kernel(x_ref, w_ref, scale_ref, shift_ref, o_ref, *, act):
    y = jnp.dot(x_ref[...], w_ref[...], preferred_element_type=jnp.float32)
    y = y * scale_ref[...] + shift_ref[...]              # folded BatchNorm / bias
    if act == "swish":
        y = y * jax.nn.sigmoid(y)
    o_ref[...] = y.astype(o_ref.dtype)


def matmul_bn_act(x, w, scale, shift, *, act="swish", out_dtype=_ACT_DTYPE):
    """act((x @ w) * scale + shift) — 1x1-conv / FC hot path (bf16 in, f32 acc)."""
    M, K = x.shape
    N = w.shape[1]
    bm = _pick_bm(M, K, N, jnp.dtype(out_dtype).itemsize)
    grid = (pl.cdiv(M, bm),)                             # partial last tile masked
    kernel = functools.partial(_matmul_bn_act_kernel, act=act)
    return pl.pallas_call(
        kernel,
        out_shape=jax.ShapeDtypeStruct((M, N), out_dtype),
        grid=grid,
        in_specs=[
            pl.BlockSpec((bm, K), lambda i: (i, 0)),
            pl.BlockSpec((K, N), lambda i: (0, 0)),
            pl.BlockSpec((1, N), lambda i: (0, 0)),
            pl.BlockSpec((1, N), lambda i: (0, 0)),
        ],
        out_specs=pl.BlockSpec((bm, N), lambda i: (i, 0)),
        compiler_params=pltpu.CompilerParams(
            dimension_semantics=("parallel",),
            vmem_limit_bytes=_VMEM_LIMIT),
    )(x, w, scale.reshape(1, N), shift.reshape(1, N))


def _dwconv_bn_swish_kernel(x_ref, w_ref, shift_ref, o_ref, pool_ref,
                            *, k, s, ho, wo, inv_hw):
    """Depthwise conv from a phase-split padded block (no k^2 duplication):
    every tap is a unit-stride static window of the VMEM-resident block."""
    acc = None
    for kh in range(k):
        for kw in range(k):
            phase = (kh % s) * s + (kw % s)
            tap = x_ref[phase, pl.ds(kh // s, ho), pl.ds(kw // s, wo), :]
            term = tap.astype(jnp.float32) * w_ref[kh * k + kw]   # BN scale folded in w
            acc = term if acc is None else acc + term
    y = acc + shift_ref[0]
    y = y * jax.nn.sigmoid(y)                                     # swish
    o_ref[0] = y.astype(o_ref.dtype)
    # SE global average pool (whole spatial extent lives in this grid step).
    pool_ref[...] = (jnp.sum(jnp.sum(y, axis=1, keepdims=True), axis=0,
                             keepdims=True) * inv_hw)


def dwconv_bn_swish(phases, w_folded, shift, *, k, s, ho, wo):
    """Depthwise conv + folded BN + swish over (batch) grid, one full-spatial
    (phase-split, SAME-padded) block per batch element; also emits the SE
    global-average-pool."""
    nph = s * s
    total, hps, wps, c = phases.shape
    n = total // nph
    kernel = functools.partial(_dwconv_bn_swish_kernel, k=k, s=s, ho=ho, wo=wo,
                               inv_hw=1.0 / float(ho * wo))
    out, pooled = pl.pallas_call(
        kernel,
        out_shape=(jax.ShapeDtypeStruct((n, ho, wo, c), phases.dtype),
                   jax.ShapeDtypeStruct((n, 1, c), jnp.float32)),
        grid=(n,),
        in_specs=[
            pl.BlockSpec((nph, hps, wps, c), lambda b: (b, 0, 0, 0)),
            pl.BlockSpec((k * k, c), lambda b: (0, 0)),
            pl.BlockSpec((1, c), lambda b: (0, 0)),
        ],
        out_specs=(pl.BlockSpec((1, ho, wo, c), lambda b: (b, 0, 0, 0)),
                   pl.BlockSpec((1, 1, c), lambda b: (b, 0, 0))),
        compiler_params=pltpu.CompilerParams(
            dimension_semantics=("parallel",),
            vmem_limit_bytes=_VMEM_LIMIT),
    )(phases, w_folded, shift.reshape(1, c))
    return out, pooled[:, 0, :]


def _project_se_kernel(*refs, has_res):
    if has_res:
        x_ref, se_ref, w_ref, scale_ref, shift_ref, res_ref, o_ref = refs
    else:
        x_ref, se_ref, w_ref, scale_ref, shift_ref, o_ref = refs
    xg = x_ref[0] * se_ref[0]                            # fused SE gate (bf16)
    y = jnp.dot(xg, w_ref[...], preferred_element_type=jnp.float32)
    y = y * scale_ref[...] + shift_ref[...]              # folded BatchNorm
    if has_res:
        y = y + res_ref[0].astype(jnp.float32)           # MBConv identity skip
    o_ref[0] = y.astype(o_ref.dtype)


def project_se_bn(x, se, w, scale, shift, residual=None, out_dtype=_ACT_DTYPE):
    """(x * se) @ w with folded BN (+ residual), tiled over (batch, HW)."""
    N, HW, CE = x.shape
    CO = w.shape[1]
    bhw = _pick_rows(HW, bytes_per_row=4 * (CE + 2 * CO))
    grid = (N, HW // bhw)
    in_specs = [
        pl.BlockSpec((1, bhw, CE), lambda b, i: (b, i, 0)),
        pl.BlockSpec((1, 1, CE), lambda b, i: (b, 0, 0)),
        pl.BlockSpec((CE, CO), lambda b, i: (0, 0)),
        pl.BlockSpec((1, CO), lambda b, i: (0, 0)),
        pl.BlockSpec((1, CO), lambda b, i: (0, 0)),
    ]
    args = [x, se.reshape(N, 1, CE), w, scale.reshape(1, CO), shift.reshape(1, CO)]
    if residual is not None:
        in_specs.append(pl.BlockSpec((1, bhw, CO), lambda b, i: (b, i, 0)))
        args.append(residual)
    kernel = functools.partial(_project_se_kernel, has_res=residual is not None)
    return pl.pallas_call(
        kernel,
        out_shape=jax.ShapeDtypeStruct((N, HW, CO), out_dtype),
        grid=grid,
        in_specs=in_specs,
        out_specs=pl.BlockSpec((1, bhw, CO), lambda b, i: (b, i, 0)),
        compiler_params=pltpu.CompilerParams(
            dimension_semantics=("parallel", "parallel"),
            vmem_limit_bytes=_VMEM_LIMIT),
    )(*args)


# ---------------------------------------------------------------------------
# JAX glue: TF-style SAME padding, phase split (depthwise), stem im2col
# ---------------------------------------------------------------------------
def _same_pad(size, k, s):
    out = -(-size // s)
    pad = max((out - 1) * s + k - size, 0)
    return pad // 2, pad - pad // 2, out


def _pad_phase_split(x, k, s):
    """x: (N,H,W,C) NHWC -> (N*s*s, Hp/s, Wp/s, C) SAME-padded stride phases.

    Total bytes ~= padded input (no k^2 duplication).  Tap (kh,kw) of the
    depthwise conv reads phase (kh%s)*s + (kw%s) at offset (kh//s, kw//s)."""
    n, h, w, c = x.shape
    ph0, ph1, ho = _same_pad(h, k, s)
    pw0, pw1, wo = _same_pad(w, k, s)
    xp = jnp.pad(x, ((0, 0), (ph0, ph1), (pw0, pw1), (0, 0)))
    if s == 1:
        return xp, ho, wo
    hp, wp = xp.shape[1], xp.shape[2]
    hp2 = -(-hp // s) * s
    wp2 = -(-wp // s) * s
    xp = jnp.pad(xp, ((0, 0), (0, hp2 - hp), (0, wp2 - wp), (0, 0)))
    ph = xp.reshape(n, hp2 // s, s, wp2 // s, s, c)
    ph = jnp.transpose(ph, (0, 2, 4, 1, 3, 5))       # (n, s, s, hp2/s, wp2/s, c)
    ph = ph.reshape(n * s * s, hp2 // s, wp2 // s, c)
    return ph, ho, wo


def _extract_taps(x, k, s):
    """Stem-only im2col taps: (N,H,W,C) -> (k*k, N, Ho, Wo, C), SAME padding.
    Only used for the 3-channel stem, where duplication is a few MB."""
    n, h, w, c = x.shape
    ph0, ph1, ho = _same_pad(h, k, s)
    pw0, pw1, wo = _same_pad(w, k, s)
    xp = jnp.pad(x, ((0, 0), (ph0, ph1), (pw0, pw1), (0, 0)))
    taps = []
    for kh in range(k):
        for kw in range(k):
            taps.append(xp[:, kh:kh + (ho - 1) * s + 1:s,
                           kw:kw + (wo - 1) * s + 1:s, :])
    return jnp.stack(taps, axis=0), ho, wo


# ---------------------------------------------------------------------------
# Deterministic synthetic parameters (EfficientNet-b0 shapes)
# ---------------------------------------------------------------------------
class _ParamGen:
    def __init__(self, seed):
        self._key = jax.random.PRNGKey(seed)

    def _next(self):
        self._key, sub = jax.random.split(self._key)
        return sub

    def conv(self, shape, fan_in):
        return (2.0 / fan_in) ** 0.5 * jax.random.normal(
            self._next(), shape, jnp.float32)

    def bias(self, n):
        return 0.01 * jax.random.normal(self._next(), (n,), jnp.float32)

    def bn(self, c):
        # eval-mode BN folded into scale/shift (running_mean=0, running_var=1)
        gamma = 1.0 + 0.1 * jax.random.normal(self._next(), (c,), jnp.float32)
        beta = 0.05 * jax.random.normal(self._next(), (c,), jnp.float32)
        return gamma / jnp.sqrt(1.0 + _BN_EPS), beta


def init_featurenet_params(seed=0):
    pg = _ParamGen(seed)
    params = {"stem_w": pg.conv((3 * 3 * 3, _STEM_CH), 27).astype(_ACT_DTYPE),
              "stem_bn": pg.bn(_STEM_CH)}
    blocks = []
    for (reps, k, stride, expand, c_in, c_out) in _B0_BLOCKS:
        for r in range(reps):
            ci = c_in if r == 0 else c_out
            s = stride if r == 0 else 1
            ce = ci * expand
            cse = max(1, int(ci * _SE_RATIO))
            b = {"k": k, "s": s, "expand": expand, "c_in": ci, "c_out": c_out}
            if expand != 1:
                b["expand_w"] = pg.conv((ci, ce), ci).astype(_ACT_DTYPE)
                b["expand_bn"] = pg.bn(ce)
            dw_w = pg.conv((k * k, ce), k * k)
            dw_scale, dw_shift = pg.bn(ce)
            b["dw_wf"] = dw_w * dw_scale            # fold BN scale into weights
            b["dw_shift"] = dw_shift
            b["se1_w"] = pg.conv((ce, cse), ce)
            b["se1_b"] = pg.bias(cse)
            b["se2_w"] = pg.conv((cse, ce), cse)
            b["se2_b"] = pg.bias(ce)
            b["proj_w"] = pg.conv((ce, c_out), ce).astype(_ACT_DTYPE)
            b["proj_bn"] = pg.bn(c_out)
            blocks.append(b)
    params["blocks"] = blocks
    params["head_w"] = pg.conv((320, _HEAD_CH), 320).astype(_ACT_DTYPE)
    params["head_bn"] = pg.bn(_HEAD_CH)
    return params


# ---------------------------------------------------------------------------
# Forward pass (== FeatureNet.forward)
# ---------------------------------------------------------------------------
def _mbconv(x, b):
    """MBConv block. x: (N,H,W,C_in) bf16 NHWC -> (N,H',W',C_out) bf16."""
    n, h, w, ci = x.shape
    inputs = x
    if b["expand"] != 1:
        ce = b["expand_w"].shape[1]
        x = matmul_bn_act(x.reshape(n * h * w, ci), b["expand_w"],
                          *b["expand_bn"], act="swish").reshape(n, h, w, ce)
    ce = x.shape[-1]
    phases, ho, wo = _pad_phase_split(x, b["k"], b["s"])
    dw, pooled = dwconv_bn_swish(phases, b["dw_wf"], b["dw_shift"],
                                 k=b["k"], s=b["s"], ho=ho, wo=wo)
    dw = dw.reshape(n, ho * wo, ce)                  # contiguous collapse: free
    # squeeze-and-excite bottleneck: M=batch, N=8..80 -> tiny; plain XLA is
    # cheaper than dedicated pallas_call launches here.
    se = pooled @ b["se1_w"] + b["se1_b"]
    se = se * jax.nn.sigmoid(se)
    se = jax.nn.sigmoid(se @ b["se2_w"] + b["se2_b"])
    co = b["c_out"]
    residual = None
    if b["s"] == 1 and b["c_in"] == co:
        residual = inputs.reshape(n, ho * wo, co)
    # TODO(synk): drop_connect is training-only in EfficientNet; eval => identity.
    out = project_se_bn(dw, se.astype(_ACT_DTYPE), b["proj_w"],
                        *b["proj_bn"], residual=residual)
    return out.reshape(n, ho, wo, co)


def featurenet_forward(params, x_nchw):
    """FeatureNet.forward: EfficientNet-b0 extract_features, then flatten.

    x_nchw: (N, 3, H, W) float32 (PyTorch NCHW).
    returns: (N, 1280 * H/32 * W/32) float32, flattened in NCHW order.
    """
    x = jnp.transpose(x_nchw, (0, 2, 3, 1)).astype(_ACT_DTYPE)   # NCHW -> NHWC
    n = x.shape[0]
    # stem: 3x3 stride-2 conv (im2col in JAX, matmul+BN+swish in Pallas).
    # TODO(synk): stem output has only 32 lanes (<128) => masked stores; padding
    # it to 128 and slicing back costs more HBM than the masking saves, so it
    # is intentionally left as-is.
    taps, ho, wo = _extract_taps(x, 3, 2)
    cols = jnp.transpose(taps, (1, 2, 3, 0, 4)).reshape(n * ho * wo, 9 * 3)
    x = matmul_bn_act(cols, params["stem_w"], *params["stem_bn"], act="swish")
    x = x.reshape(n, ho, wo, _STEM_CH)
    for b in params["blocks"]:
        x = _mbconv(x, b)
    # head: 1x1 conv to 1280 + BN + swish (f32 output features)
    n, hf, wf, cf = x.shape
    x = matmul_bn_act(x.reshape(n * hf * wf, cf), params["head_w"],
                      *params["head_bn"], act="swish", out_dtype=jnp.float32)
    x = x.reshape(n, hf, wf, _HEAD_CH)
    # flatten in NCHW order to match torch's `x.view(x.size(0), -1)`
    return jnp.transpose(x, (0, 3, 1, 2)).reshape(n, -1)


if __name__ == "__main__":
    key = jax.random.PRNGKey(0)
    # Small input consistent with the module (224x224 in the original; 64x64
    # here => final feature map 2x2x1280, flattened to 5120 per example).
    x = jax.random.normal(key, (2, 3, 64, 64), jnp.float32)   # NCHW like torch
    params = init_featurenet_params(seed=0)
    feats = featurenet_forward(params, x)
    feats = jax.block_until_ready(feats)
    assert feats.shape == (2, _HEAD_CH * 2 * 2), feats.shape
    assert bool(jnp.all(jnp.isfinite(feats)))
    print("KERNEL_OK")
</pallas_src>

<mosaic_0001>
module attributes {stable_mosaic.version = 11 : i64} {
  func.func @_matmul_bn_act_kernel(%arg0: i32, %arg1: memref<2048x27xbf16, #tpu.memory_space<vmem>>, %arg2: memref<27x32xbf16, #tpu.memory_space<vmem>>, %arg3: memref<1x32xf32, #tpu.memory_space<vmem>>, %arg4: memref<1x32xf32, #tpu.memory_space<vmem>>, %arg5: memref<2048x32xbf16, #tpu.memory_space<vmem>>) attributes {dimension_semantics = [#tpu.dimension_semantics<parallel>], iteration_bounds = array<i64: 1>, scalar_prefetch = 0 : i64, scratch_operands = 0 : i64, tpu.core_type = #tpu.core_type<tc>, window_params = [{transform_indices = @transform_0, window_bounds = array<i64: 2048, 27>}, {pipeline_mode = #tpu.pipeline_mode<synchronous>, transform_indices = @transform_1, window_bounds = array<i64: 27, 32>}, {pipeline_mode = #tpu.pipeline_mode<synchronous>, transform_indices = @transform_2, window_bounds = array<i64: 1, 32>}, {pipeline_mode = #tpu.pipeline_mode<synchronous>, transform_indices = @transform_3, window_bounds = array<i64: 1, 32>}, {transform_indices = @transform_4, window_bounds = array<i64: 2048, 32>}]} {
    %c0 = arith.constant 0 : index
    %c0_0 = arith.constant 0 : index
    %0 = vector.load %arg1[%c0, %c0_0] : memref<2048x27xbf16, #tpu.memory_space<vmem>>, vector<2048x27xbf16>
    %c0_1 = arith.constant 0 : index
    %c0_2 = arith.constant 0 : index
    %1 = vector.load %arg2[%c0_1, %c0_2] : memref<27x32xbf16, #tpu.memory_space<vmem>>, vector<27x32xbf16>
    %cst = arith.constant dense<0.000000e+00> : vector<2048x32xf32>
    %2 = tpu.matmul %0, %1, %cst {dimension_numbers = #tpu.dot_dimension_numbers<[1], [0], [0], [1], [0, 0, 1, 1], [], []>} : vector<2048x27xbf16>, vector<27x32xbf16>, vector<2048x32xf32> -> vector<2048x32xf32>
    %c0_3 = arith.constant 0 : index
    %c0_4 = arith.constant 0 : index
    %3 = vector.load %arg3[%c0_3, %c0_4] : memref<1x32xf32, #tpu.memory_space<vmem>>, vector<1x32xf32>
    %4 = vector.broadcast %3 : vector<1x32xf32> to vector<2048x32xf32>
    %5 = arith.mulf %2, %4 : vector<2048x32xf32>
    %c0_5 = arith.constant 0 : index
    %c0_6 = arith.constant 0 : index
    %6 = vector.load %arg4[%c0_5, %c0_6] : memref<1x32xf32, #tpu.memory_space<vmem>>, vector<1x32xf32>
    %7 = vector.broadcast %6 : vector<1x32xf32> to vector<2048x32xf32>
    %8 = arith.addf %5, %7 : vector<2048x32xf32>
    %9 = arith.negf %8 : vector<2048x32xf32>
    %10 = math.exp %9 : vector<2048x32xf32>
    %cst_7 = arith.constant 1.000000e+00 : f32
    %11 = vector.broadcast %cst_7 : f32 to vector<2048x32xf32>
    %12 = arith.addf %11, %10 : vector<2048x32xf32>
    %13 = arith.divf %11, %12 : vector<2048x32xf32>
    %14 = arith.mulf %8, %13 : vector<2048x32xf32>
    %15 = arith.truncf %14 : vector<2048x32xf32> to vector<2048x32xbf16>
    %c0_8 = arith.constant 0 : index
    %c0_9 = arith.constant 0 : index
    %16 = vector.load %arg5[%c0_8, %c0_9] : memref<2048x32xbf16, #tpu.memory_space<vmem>>, vector<2048x32xbf16>
    tpu.vector_store %arg5[%c0_8, %c0_9], %15 {strides = array<i32>} : memref<2048x32xbf16, #tpu.memory_space<vmem>>, vector<2048x32xbf16>,
    return
  }
  func.func @transform_0(%arg0: i32) -> (i32, i32) {
    %c0_i32 = arith.constant 0 : i32
    %c0_i32_0 = arith.constant 0 : i32
    return %arg0, %c0_i32 : i32, i32
  }
  func.func @transform_1(%arg0: i32) -> (i32, i32) {
    %c0_i32 = arith.constant 0 : i32
    %c0_i32_0 = arith.constant 0 : i32
    %c0_i32_1 = arith.constant 0 : i32
    return %c0_i32, %c0_i32_0 : i32, i32
  }
  func.func @transform_2(%arg0: i32) -> (i32, i32) {
    %c0_i32 = arith.constant 0 : i32
    %c0_i32_0 = arith.constant 0 : i32
    %c0_i32_1 = arith.constant 0 : i32
    return %c0_i32, %c0_i32_0 : i32, i32
  }
  func.func @transform_3(%arg0: i32) -> (i32, i32) {
    %c0_i32 = arith.constant 0 : i32
    %c0_i32_0 = arith.constant 0 : i32
    %c0_i32_1 = arith.constant 0 : i32
    return %c0_i32, %c0_i32_0 : i32, i32
  }
  func.func @transform_4(%arg0: i32) -> (i32, i32) {
    %c0_i32 = arith.constant 0 : i32
    %c0_i32_0 = arith.constant 0 : i32
    return %arg0, %c0_i32 : i32, i32
  }
}

</mosaic_0001>

<llo_original>
// kernel: tpu_custom_call.1
$region0: #{tpu_custom_call.1}
  #allocation0 [shape = 'u32[]', space=smem, size = 0x4, offset = 0x4, fixed_abs, tag = 'smem constant byte address 0x4 - core index']
  #allocation1 [shape = 'u32[144,128]{1,0:T(1,128)}', space=vmem, size = 0x12000, scoped, tag = 'internal scratch']
  %s0 = inlined_call_operand.vmem [shape: bf16[2048,27], index: 0, kind: input, shape index: {}]
  %s1 = inlined_call_operand.vmem [shape: bf16[27,32], index: 1, kind: input, shape index: {}]
  %s2 = inlined_call_operand.vmem [shape: f32[1,32], index: 2, kind: input, shape index: {}]
  %s3 = inlined_call_operand.vmem [shape: f32[1,32], index: 3, kind: input, shape index: {}]
  %s4 = inlined_call_operand.vmem [shape: bf16[2048,32], index: 4, kind: output, shape index: {}]
  %s5 = sld [smem:[#allocation0]]
  $region26: #{tpu_custom_call.1} parent=0
    _
  %s7 = ssub.s32 1, %s5
  %s8 = scalar_select 0, %s7, %s5
  // Predicated region
  $region2: #{tpu_custom_call.1} parent=0 // pred_check
    _
  $region3: #{tpu_custom_call.1} parent=0 // pred_check_branch
    %10 = sbr.rel (0) target = $region5
  $region4: #{tpu_custom_call.1} parent=0 // pred_region
    _
  $region5: #{tpu_custom_call.1} parent=0 // pred_fallthru
    _
  // Predicated region
  $region6: #{tpu_custom_call.1} parent=0 // pred_check
    _
  $region7: #{tpu_custom_call.1} parent=0 // pred_check_branch
    %12 = sbr.rel (0) target = $region9
  $region8: #{tpu_custom_call.1} parent=0 // pred_region
    _
  $region9: #{tpu_custom_call.1} parent=0 // pred_fallthru
    _
  // Predicated region
  $region10: #{tpu_custom_call.1} parent=0 // pred_check
    _
  $region11: #{tpu_custom_call.1} parent=0 // pred_check_branch
    %14 = sbr.rel (0) target = $region13
  $region12: #{tpu_custom_call.1} parent=0 // pred_region
    _
  $region13: #{tpu_custom_call.1} parent=0 // pred_fallthru
    _
  // Predicated region
  $region14: #{tpu_custom_call.1} parent=0 // pred_check
    _
  $region15: #{tpu_custom_call.1} parent=0 // pred_check_branch
    %16 = sbr.rel (0) target = $region17
  $region16: #{tpu_custom_call.1} parent=0 // pred_region
    _
  $region17: #{tpu_custom_call.1} parent=0 // pred_fallthru
    _
  %v18 = vld [vmem:[%s0] sm:$0xf]
  %v19 = vld [vmem:[%s0 + $0x4] sm:$0xf]
  %v20 = vld [vmem:[%s0 + $0x8] sm:$0xf]
  %v21 = vld [vmem:[%s0 + $0xc] sm:$0xf]
  %v22 = vld [vmem:[%s0 + $0x10] sm:$0xf]
  %v23 = vld [vmem:[%s0 + $0x14] sm:$0xf]
  %v24 = vld [vmem:[%s0 + $0x18] sm:$0xf]
  %v25 = vld [vmem:[%s0 + $0x1c] sm:$0xf]
  %v26 = vld [vmem:[%s0 + $0x20] sm:$0xf]
  %v27 = vld [vmem:[%s0 + $0x24] sm:$0xf]
  %v28 = vld [vmem:[%s0 + $0x28] sm:$0xf]
  %v29 = vld [vmem:[%s0 + $0x2c] sm:$0xf]
  %v30 = vld [vmem:[%s0 + $0x30] sm:$0xf]
  %v31 = vld [vmem:[%s0 + $0x34] sm:$0xf]
  %v32 = vld [vmem:[%s0 + $0x38] sm:$0xf]
  %v33 = vld [vmem:[%s0 + $0x3c] sm:$0xf]
  %v34 = vld [vmem:[%s0 + $0x40] sm:$0xf]
  %v35 = vld [vmem:[%s0 + $0x44] sm:$0xf]
  %v36 = vld [vmem:[%s0 + $0x48] sm:$0xf]
  %v37 = vld [vmem:[%s0 + $0x4c] sm:$0xf]
  %v38 = vld [vmem:[%s0 + $0x50] sm:$0xf]
  %v39 = vld [vmem:[%s0 + $0x54] sm:$0xf]
  %v40 = vld [vmem:[%s0 + $0x58] sm:$0xf]
  %v41 = vld [vmem:[%s0 + $0x5c] sm:$0xf]
  %v42 = vld [vmem:[%s0 + $0x60] sm:$0xf]
  %v43 = vld [vmem:[%s0 + $0x64] sm:$0xf]
  %v44 = vld [vmem:[%s0 + $0x68] sm:$0xf]
  %v45 = vld [vmem:[%s0 + $0x6c] sm:$0xf]
  %v46 = vld [vmem:[%s0 + $0x70] sm:$0xf]
  %v47 = vld [vmem:[%s0 + $0x74] sm:$0xf]
  %v48 = vld [vmem:[%s0 + $0x78] sm:$0xf]
  %v49 = vld [vmem:[%s0 + $0x7c] sm:$0xf]
  %v50 = vld [vmem:[%s0 + $0x80] sm:$0xf]
  %v51 = vld [vmem:[%s0 + $0x84] sm:$0xf]
  %v52 = vld [vmem:[%s0 + $0x88] sm:$0xf]
  %v53 = vld [vmem:[%s0 + $0x8c] sm:$0xf]
  %v54 = vld [vmem:[%s0 + $0x90] sm:$0xf]
  %v55 = vld [vmem:[%s0 + $0x94] sm:$0xf]
  %v56 = vld [vmem:[%s0 + $0x98] sm:$0xf]
  %v57 = vld [vmem:[%s0 + $0x9c] sm:$0xf]
  %v58 = vld [vmem:[%s0 + $0xa0] sm:$0xf]
  %v59 = vld [vmem:[%s0 + $0xa4] sm:$0xf]
  %v60 = vld [vmem:[%s0 + $0xa8] sm:$0xf]
  %v61 = vld [vmem:[%s0 + $0xac] sm:$0xf]
  %v62 = vld [vmem:[%s0 + $0xb0] sm:$0xf]
  %v63 = vld [vmem:[%s0 + $0xb4] sm:$0xf]
  %v64 = vld [vmem:[%s0 + $0xb8] sm:$0xf]
  %v65 = vld [vmem:[%s0 + $0xbc] sm:$0xf]
  %v66 = vld [vmem:[%s0 + $0xc0] sm:$0xf]
  %v67 = vld [vmem:[%s0 + $0xc4] sm:$0xf]
  %v68 = vld [vmem:[%s0 + $0xc8] sm:$0xf]
  %v69 = vld [vmem:[%s0 + $0xcc] sm:$0xf]
  %v70 = vld [vmem:[%s0 + $0xd0] sm:$0xf]
  %v71 = vld [vmem:[%s0 + $0xd4] sm:$0xf]
  %v72 = vld [vmem:[%s0 + $0xd8] sm:$0xf]
  %v73 = vld [vmem:[%s0 + $0xdc] sm:$0xf]
  %v74 = vld [vmem:[%s0 + $0xe0] sm:$0xf]
  %v75 = vld [vmem:[%s0 + $0xe4] sm:$0xf]
  %v76 = vld [vmem:[%s0 + $0xe8] sm:$0xf]
  %v77 = vld [vmem:[%s0 + $0xec] sm:$0xf]
  %v78 = vld [vmem:[%s0 + $0xf0] sm:$0xf]
  %v79 = vld [vmem:[%s0 + $0xf4] sm:$0xf]
  %v80 = vld [vmem:[%s0 + $0xf8] sm:$0xf]
  %v81 = vld [vmem:[%s0 + $0xfc] sm:$0xf]
  %v82 = vld [vmem:[%s0 + $0x100] sm:$0xf]
  %v83 = vld [vmem:[%s0 + $0x104] sm:$0xf]
  %v84 = vld [vmem:[%s0 + $0x108] sm:$0xf]
  %v85 = vld [vmem:[%s0 + $0x10c] sm:$0xf]
  %v86 = vld [vmem:[%s0 + $0x110] sm:$0xf]
  %v87 = vld [vmem:[%s0 + $0x114] sm:$0xf]
  %v88 = vld [vmem:[%s0 + $0x118] sm:$0xf]
  %v89 = vld [vmem:[%s0 + $0x11c] sm:$0xf]
  %v90 = vld [vmem:[%s0 + $0x120] sm:$0xf]
  %v91 = vld [vmem:[%s0 + $0x124] sm:$0xf]
  %v92 = vld [vmem:[%s0 + $0x128] sm:$0xf]
  %v93 = vld [vmem:[%s0 + $0x12c] sm:$0xf]
  %v94 = vld [vmem:[%s0 + $0x130] sm:$0xf]
  %v95 = vld [vmem:[%s0 + $0x134] sm:$0xf]
  %v96 = vld [vmem:[%s0 + $0x138] sm:$0xf]
  %v97 = vld [vmem:[%s0 + $0x13c] sm:$0xf]
  %v98 = vld [vmem:[%s0 + $0x140] sm:$0xf]
  %v99 = vld [vmem:[%s0 + $0x144] sm:$0xf]
  %v100 = vld [vmem:[%s0 + $0x148] sm:$0xf]
  %v101 = vld [vmem:[%s0 + $0x14c] sm:$0xf]
  %v102 = vld [vmem:[%s0 + $0x150] sm:$0xf]
  %v103 = vld [vmem:[%s0 + $0x154] sm:$0xf]
  %v104 = vld [vmem:[%s0 + $0x158] sm:$0xf]
  %v105 = vld [vmem:[%s0 + $0x15c] sm:$0xf]
  %v106 = vld [vmem:[%s0 + $0x160] sm:$0xf]
  %v107 = vld [vmem:[%s0 + $0x164] sm:$0xf]
  %v108 = vld [vmem:[%s0 + $0x168] sm:$0xf]
  %v109 = vld [vmem:[%s0 + $0x16c] sm:$0xf]
  %v110 = vld [vmem:[%s0 + $0x170] sm:$0xf]
  %v111 = vld [vmem:[%s0 + $0x174] sm:$0xf]
  %v112 = vld [vmem:[%s0 + $0x178] sm:$0xf]
  %v113 = vld [vmem:[%s0 + $0x17c] sm:$0xf]
  %v114 = vld [vmem:[%s0 + $0x180] sm:$0xf]
  %v115 = vld [vmem:[%s0 + $0x184] sm:$0xf]
  %v116 = vld [vmem:[%s0 + $0x188] sm:$0xf]
  %v117 = vld [vmem:[%s0 + $0x18c] sm:$0xf]
  %v118 = vld [vmem:[%s0 + $0x190] sm:$0xf]
  %v119 = vld [vmem:[%s0 + $0x194] sm:$0xf]
  %v120 = vld [vmem:[%s0 + $0x198] sm:$0xf]
  %v121 = vld [vmem:[%s0 + $0x19c] sm:$0xf]
  %v122 = vld [vmem:[%s0 + $0x1a0] sm:$0xf]
  %v123 = vld [vmem:[%s0 + $0x1a4] sm:$0xf]
  %v124 = vld [vmem:[%s0 + $0x1a8] sm:$0xf]
  %v125 = vld [vmem:[%s0 + $0x1ac] sm:$0xf]
  %v126 = vld [vmem:[%s0 + $0x1b0] sm:$0xf]
  %v127 = vld [vmem:[%s0 + $0x1b4] sm:$0xf]
  %v128 = vld [vmem:[%s0 + $0x1b8] sm:$0xf]
  %v129 = vld [vmem:[%s0 + $0x1bc] sm:$0xf]
  %v130 = vld [vmem:[%s0 + $0x1c0] sm:$0xf]
  %v131 = vld [vmem:[%s0 + $0x1c4] sm:$0xf]
  %v132 = vld [vmem:[%s0 + $0x1c8] sm:$0xf]
  %v133 = vld [vmem:[%s0 + $0x1cc] sm:$0xf]
  %v134 = vld [vmem:[%s0 + $0x1d0] sm:$0xf]
  %v135 = vld [vmem:[%s0 + $0x1d4] sm:$0xf]
  %v136 = vld [vmem:[%s0 + $0x1d8] sm:$0xf]
  %v137 = vld [vmem:[%s0 + $0x1dc] sm:$0xf]
  %v138 = vld [vmem:[%s0 + $0x1e0] sm:$0xf]
  %v139 = vld [vmem:[%s0 + $0x1e4] sm:$0xf]
  %v140 = vld [vmem:[%s0 + $0x1e8] sm:$0xf]
  %v141 = vld [vmem:[%s0 + $0x1ec] sm:$0xf]
  %v142 = vld [vmem:[%s0 + $0x1f0] sm:$0xf]
  %v143 = vld [vmem:[%s0 + $0x1f4] sm:$0xf]
  %v144 = vld [vmem:[%s0 + $0x1f8] sm:$0xf]
  %v145 = vld [vmem:[%s0 + $0x1fc] sm:$0xf]
  %v146 = vld [vmem:[%s0 + $0x200] sm:$0xf]
  %v147 = vld [vmem:[%s0 + $0x204] sm:$0xf]
  %v148 = vld [vmem:[%s0 + $0x208] sm:$0xf]
  %v149 = vld [vmem:[%s0 + $0x20c] sm:$0xf]
  %v150 = vld [vmem:[%s0 + $0x210] sm:$0xf]
  %v151 = vld [vmem:[%s0 + $0x214] sm:$0xf]
  %v152 = vld [vmem:[%s0 + $0x218] sm:$0xf]
  %v153 = vld [vmem:[%s0 + $0x21c] sm:$0xf]
  %v154 = vld [vmem:[%s0 + $0x220] sm:$0xf]
  %v155 = vld [vmem:[%s0 + $0x224] sm:$0xf]
  %v156 = vld [vmem:[%s0 + $0x228] sm:$0xf]
  %v157 = vld [vmem:[%s0 + $0x22c] sm:$0xf]
  %v158 = vld [vmem:[%s0 + $0x230] sm:$0xf]
  %v159 = vld [vmem:[%s0 + $0x234] sm:$0xf]
  %v160 = vld [vmem:[%s0 + $0x238] sm:$0xf]
  %v161 = vld [vmem:[%s0 + $0x23c] sm:$0xf]
  %v162 = vld [vmem:[%s0 + $0x240] sm:$0xf]
  %v163 = vld [vmem:[%s0 + $0x244] sm:$0xf]
  %v164 = vld [vmem:[%s0 + $0x248] sm:$0xf]
  %v165 = vld [vmem:[%s0 + $0x24c] sm:$0xf]
  %v166 = vld [vmem:[%s0 + $0x250] sm:$0xf]
  %v167 = vld [vmem:[%s0 + $0x254] sm:$0xf]
  %v168 = vld [vmem:[%s0 + $0x258] sm:$0xf]
  %v169 = vld [vmem:[%s0 + $0x25c] sm:$0xf]
  %v170 = vld [vmem:[%s0 + $0x260] sm:$0xf]
  %v171 = vld [vmem:[%s0 + $0x264] sm:$0xf]
  %v172 = vld [vmem:[%s0 + $0x268] sm:$0xf]
  %v173 = vld [vmem:[%s0 + $0x26c] sm:$0xf]
  %v174 = vld [vmem:[%s0 + $0x270] sm:$0xf]
  %v175 = vld [vmem:[%s0 + $0x274] sm:$0xf]
  %v176 = vld [vmem:[%s0 + $0x278] sm:$0xf]
  %v177 = vld [vmem:[%s0 + $0x27c] sm:$0xf]
  %v178 = vld [vmem:[%s0 + $0x280] sm:$0xf]
  %v179 = vld [vmem:[%s0 + $0x284] sm:$0xf]
  %v180 = vld [vmem:[%s0 + $0x288] sm:$0xf]
  %v181 = vld [vmem:[%s0 + $0x28c] sm:$0xf]
  %v182 = vld [vmem:[%s0 + $0x290] sm:$0xf]
  %v183 = vld [vmem:[%s0 + $0x294] sm:$0xf]
  %v184 = vld [vmem:[%s0 + $0x298] sm:$0xf]
  %v185 = vld [vmem:[%s0 + $0x29c] sm:$0xf]
  %v186 = vld [vmem:[%s0 + $0x2a0] sm:$0xf]
  %v187 = vld [vmem:[%s0 + $0x2a4] sm:$0xf]
  %v188 = vld [vmem:[%s0 + $0x2a8] sm:$0xf]
  %v189 = vld [vmem:[%s0 + $0x2ac] sm:$0xf]
  %v190 = vld [vmem:[%s0 + $0x2b0] sm:$0xf]
  %v191 = vld [vmem:[%s0 + $0x2b4] sm:$0xf]
  %v192 = vld [vmem:[%s0 + $0x2b8] sm:$0xf]
  %v193 = vld [vmem:[%s0 + $0x2bc] sm:$0xf]
  %v194 = vld [vmem:[%s0 + $0x2c0] sm:$0xf]
  %v195 = vld [vmem:[%s0 + $0x2c4] sm:$0xf]
  %v196 = vld [vmem:[%s0 + $0x2c8] sm:$0xf]
  %v197 = vld [vmem:[%s0 + $0x2cc] sm:$0xf]
  %v198 = vld [vmem:[%s0 + $0x2d0] sm:$0xf]
  %v199 = vld [vmem:[%s0 + $0x2d4] sm:$0xf]
  %v200 = vld [vmem:[%s0 + $0x2d8] sm:$0xf]
  %v201 = vld [vmem:[%s0 + $0x2dc] sm:$0xf]
  %v202 = vld [vmem:[%s0 + $0x2e0] sm:$0xf]
  %v203 = vld [vmem:[%s0 + $0x2e4] sm:$0xf]
  %v204 = vld [vmem:[%s0 + $0x2e8] sm:$0xf]
  %v205 = vld [vmem:[%s0 + $0x2ec] sm:$0xf]
  %v206 = vld [vmem:[%s0 + $0x2f0] sm:$0xf]
  %v207 = vld [vmem:[%s0 + $0x2f4] sm:$0xf]
  %v208 = vld [vmem:[%s0 + $0x2f8] sm:$0xf]
  %v209 = vld [vmem:[%s0 + $0x2fc] sm:$0xf]
  %v210 = vld [vmem:[%s0 + $0x300] sm:$0xf]
  %v211 = vld [vmem:[%s0 + $0x304] sm:$0xf]
  %v212 = vld [vmem:[%s0 + $0x308] sm:$0xf]
  %v213 = vld [vmem:[%s0 + $0x30c] sm:$0xf]
  %v214 = vld [vmem:[%s0 + $0x310] sm:$0xf]
  %v215 = vld [vmem:[%s0 + $0x314] sm:$0xf]
  %v216 = vld [vmem:[%s0 + $0x318] sm:$0xf]
  %v217 = vld [vmem:[%s0 + $0x31c] sm:$0xf]
  %v218 = vld [vmem:[%s0 + $0x320] sm:$0xf]
  %v219 = vld [vmem:[%s0 + $0x324] sm:$0xf]
  %v220 = vld [vmem:[%s0 + $0x328] sm:$0xf]
  %v221 = vld [vmem:[%s0 + $0x32c] sm:$0xf]
  %v222 = vld [vmem:[%s0 + $0x330] sm:$0xf]
  %v223 = vld [vmem:[%s0 + $0x334] sm:$0xf]
  %v224 = vld [vmem:[%s0 + $0x338] sm:$0xf]
  %v225 = vld [vmem:[%s0 + $0x33c] sm:$0xf]
  %v226 = vld [vmem:[%s0 + $0x340] sm:$0xf]
  %v227 = vld [vmem:[%s0 + $0x344] sm:$0xf]
  %v228 = vld [vmem:[%s0 + $0x348] sm:$0xf]
  %v229 = vld [vmem:[%s0 + $0x34c] sm:$0xf]
  %v230 = vld [vmem:[%s0 + $0x350] sm:$0xf]
  %v231 = vld [vmem:[%s0 + $0x354] sm:$0xf]
  %v232 = vld [vmem:[%s0 + $0x358] sm:$0xf]
  %v233 = vld [vmem:[%s0 + $0x35c] sm:$0xf]
  %v234 = vld [vmem:[%s0 + $0x360] sm:$0xf]
  %v235 = vld [vmem:[%s0 + $0x364] sm:$0xf]
  %v236 = vld [vmem:[%s0 + $0x368] sm:$0xf]
  %v237 = vld [vmem:[%s0 + $0x36c] sm:$0xf]
  %v238 = vld [vmem:[%s0 + $0x370] sm:$0xf]
  %v239 = vld [vmem:[%s0 + $0x374] sm:$0xf]
  %v240 = vld [vmem:[%s0 + $0x378] sm:$0xf]
  %v241 = vld [vmem:[%s0 + $0x37c] sm:$0xf]
  %v242 = vld [vmem:[%s0 + $0x380] sm:$0xf]
  %v243 = vld [vmem:[%s0 + $0x384] sm:$0xf]
  %v244 = vld [vmem:[%s0 + $0x388] sm:$0xf]
  %v245 = vld [vmem:[%s0 + $0x38c] sm:$0xf]
  %v246 = vld [vmem:[%s0 + $0x390] sm:$0xf]
  %v247 = vld [vmem:[%s0 + $0x394] sm:$0xf]
  %v248 = vld [vmem:[%s0 + $0x398] sm:$0xf]
  %v249 = vld [vmem:[%s0 + $0x39c] sm:$0xf]
  %v250 = vld [vmem:[%s0 + $0x3a0] sm:$0xf]
  %v251 = vld [vmem:[%s0 + $0x3a4] sm:$0xf]
  %v252 = vld [vmem:[%s0 + $0x3a8] sm:$0xf]
  %v253 = vld [vmem:[%s0 + $0x3ac] sm:$0xf]
  %v254 = vld [vmem:[%s0 + $0x3b0] sm:$0xf]
  %v255 = vld [vmem:[%s0 + $0x3b4] sm:$0xf]
  %v256 = vld [vmem:[%s0 + $0x3b8] sm:$0xf]
  %v257 = vld [vmem:[%s0 + $0x3bc] sm:$0xf]
  %v258 = vld [vmem:[%s0 + $0x3c0] sm:$0xf]
  %v259 = vld [vmem:[%s0 + $0x3c4] sm:$0xf]
  %v260 = vld [vmem:[%s0 + $0x3c8] sm:$0xf]
  %v261 = vld [vmem:[%s0 + $0x3cc] sm:$0xf]
  %v262 = vld [vmem:[%s0 + $0x3d0] sm:$0xf]
  %v263 = vld [vmem:[%s0 + $0x3d4] sm:$0xf]
  %v264 = vld [vmem:[%s0 + $0x3d8] sm:$0xf]
  %v265 = vld [vmem:[%s0 + $0x3dc] sm:$0xf]
  %v266 = vld [vmem:[%s0 + $0x3e0] sm:$0xf]
  %v267 = vld [vmem:[%s0 + $0x3e4] sm:$0xf]
  %v268 = vld [vmem:[%s0 + $0x3e8] sm:$0xf]
  %v269 = vld [vmem:[%s0 + $0x3ec] sm:$0xf]
  %v270 = vld [vmem:[%s0 + $0x3f0] sm:$0xf]
  %v271 = vld [vmem:[%s0 + $0x3f4] sm:$0xf]
  %v272 = vld [vmem:[%s0 + $0x3f8] sm:$0xf]
  %v273 = vld [vmem:[%s0 + $0x3fc] sm:$0xf]
  %v274 = vld [vmem:[%s1] sm:$0xf]
  %v275 = vld [vmem:[%s1 + $0x4] sm:$0xf]
  %v276 = vld [vmem:[%s1 + $0x8] sm:$0xf]
  %v277 = vld [vmem:[%s1 + $0xc] sm:$0x3]
  %v534 = vunpack.c.l.b16 %v18
  %v535 = vunpack.c.l.b16 %v19
  %v536 = vunpack.c.l.b16 %v20
  %v537 = vunpack.c.l.b16 %v21
  %v538 = vunpack.c.l.b16 %v22
  %v539 = vunpack.c.l.b16 %v23
  %v540 = vunpack.c.l.b16 %v24
  %v541 = vunpack.c.l.b16 %v25
  %v542 = vunpack.c.l.b16 %v26
  %v543 = vunpack.c.l.b16 %v27
  %v544 = vunpack.c.l.b16 %v28
  %v545 = vunpack.c.l.b16 %v29
  %v546 = vunpack.c.l.b16 %v30
  %v547 = vunpack.c.l.b16 %v31
  %v548 = vunpack.c.l.b16 %v32
  %v549 = vunpack.c.l.b16 %v33
  %v550 = vunpack.c.l.b16 %v34
  %v551 = vunpack.c.l.b16 %v35
  %v552 = vunpack.c.l.b16 %v36
  %v553 = vunpack.c.l.b16 %v37
  %v554 = vunpack.c.l.b16 %v38
  %v555 = vunpack.c.l.b16 %v39
  %v556 = vunpack.c.l.b16 %v40
  %v557 = vunpack.c.l.b16 %v41
  %v558 = vunpack.c.l.b16 %v42
  %v559 = vunpack.c.l.b16 %v43
  %v560 = vunpack.c.l.b16 %v44
  %v561 = vunpack.c.l.b16 %v45
  %v562 = vunpack.c.l.b16 %v46
  %v563 = vunpack.c.l.b16 %v47
  %v564 = vunpack.c.l.b16 %v48
  %v565 = vunpack.c.l.b16 %v49
  %v566 = vunpack.c.l.b16 %v50
  %v567 = vunpack.c.l.b16 %v51
  %v568 = vunpack.c.l.b16 %v52
  %v569 = vunpack.c.l.b16 %v53
  %v570 = vunpack.c.l.b16 %v54
  %v571 = vunpack.c.l.b16 %v55
  %v572 = vunpack.c.l.b16 %v56
  %v573 = vunpack.c.l.b16 %v57
  %v574 = vunpack.c.l.b16 %v58
  %v575 = vunpack.c.l.b16 %v59
  %v576 = vunpack.c.l.b16 %v60
  %v577 = vunpack.c.l.b16 %v61
  %v578 = vunpack.c.l.b16 %v62
  %v579 = vunpack.c.l.b16 %v63
  %v580 = vunpack.c.l.b16 %v64
  %v581 = vunpack.c.l.b16 %v65
  %v582 = vunpack.c.l.b16 %v66
  %v583 = vunpack.c.l.b16 %v67
  %v584 = vunpack.c.l.b16 %v68
  %v585 = vunpack.c.l.b16 %v69
  %v586 = vunpack.c.l.b16 %v70
  %v587 = vunpack.c.l.b16 %v71
  %v588 = vunpack.c.l.b16 %v72
  %v589 = vunpack.c.l.b16 %v73
  %v590 = vunpack.c.l.b16 %v74
  %v591 = vunpack.c.l.b16 %v75
  %v592 = vunpack.c.l.b16 %v76
  %v593 = vunpack.c.l.b16 %v77
  %v594 = vunpack.c.l.b16 %v78
  %v595 = vunpack.c.l.b16 %v79
  %v596 = vunpack.c.l.b16 %v80
  %v597 = vunpack.c.l.b16 %v81
  %v598 = vunpack.c.l.b16 %v82
  %v599 = vunpack.c.l.b16 %v83
  %v600 = vunpack.c.l.b16 %v84
  %v601 = vunpack.c.l.b16 %v85
  %v602 = vunpack.c.l.b16 %v86
  %v603 = vunpack.c.l.b16 %v87
  %v604 = vunpack.c.l.b16 %v88
  %v605 = vunpack.c.l.b16 %v89
  %v606 = vunpack.c.l.b16 %v90
  %v607 = vunpack.c.l.b16 %v91
  %v608 = vunpack.c.l.b16 %v92
  %v609 = vunpack.c.l.b16 %v93
  %v610 = vunpack.c.l.b16 %v94
  %v611 = vunpack.c.l.b16 %v95
  %v612 = vunpack.c.l.b16 %v96
  %v613 = vunpack.c.l.b16 %v97
  %v614 = vunpack.c.l.b16 %v98
  %v615 = vunpack.c.l.b16 %v99
  %v616 = vunpack.c.l.b16 %v100
  %v617 = vunpack.c.l.b16 %v101
  %v618 = vunpack.c.l.b16 %v102
  %v619 = vunpack.c.l.b16 %v103
  %v620 = vunpack.c.l.b16 %v104
  %v621 = vunpack.c.l.b16 %v105
  %v622 = vunpack.c.l.b16 %v106
  %v623 = vunpack.c.l.b16 %v107
  %v624 = vunpack.c.l.b16 %v108
  %v625 = vunpack.c.l.b16 %v109
  %v626 = vunpack.c.l.b16 %v110
  %v627 = vunpack.c.l.b16 %v111
  %v628 = vunpack.c.l.b16 %v112
  %v629 = vunpack.c.l.b16 %v113
  %v630 = vunpack.c.l.b16 %v114
  %v631 = vunpack.c.l.b16 %v115
  %v632 = vunpack.c.l.b16 %v116
  %v633 = vunpack.c.l.b16 %v117
  %v634 = vunpack.c.l.b16 %v118
  %v635 = vunpack.c.l.b16 %v119
  %v636 = vunpack.c.l.b16 %v120
  %v637 = vunpack.c.l.b16 %v121
  %v638 = vunpack.c.l.b16 %v122
  %v639 = vunpack.c.l.b16 %v123
  %v640 = vunpack.c.l.b16 %v124
  %v641 = vunpack.c.l.b16 %v125
  %v642 = vunpack.c.l.b16 %v126
  %v643 = vunpack.c.l.b16 %v127
  %v644 = vunpack.c.l.b16 %v128
  %v645 = vunpack.c.l.b16 %v129
  %v646 = vunpack.c.l.b16 %v130
  %v647 = vunpack.c.l.b16 %v131
  %v648 = vunpack.c.l.b16 %v132
  %v649 = vunpack.c.l.b16 %v133
  %v650 = vunpack.c.l.b16 %v134
  %v651 = vunpack.c.l.b16 %v135
  %v652 = vunpack.c.l.b16 %v136
  %v653 = vunpack.c.l.b16 %v137
  %v654 = vunpack.c.l.b16 %v138
  %v655 = vunpack.c.l.b16 %v139
  %v656 = vunpack.c.l.b16 %v140
  %v657 = vunpack.c.l.b16 %v141
  %v658 = vunpack.c.l.b16 %v142
  %v659 = vunpack.c.l.b16 %v143
  %v660 = vunpack.c.l.b16 %v144
  %v661 = vunpack.c.l.b16 %v145
  %v662 = vunpack.c.l.b16 %v146
  %v663 = vunpack.c.l.b16 %v147
  %v664 = vunpack.c.l.b16 %v148
  %v665 = vunpack.c.l.b16 %v149
  %v666 = vunpack.c.l.b16 %v150
  %v667 = vunpack.c.l.b16 %v151
  %v668 = vunpack.c.l.b16 %v152
  %v669 = vunpack.c.l.b16 %v153
  %v670 = vunpack.c.l.b16 %v154
  %v671 = vunpack.c.l.b16 %v155
  %v672 = vunpack.c.l.b16 %v156
  %v673 = vunpack.c.l.b16 %v157
  %v674 = vunpack.c.l.b16 %v158
  %v675 = vunpack.c.l.b16 %v159
  %v676 = vunpack.c.l.b16 %v160
  %v677 = vunpack.c.l.b16 %v161
  %v678 = vunpack.c.l.b16 %v162
  %v679 = vunpack.c.l.b16 %v163
  %v680 = vunpack.c.l.b16 %v164
  %v681 = vunpack.c.l.b16 %v165
  %v682 = vunpack.c.l.b16 %v166
  %v683 = vunpack.c.l.b16 %v167
  %v684 = vunpack.c.l.b16 %v168
  %v685 = vunpack.c.l.b16 %v169
  %v686 = vunpack.c.l.b16 %v170
  %v687 = vunpack.c.l.b16 %v171
  %v688 = vunpack.c.l.b16 %v172
  %v689 = vunpack.c.l.b16 %v173
  %v690 = vunpack.c.l.b16 %v174
  %v691 = vunpack.c.l.b16 %v175
  %v692 = vunpack.c.l.b16 %v176
  %v693 = vunpack.c.l.b16 %v177
  %v694 = vunpack.c.l.b16 %v178
  %v695 = vunpack.c.l.b16 %v179
  %v696 = vunpack.c.l.b16 %v180
  %v697 = vunpack.c.l.b16 %v181
  %v698 = vunpack.c.l.b16 %v182
  %v699 = vunpack.c.l.b16 %v183
  %v700 = vunpack.c.l.b16 %v184
  %v701 = vunpack.c.l.b16 %v185
  %v702 = vunpack.c.l.b16 %v186
  %v703 = vunpack.c.l.b16 %v187
  %v704 = vunpack.c.l.b16 %v188
  %v705 = vunpack.c.l.b16 %v189
  %v706 = vunpack.c.l.b16 %v190
  %v707 = vunpack.c.l.b16 %v191
  %v708 = vunpack.c.l.b16 %v192
  %v709 = vunpack.c.l.b16 %v193
  %v710 = vunpack.c.l.b16 %v194
  %v711 = vunpack.c.l.b16 %v195
  %v712 = vunpack.c.l.b16 %v196
  %v713 = vunpack.c.l.b16 %v197
  %v714 = vunpack.c.l.b16 %v198
  %v715 = vunpack.c.l.b16 %v199
  %v716 = vunpack.c.l.b16 %v200
  %v717 = vunpack.c.l.b16 %v201
  %v718 = vunpack.c.l.b16 %v202
  %v719 = vunpack.c.l.b16 %v203
  %v720 = vunpack.c.l.b16 %v204
  %v721 = vunpack.c.l.b16 %v205
  %v722 = vunpack.c.l.b16 %v206
  %v723 = vunpack.c.l.b16 %v207
  %v724 = vunpack.c.l.b16 %v208
  %v725 = vunpack.c.l.b16 %v209
  %v726 = vunpack.c.l.b16 %v210
  %v727 = vunpack.c.l.b16 %v211
  %v728 = vunpack.c.l.b16 %v212
  %v729 = vunpack.c.l.b16 %v213
  %v730 = vunpack.c.l.b16 %v214
  %v731 = vunpack.c.l.b16 %v215
  %v732 = vunpack.c.l.b16 %v216
  %v733 = vunpack.c.l.b16 %v217
  %v734 = vunpack.c.l.b16 %v218
  %v735 = vunpack.c.l.b16 %v219
  %v736 = vunpack.c.l.b16 %v220
  %v737 = vunpack.c.l.b16 %v221
  %v738 = vunpack.c.l.b16 %v222
  %v739 = vunpack.c.l.b16 %v223
  %v740 = vunpack.c.l.b16 %v224
  %v741 = vunpack.c.l.b16 %v225
  %v742 = vunpack.c.l.b16 %v226
  %v743 = vunpack.c.l.b16 %v227
  %v744 = vunpack.c.l.b16 %v228
  %v745 = vunpack.c.l.b16 %v229
  %v746 = vunpack.c.l.b16 %v230
  %v747 = vunpack.c.l.b16 %v231
  %v748 = vunpack.c.l.b16 %v232
  %v749 = vunpack.c.l.b16 %v233
  %v750 = vunpack.c.l.b16 %v234
  %v751 = vunpack.c.l.b16 %v235
  %v752 = vunpack.c.l.b16 %v236
  %v753 = vunpack.c.l.b16 %v237
  %v754 = vunpack.c.l.b16 %v238
  %v755 = vunpack.c.l.b16 %v239
  %v756 = vunpack.c.l.b16 %v240
  %v757 = vunpack.c.l.b16 %v241
  %v758 = vunpack.c.l.b16 %v242
  %v759 = vunpack.c.l.b16 %v243
  %v760 = vunpack.c.l.b16 %v244
  %v761 = vunpack.c.l.b16 %v245
  %v762 = vunpack.c.l.b16 %v246
  %v763 = vunpack.c.l.b16 %v247
  %v764 = vunpack.c.l.b16 %v248
  %v765 = vunpack.c.l.b16 %v249
  %v766 = vunpack.c.l.b16 %v250
  %v767 = vunpack.c.l.b16 %v251
  %v768 = vunpack.c.l.b16 %v252
  %v769 = vunpack.c.l.b16 %v253
  %v770 = vunpack.c.l.b16 %v254
  %v771 = vunpack.c.l.b16 %v255
  %v772 = vunpack.c.l.b16 %v256
  %v773 = vunpack.c.l.b16 %v257
  %v774 = vunpack.c.l.b16 %v258
  %v775 = vunpack.c.l.b16 %v259
  %v776 = vunpack.c.l.b16 %v260
  %v777 = vunpack.c.l.b16 %v261
  %v778 = vunpack.c.l.b16 %v262
  %v779 = vunpack.c.l.b16 %v263
  %v780 = vunpack.c.l.b16 %v264
  %v781 = vunpack.c.l.b16 %v265
  %v782 = vunpack.c.l.b16 %v266
  %v783 = vunpack.c.l.b16 %v267
  %v784 = vunpack.c.l.b16 %v268
  %v785 = vunpack.c.l.b16 %v269
  %v786 = vunpack.c.l.b16 %v270
  %v787 = vunpack.c.l.b16 %v271
  %v788 = vunpack.c.l.b16 %v272
  %v789 = vunpack.c.l.b16 %v273
  %v790 = vpack.c.b16 %v535, %v534
  %v791 = vpack.c.b16 %v537, %v536
  %v792 = vpack.c.b16 %v539, %v538
  %v793 = vpack.c.b16 %v541, %v540
  %v794 = vpack.c.b16 %v543, %v542
  %v795 = vpack.c.b16 %v545, %v544
  %v796 = vpack.c.b16 %v547, %v546
  %v797 = vpack.c.b16 %v549, %v548
  %v798 = vpack.c.b16 %v551, %v550
  %v799 = vpack.c.b16 %v553, %v552
  %v800 = vpack.c.b16 %v555, %v554
  %v801 = vpack.c.b16 %v557, %v556
  %v802 = vpack.c.b16 %v559, %v558
  %v803 = vpack.c.b16 %v561, %v560
  %v804 = vpack.c.b16 %v563, %v562
  %v805 = vpack.c.b16 %v565, %v564
  %v806 = vpack.c.b16 %v567, %v566
  %v807 = vpack.c.b16 %v569, %v568
  %v808 = vpack.c.b16 %v571, %v570
  %v809 = vpack.c.b16 %v573, %v572
  %v810 = vpack.c.b16 %v575, %v574
  %v811 = vpack.c.b16 %v577, %v576
  %v812 = vpack.c.b16 %v579, %v578
  %v813 = vpack.c.b16 %v581, %v580
  %v814 = vpack.c.b16 %v583, %v582
  %v815 = vpack.c.b16 %v585, %v584
  %v816 = vpack.c.b16 %v587, %v586
  %v817 = vpack.c.b16 %v589, %v588
  %v818 = vpack.c.b16 %v591, %v590
  %v819 = vpack.c.b16 %v593, %v592
  %v820 = vpack.c.b16 %v595, %v594
  %v821 = vpack.c.b16 %v597, %v596
  %v822 = vpack.c.b16 %v599, %v598
  %v823 = vpack.c.b16 %v601, %v600
  %v824 = vpack.c.b16 %v603, %v602
  %v825 = vpack.c.b16 %v605, %v604
  %v826 = vpack.c.b16 %v607, %v606
  %v827 = vpack.c.b16 %v609, %v608
  %v828 = vpack.c.b16 %v611, %v610
  %v829 = vpack.c.b16 %v613, %v612
  %v830 = vpack.c.b16 %v615, %v614
  %v831 = vpack.c.b16 %v617, %v616
  %v832 = vpack.c.b16 %v619, %v618
  %v833 = vpack.c.b16 %v621, %v620
  %v834 = vpack.c.b16 %v623, %v622
  %v835 = vpack.c.b16 %v625, %v624
  %v836 = vpack.c.b16 %v627, %v626
  %v837 = vpack.c.b16 %v629, %v628
  %v838 = vpack.c.b16 %v631, %v630
  %v839 = vpack.c.b16 %v633, %v632
  %v840 = vpack.c.b16 %v635, %v634
  %v841 = vpack.c.b16 %v637, %v636
  %v842 = vpack.c.b16 %v639, %v638
  %v843 = vpack.c.b16 %v641, %v640
  %v844 = vpack.c.b16 %v643, %v642
  %v845 = vpack.c.b16 %v645, %v644
  %v846 = vpack.c.b16 %v647, %v646
  %v847 = vpack.c.b16 %v649, %v648
  %v848 = vpack.c.b16 %v651, %v650
  %v849 = vpack.c.b16 %v653, %v652
  %v850 = vpack.c.b16 %v655, %v654
  %v851 = vpack.c.b16 %v657, %v656
  %v852 = vpack.c.b16 %v659, %v658
  %v853 = vpack.c.b16 %v661, %v660
  %v854 = vpack.c.b16 %v663, %v662
  %v855 = vpack.c.b16 %v665, %v664
  %v856 = vpack.c.b16 %v667, %v666
  %v857 = vpack.c.b16 %v669, %v668
  %v858 = vpack.c.b16 %v671, %v670
  %v859 = vpack.c.b16 %v673, %v672
  %v860 = vpack.c.b16 %v675, %v674
  %v861 = vpack.c.b16 %v677, %v676
  %v862 = vpack.c.b16 %v679, %v678
  %v863 = vpack.c.b16 %v681, %v680
  %v864 = vpack.c.b16 %v683, %v682
  %v865 = vpack.c.b16 %v685, %v684
  %v866 = vpack.c.b16 %v687, %v686
  %v867 = vpack.c.b16 %v689, %v688
  %v868 = vpack.c.b16 %v691, %v690
  %v869 = vpack.c.b16 %v693, %v692
  %v870 = vpack.c.b16 %v695, %v694
  %v871 = vpack.c.b16 %v697, %v696
  %v872 = vpack.c.b16 %v699, %v698
  %v873 = vpack.c.b16 %v701, %v700
  %v874 = vpack.c.b16 %v703, %v702
  %v875 = vpack.c.b16 %v705, %v704
  %v876 = vpack.c.b16 %v707, %v706
  %v877 = vpack.c.b16 %v709, %v708
  %v878 = vpack.c.b16 %v711, %v710
  %v879 = vpack.c.b16 %v713, %v712
  %v880 = vpack.c.b16 %v715, %v714
  %v881 = vpack.c.b16 %v717, %v716
  %v882 = vpack.c.b16 %v719, %v718
  %v883 = vpack.c.b16 %v721, %v720
  %v884 = vpack.c.b16 %v723, %v722
  %v885 = vpack.c.b16 %v725, %v724
  %v886 = vpack.c.b16 %v727, %v726
  %v887 = vpack.c.b16 %v729, %v728
  %v888 = vpack.c.b16 %v731, %v730
  %v889 = vpack.c.b16 %v733, %v732
  %v890 = vpack.c.b16 %v735, %v734
  %v891 = vpack.c.b16 %v737, %v736
  %v892 = vpack.c.b16 %v739, %v738
  %v893 = vpack.c.b16 %v741, %v740
  %v894 = vpack.c.b16 %v743, %v742
  %v895 = vpack.c.b16 %v745, %v744
  %v896 = vpack.c.b16 %v747, %v746
  %v897 = vpack.c.b16 %v749, %v748
  %v898 = vpack.c.b16 %v751, %v750
  %v899 = vpack.c.b16 %v753, %v752
  %v900 = vpack.c.b16 %v755, %v754
  %v901 = vpack.c.b16 %v757, %v756
  %v902 = vpack.c.b16 %v759, %v758
  %v903 = vpack.c.b16 %v761, %v760
  %v904 = vpack.c.b16 %v763, %v762
  %v905 = vpack.c.b16 %v765, %v764
  %v906 = vpack.c.b16 %v767, %v766
  %v907 = vpack.c.b16 %v769, %v768
  %v908 = vpack.c.b16 %v771, %v770
  %v909 = vpack.c.b16 %v773, %v772
  %v910 = vpack.c.b16 %v775, %v774
  %v911 = vpack.c.b16 %v777, %v776
  %v912 = vpack.c.b16 %v779, %v778
  %v913 = vpack.c.b16 %v781, %v780
  %v914 = vpack.c.b16 %v783, %v782
  %v915 = vpack.c.b16 %v785, %v784
  %v916 = vpack.c.b16 %v787, %v786
  %v917 = vpack.c.b16 %v789, %v788
  %v922 = vunpack.c.l.b16 %v274
  %v923 = vunpack.c.l.b16 %v275
  %v924 = vunpack.c.l.b16 %v276
  %v925 = vunpack.c.l.b16 %v277
  %v926 = vpack.c.b16 %v923, %v922
  %v927 = vpack.c.b16 %v925, %v924
  %vm929 = vcmask 220160
  %v931 = vsel %vm929, %v790, 0
  %v934 = vsel %vm929, %v791, 0
  %v937 = vsel %vm929, %v792, 0
  %v940 = vsel %vm929, %v793, 0
  %v943 = vsel %vm929, %v794, 0
  %v946 = vsel %vm929, %v795, 0
  %v949 = vsel %vm929, %v796, 0
  %v952 = vsel %vm929, %v797, 0
  %v955 = vsel %vm929, %v798, 0
  %v958 = vsel %vm929, %v799, 0
  %v961 = vsel %vm929, %v800, 0
  %v964 = vsel %vm929, %v801, 0
  %v967 = vsel %vm929, %v802, 0
  %v970 = vsel %vm929, %v803, 0
  %v973 = vsel %vm929, %v804, 0
  %v976 = vsel %vm929, %v805, 0
  %v979 = vsel %vm929, %v806, 0
  %v982 = vsel %vm929, %v807, 0
  %v985 = vsel %vm929, %v808, 0
  %v988 = vsel %vm929, %v809, 0
  %v991 = vsel %vm929, %v810, 0
  %v994 = vsel %vm929, %v811, 0
  %v997 = vsel %vm929, %v812, 0
  %v1000 = vsel %vm929, %v813, 0
  %v1003 = vsel %vm929, %v814, 0
  %v1006 = vsel %vm929, %v815, 0
  %v1009 = vsel %vm929, %v816, 0
  %v1012 = vsel %vm929, %v817, 0
  %v1015 = vsel %vm929, %v818, 0
  %v1018 = vsel %vm929, %v819, 0
  %v1021 = vsel %vm929, %v820, 0
  %v1024 = vsel %vm929, %v821, 0
  %v1027 = vsel %vm929, %v822, 0
  %v1030 = vsel %vm929, %v823, 0
  %v1033 = vsel %vm929, %v824, 0
  %v1036 = vsel %vm929, %v825, 0
  %v1039 = vsel %vm929, %v826, 0
  %v1042 = vsel %vm929, %v827, 0
  %v1045 = vsel %vm929, %v828, 0
  %v1048 = vsel %vm929, %v829, 0
  %v1051 = vsel %vm929, %v830, 0
  %v1054 = vsel %vm929, %v831, 0
  %v1057 = vsel %vm929, %v832, 0
  %v1060 = vsel %vm929, %v833, 0
  %v1063 = vsel %vm929, %v834, 0
  %v1066 = vsel %vm929, %v835, 0
  %v1069 = vsel %vm929, %v836, 0
  %v1072 = vsel %vm929, %v837, 0
  %v1075 = vsel %vm929, %v838, 0
  %v1078 = vsel %vm929, %v839, 0
  %v1081 = vsel %vm929, %v840, 0
  %v1084 = vsel %vm929, %v841, 0
  %v1087 = vsel %vm929, %v842, 0
  %v1090 = vsel %vm929, %v843, 0
  %v1093 = vsel %vm929, %v844, 0
  %v1096 = vsel %vm929, %v845, 0
  %v1099 = vsel %vm929, %v846, 0
  %v1102 = vsel %vm929, %v847, 0
  %v1105 = vsel %vm929, %v848, 0
  %v1108 = vsel %vm929, %v849, 0
  %v1111 = vsel %vm929, %v850, 0
  %v1114 = vsel %vm929, %v851, 0
  %v1117 = vsel %vm929, %v852, 0
  %v1120 = vsel %vm929, %v853, 0
  %v1123 = vsel %vm929, %v854, 0
  %v1126 = vsel %vm929, %v855, 0
  %v1129 = vsel %vm929, %v856, 0
  %v1132 = vsel %vm929, %v857, 0
  %v1135 = vsel %vm929, %v858, 0
  %v1138 = vsel %vm929, %v859, 0
  %v1141 = vsel %vm929, %v860, 0
  %v1144 = vsel %vm929, %v861, 0
  %v1147 = vsel %vm929, %v862, 0
  %v1150 = vsel %vm929, %v863, 0
  %v1153 = vsel %vm929, %v864, 0
  %v1156 = vsel %vm929, %v865, 0
  %v1159 = vsel %vm929, %v866, 0
  %v1162 = vsel %vm929, %v867, 0
  %v1165 = vsel %vm929, %v868, 0
  %v1168 = vsel %vm929, %v869, 0
  %v1171 = vsel %vm929, %v870, 0
  %v1174 = vsel %vm929, %v871, 0
  %v1177 = vsel %vm929, %v872, 0
  %v1180 = vsel %vm929, %v873, 0
  %v1183 = vsel %vm929, %v874, 0
  %v1186 = vsel %vm929, %v875, 0
  %v1189 = vsel %vm929, %v876, 0
  %v1192 = vsel %vm929, %v877, 0
  %v1195 = vsel %vm929, %v878, 0
  %v1198 = vsel %vm929, %v879, 0
  %v1201 = vsel %vm929, %v880, 0
  %v1204 = vsel %vm929, %v881, 0
  %v1207 = vsel %vm929, %v882, 0
  %v1210 = vsel %vm929, %v883, 0
  %v1213 = vsel %vm929, %v884, 0
  %v1216 = vsel %vm929, %v885, 0
  %v1219 = vsel %vm929, %v886, 0
  %v1222 = vsel %vm929, %v887, 0
  %v1225 = vsel %vm929, %v888, 0
  %v1228 = vsel %vm929, %v889, 0
  %v1231 = vsel %vm929, %v890, 0
  %v1234 = vsel %vm929, %v891, 0
  %v1237 = vsel %vm929, %v892, 0
  %v1240 = vsel %vm929, %v893, 0
  %v1243 = vsel %vm929, %v894, 0
  %v1246 = vsel %vm929, %v895, 0
  %v1249 = vsel %vm929, %v896, 0
  %v1252 = vsel %vm929, %v897, 0
  %v1255 = vsel %vm929, %v898, 0
  %v1258 = vsel %vm929, %v899, 0
  %v1261 = vsel %vm929, %v900, 0
  %v1264 = vsel %vm929, %v901, 0
  %v1267 = vsel %vm929, %v902, 0
  %v1270 = vsel %vm929, %v903, 0
  %v1273 = vsel %vm929, %v904, 0
  %v1276 = vsel %vm929, %v905, 0
  %v1279 = vsel %vm929, %v906, 0
  %v1282 = vsel %vm929, %v907, 0
  %v1285 = vsel %vm929, %v908, 0
  %v1288 = vsel %vm929, %v909, 0
  %v1291 = vsel %vm929, %v910, 0
  %v1294 = vsel %vm929, %v911, 0
  %v1297 = vsel %vm929, %v912, 0
  %v1300 = vsel %vm929, %v913, 0
  %v1303 = vsel %vm929, %v914, 0
  %v1306 = vsel %vm929, %v915, 0
  %v1309 = vsel %vm929, %v916, 0
  %v1312 = vsel %vm929, %v917, 0
  %vm1314 = vcmask 1044480
  %vm1315 = vcmask 1045504
  %v1316 = vsel %vm1314, 4294967295, 65535
  %v1317 = vsel %vm1315, %v1316, 0
  %v1319 = vand.u32 %v927, %v1317
  %1321 = vmatprep.subr.bf16.mxu0 0
  %1322 = vmatpush1.bf16.msra.mxu0 0
  %1323 = vmatprep.subr.bf16.mxu0 0
  %1324 = vmatpush1.bf16.msra.mxu0 0
  %1325 = vmatprep.subr.bf16.mxu0 0
  %1326 = vmatpush1.bf16.msra.mxu0 0
  %1327 = vmatprep.subr.bf16.mxu0 0
  %1328 = vmatpush1.bf16.msra.mxu0 0
  %1329 = vmatprep.subr.bf16.mxu0 0
  %1330 = vmatpush1.bf16.msra.mxu0 0
  %1331 = vmatprep.subr.bf16.mxu0 0
  %1332 = vmatpush1.bf16.msra.mxu0 0
  %1333 = vmatprep.subr.bf16.mxu0 0
  %1334 = vmatpush1.bf16.msra.mxu0 %v1319
  %1335 = vmatprep.subr.bf16.mxu0 0
  %1336 = vmatpush1.bf16.msra.mxu0 %v926
  %1337 = vmatprep.subr.bf16.mxu0 0
  %1338 = vmatpush2.bf16.msra.mxu0 0
  %1339 = vmatprep.subr.bf16.mxu0 0
  %1340 = vmatpush2.bf16.msra.mxu0 0
  %1341 = vmatprep.subr.bf16.mxu0 0
  %1342 = vmatpush2.bf16.msra.mxu0 0
  %1343 = vmatprep.subr.bf16.mxu0 0
  %1344 = vmatpush2.bf16.msra.mxu0 0
  %1345 = vmatprep.subr.bf16.mxu0 0
  %1346 = vmatpush2.bf16.msra.mxu0 0
  %1347 = vmatprep.subr.bf16.mxu0 0
  %1348 = vmatpush2.bf16.msra.mxu0 0
  %1349 = vmatprep.subr.bf16.mxu0 0
  %1350 = vmatpush2.bf16.msra.mxu0 0
  %1351 = vmatprep.subr.bf16.mxu0 0
  %1352 = vmatpush2.bf16.msra.mxu0 0
  %1353 = vmatprep.mubr.bf16.mxu0 0
  %1354 = vmatmul.mubr.bf16.gmra.mxu0 %v931
  %v1355 = vpop.f32.mrf.mxu0
  %v1356 = vadd.f32 0.0, %v1355
  %v1357 = vpop.f32.mrf.mxu0
  %v1358 = vpop.f32.mrf.mxu0
  %v1359 = vadd.f32 0.0, %v1358
  %v1360 = vpop.f32.mrf.mxu0
  %1361 = vmatprep.mubr.bf16.mxu0 0
  %1362 = vmatmul.mubr.bf16.gmra.mxu0 %v934
  %v1363 = vpop.f32.mrf.mxu0
  %v1364 = vadd.f32 0.0, %v1363
  %v1365 = vpop.f32.mrf.mxu0
  %v1366 = vpop.f32.mrf.mxu0
  %v1367 = vadd.f32 0.0, %v1366
  %v1368 = vpop.f32.mrf.mxu0
  %1369 = vmatprep.mubr.bf16.mxu0 0
  %1370 = vmatmul.mubr.bf16.gmra.mxu0 %v937
  %v1371 = vpop.f32.mrf.mxu0
  %v1372 = vadd.f32 0.0, %v1371
  %v1373 = vpop.f32.mrf.mxu0
  %v1374 = vpop.f32.mrf.mxu0
  %v1375 = vadd.f32 0.0, %v1374
  %v1376 = vpop.f32.mrf.mxu0
  %1377 = vmatprep.mubr.bf16.mxu0 0
  %1378 = vmatmul.mubr.bf16.gmra.mxu0 %v940
  %v1379 = vpop.f32.mrf.mxu0
  %v1380 = vadd.f32 0.0, %v1379
  %v1381 = vpop.f32.mrf.mxu0
  %v1382 = vpop.f32.mrf.mxu0
  %v1383 = vadd.f32 0.0, %v1382
  %v1384 = vpop.f32.mrf.mxu0
  %1385 = vmatprep.mubr.bf16.mxu0 0
  %1386 = vmatmul.mubr.bf16.gmra.mxu0 %v943
  %v1387 = vpop.f32.mrf.mxu0
  %v1388 = vadd.f32 0.0, %v1387
  %v1389 = vpop.f32.mrf.mxu0
  %v1390 = vpop.f32.mrf.mxu0
  %v1391 = vadd.f32 0.0, %v1390
  %v1392 = vpop.f32.mrf.mxu0
  %1393 = vmatprep.mubr.bf16.mxu0 0
  %1394 = vmatmul.mubr.bf16.gmra.mxu0 %v946
  %v1395 = vpop.f32.mrf.mxu0
  %v1396 = vadd.f32 0.0, %v1395
  %v1397 = vpop.f32.mrf.mxu0
  %v1398 = vpop.f32.mrf.mxu0
  %v1399 = vadd.f32 0.0, %v1398
  %v1400 = vpop.f32.mrf.mxu0
  %1401 = vmatprep.mubr.bf16.mxu0 0
  %1402 = vmatmul.mubr.bf16.gmra.mxu0 %v949
  %v1403 = vpop.f32.mrf.mxu0
  %v1404 = vadd.f32 0.0, %v1403
  %v1405 = vpop.f32.mrf.mxu0
  %v1406 = vpop.f32.mrf.mxu0
  %v1407 = vadd.f32 0.0, %v1406
  %v1408 = vpop.f32.mrf.mxu0
  %1409 = vmatprep.mubr.bf16.mxu0 0
  %1410 = vmatmul.mubr.bf16.gmra.mxu0 %v952
  %v1411 = vpop.f32.mrf.mxu0
  %v1412 = vadd.f32 0.0, %v1411
  %v1413 = vpop.f32.mrf.mxu0
  %v1414 = vpop.f32.mrf.mxu0
  %v1415 = vadd.f32 0.0, %v1414
  %v1416 = vpop.f32.mrf.mxu0
  %1417 = vmatprep.mubr.bf16.mxu0 0
  %1418 = vmatmul.mubr.bf16.gmra.mxu0 %v955
  %v1419 = vpop.f32.mrf.mxu0
  %v1420 = vadd.f32 0.0, %v1419
  %v1421 = vpop.f32.mrf.mxu0
  %v1422 = vpop.f32.mrf.mxu0
  %v1423 = vadd.f32 0.0, %v1422
  %v1424 = vpop.f32.mrf.mxu0
  %1425 = vmatprep.mubr.bf16.mxu0 0
  %1426 = vmatmul.mubr.bf16.gmra.mxu0 %v958
  %v1427 = vpop.f32.mrf.mxu0
  %v1428 = vadd.f32 0.0, %v1427
  %v1429 = vpop.f32.mrf.mxu0
  %v1430 = vpop.f32.mrf.mxu0
  %v1431 = vadd.f32 0.0, %v1430
  %v1432 = vpop.f32.mrf.mxu0
  %1433 = vmatprep.mubr.bf16.mxu0 0
  %1434 = vmatmul.mubr.bf16.gmra.mxu0 %v961
  %v1435 = vpop.f32.mrf.mxu0
  %v1436 = vadd.f32 0.0, %v1435
  %v1437 = vpop.f32.mrf.mxu0
  %v1438 = vpop.f32.mrf.mxu0
  %v1439 = vadd.f32 0.0, %v1438
  %v1440 = vpop.f32.mrf.mxu0
  %1441 = vmatprep.mubr.bf16.mxu0 0
  %1442 = vmatmul.mubr.bf16.gmra.mxu0 %v964
  %v1443 = vpop.f32.mrf.mxu0
  %v1444 = vadd.f32 0.0, %v1443
  %v1445 = vpop.f32.mrf.mxu0
  %v1446 = vpop.f32.mrf.mxu0
  %v1447 = vadd.f32 0.0, %v1446
  %v1448 = vpop.f32.mrf.mxu0
  %1449 = vmatprep.mubr.bf16.mxu0 0
  %1450 = vmatmul.mubr.bf16.gmra.mxu0 %v967
  %v1451 = vpop.f32.mrf.mxu0
  %v1452 = vadd.f32 0.0, %v1451
  %v1453 = vpop.f32.mrf.mxu0
  %v1454 = vpop.f32.mrf.mxu0
  %v1455 = vadd.f32 0.0, %v1454
  %v1456 = vpop.f32.mrf.mxu0
  %1457 = vmatprep.mubr.bf16.mxu0 0
  %1458 = vmatmul.mubr.bf16.gmra.mxu0 %v970
  %v1459 = vpop.f32.mrf.mxu0
  %v1460 = vadd.f32 0.0, %v1459
  %v1461 = vpop.f32.mrf.mxu0
  %v1462 = vpop.f32.mrf.mxu0
  %v1463 = vadd.f32 0.0, %v1462
  %v1464 = vpop.f32.mrf.mxu0
  %1465 = vmatprep.mubr.bf16.mxu0 0
  %1466 = vmatmul.mubr.bf16.gmra.mxu0 %v973
  %v1467 = vpop.f32.mrf.mxu0
  %v1468 = vadd.f32 0.0, %v1467
  %v1469 = vpop.f32.mrf.mxu0
  %v1470 = vpop.f32.mrf.mxu0
  %v1471 = vadd.f32 0.0, %v1470
  %v1472 = vpop.f32.mrf.mxu0
  %1473 = vmatprep.mubr.bf16.mxu0 0
  %1474 = vmatmul.mubr.bf16.gmra.mxu0 %v976
  %v1475 = vpop.f32.mrf.mxu0
  %v1476 = vadd.f32 0.0, %v1475
  %v1477 = vpop.f32.mrf.mxu0
  %v1478 = vpop.f32.mrf.mxu0
  %v1479 = vadd.f32 0.0, %v1478
  %v1480 = vpop.f32.mrf.mxu0
  %1481 = vmatprep.mubr.bf16.mxu0 0
  %1482 = vmatmul.mubr.bf16.gmra.mxu0 %v979
  %v1483 = vpop.f32.mrf.mxu0
  %v1484 = vadd.f32 0.0, %v1483
  %v1485 = vpop.f32.mrf.mxu0
  %v1486 = vpop.f32.mrf.mxu0
  %v1487 = vadd.f32 0.0, %v1486
  %v1488 = vpop.f32.mrf.mxu0
  %1489 = vmatprep.mubr.bf16.mxu0 0
  %1490 = vmatmul.mubr.bf16.gmra.mxu0 %v982
  %v1491 = vpop.f32.mrf.mxu0
  %v1492 = vadd.f32 0.0, %v1491
  %v1493 = vpop.f32.mrf.mxu0
  %v1494 = vpop.f32.mrf.mxu0
  %v1495 = vadd.f32 0.0, %v1494
  %v1496 = vpop.f32.mrf.mxu0
  %1497 = vmatprep.mubr.bf16.mxu0 0
  %1498 = vmatmul.mubr.bf16.gmra.mxu0 %v985
  %v1499 = vpop.f32.mrf.mxu0
  %v1500 = vadd.f32 0.0, %v1499
  %v1501 = vpop.f32.mrf.mxu0
  %v1502 = vpop.f32.mrf.mxu0
  %v1503 = vadd.f32 0.0, %v1502
  %v1504 = vpop.f32.mrf.mxu0
  %1505 = vmatprep.mubr.bf16.mxu0 0
  %1506 = vmatmul.mubr.bf16.gmra.mxu0 %v988
  %v1507 = vpop.f32.mrf.mxu0
  %v1508 = vadd.f32 0.0, %v1507
  %v1509 = vpop.f32.mrf.mxu0
  %v1510 = vpop.f32.mrf.mxu0
  %v1511 = vadd.f32 0.0, %v1510
  %v1512 = vpop.f32.mrf.mxu0
  %1513 = vmatprep.mubr.bf16.mxu0 0
  %1514 = vmatmul.mubr.bf16.gmra.mxu0 %v991
  %v1515 = vpop.f32.mrf.mxu0
  %v1516 = vadd.f32 0.0, %v1515
  %v1517 = vpop.f32.mrf.mxu0
  %v1518 = vpop.f32.mrf.mxu0
  %v1519 = vadd.f32 0.0, %v1518
  %v1520 = vpop.f32.mrf.mxu0
  %1521 = vmatprep.mubr.bf16.mxu0 0
  %1522 = vmatmul.mubr.bf16.gmra.mxu0 %v994
  %v1523 = vpop.f32.mrf.mxu0
  %v1524 = vadd.f32 0.0, %v1523
  %v1525 = vpop.f32.mrf.mxu0
  %v1526 = vpop.f32.mrf.mxu0
  %v1527 = vadd.f32 0.0, %v1526
  %v1528 = vpop.f32.mrf.mxu0
  %1529 = vmatprep.mubr.bf16.mxu0 0
  %1530 = vmatmul.mubr.bf16.gmra.mxu0 %v997
  %v1531 = vpop.f32.mrf.mxu0
  %v1532 = vadd.f32 0.0, %v1531
  %v1533 = vpop.f32.mrf.mxu0
  %v1534 = vpop.f32.mrf.mxu0
  %v1535 = vadd.f32 0.0, %v1534
  %v1536 = vpop.f32.mrf.mxu0
  %1537 = vmatprep.mubr.bf16.mxu0 0
  %1538 = vmatmul.mubr.bf16.gmra.mxu0 %v1000
  %v1539 = vpop.f32.mrf.mxu0
  %v1540 = vadd.f32 0.0, %v1539
  %v1541 = vpop.f32.mrf.mxu0
  %v1542 = vpop.f32.mrf.mxu0
  %v1543 = vadd.f32 0.0, %v1542
  %v1544 = vpop.f32.mrf.mxu0
  %1545 = vmatprep.mubr.bf16.mxu0 0
  %1546 = vmatmul.mubr.bf16.gmra.mxu0 %v1003
  %v1547 = vpop.f32.mrf.mxu0
  %v1548 = vadd.f32 0.0, %v1547
  %v1549 = vpop.f32.mrf.mxu0
  %v1550 = vpop.f32.mrf.mxu0
  %v1551 = vadd.f32 0.0, %v1550
  %v1552 = vpop.f32.mrf.mxu0
  %1553 = vmatprep.mubr.bf16.mxu0 0
  %1554 = vmatmul.mubr.bf16.gmra.mxu0 %v1006
  %v1555 = vpop.f32.mrf.mxu0
  %v1556 = vadd.f32 0.0, %v1555
  %v1557 = vpop.f32.mrf.mxu0
  %v1558 = vpop.f32.mrf.mxu0
  %v1559 = vadd.f32 0.0, %v1558
  %v1560 = vpop.f32.mrf.mxu0
  %1561 = vmatprep.mubr.bf16.mxu0 0
  %1562 = vmatmul.mubr.bf16.gmra.mxu0 %v1009
  %v1563 = vpop.f32.mrf.mxu0
  %v1564 = vadd.f32 0.0, %v1563
  %v1565 = vpop.f32.mrf.mxu0
  %v1566 = vpop.f32.mrf.mxu0
  %v1567 = vadd.f32 0.0, %v1566
  %v1568 = vpop.f32.mrf.mxu0
  %1569 = vmatprep.mubr.bf16.mxu0 0
  %1570 = vmatmul.mubr.bf16.gmra.mxu0 %v1012
  %v1571 = vpop.f32.mrf.mxu0
  %v1572 = vadd.f32 0.0, %v1571
  %v1573 = vpop.f32.mrf.mxu0
  %v1574 = vpop.f32.mrf.mxu0
  %v1575 = vadd.f32 0.0, %v1574
  %v1576 = vpop.f32.mrf.mxu0
  %1577 = vmatprep.mubr.bf16.mxu0 0
  %1578 = vmatmul.mubr.bf16.gmra.mxu0 %v1015
  %v1579 = vpop.f32.mrf.mxu0
  %v1580 = vadd.f32 0.0, %v1579
  %v1581 = vpop.f32.mrf.mxu0
  %v1582 = vpop.f32.mrf.mxu0
  %v1583 = vadd.f32 0.0, %v1582
  %v1584 = vpop.f32.mrf.mxu0
  %1585 = vmatprep.mubr.bf16.mxu0 0
  %1586 = vmatmul.mubr.bf16.gmra.mxu0 %v1018
  %v1587 = vpop.f32.mrf.mxu0
  %v1588 = vadd.f32 0.0, %v1587
  %v1589 = vpop.f32.mrf.mxu0
  %v1590 = vpop.f32.mrf.mxu0
  %v1591 = vadd.f32 0.0, %v1590
  %v1592 = vpop.f32.mrf.mxu0
  %1593 = vmatprep.mubr.bf16.mxu0 0
  %1594 = vmatmul.mubr.bf16.gmra.mxu0 %v1021
  %v1595 = vpop.f32.mrf.mxu0
  %v1596 = vadd.f32 0.0, %v1595
  %v1597 = vpop.f32.mrf.mxu0
  %v1598 = vpop.f32.mrf.mxu0
  %v1599 = vadd.f32 0.0, %v1598
  %v1600 = vpop.f32.mrf.mxu0
  %1601 = vmatprep.mubr.bf16.mxu0 0
  %1602 = vmatmul.mubr.bf16.gmra.mxu0 %v1024
  %v1603 = vpop.f32.mrf.mxu0
  %v1604 = vadd.f32 0.0, %v1603
  %v1605 = vpop.f32.mrf.mxu0
  %v1606 = vpop.f32.mrf.mxu0
  %v1607 = vadd.f32 0.0, %v1606
  %v1608 = vpop.f32.mrf.mxu0
  %1609 = vmatprep.mubr.bf16.mxu0 0
  %1610 = vmatmul.mubr.bf16.gmra.mxu0 %v1027
  %v1611 = vpop.f32.mrf.mxu0
  %v1612 = vadd.f32 0.0, %v1611
  %v1613 = vpop.f32.mrf.mxu0
  %v1614 = vpop.f32.mrf.mxu0
  %v1615 = vadd.f32 0.0, %v1614
  %v1616 = vpop.f32.mrf.mxu0
  %1617 = vmatprep.mubr.bf16.mxu0 0
  %1618 = vmatmul.mubr.bf16.gmra.mxu0 %v1030
  %v1619 = vpop.f32.mrf.mxu0
  %v1620 = vadd.f32 0.0, %v1619
  %v1621 = vpop.f32.mrf.mxu0
  %v1622 = vpop.f32.mrf.mxu0
  %v1623 = vadd.f32 0.0, %v1622
  %v1624 = vpop.f32.mrf.mxu0
  %1625 = vmatprep.mubr.bf16.mxu0 0
  %1626 = vmatmul.mubr.bf16.gmra.mxu0 %v1033
  %v1627 = vpop.f32.mrf.mxu0
  %v1628 = vadd.f32 0.0, %v1627
  %v1629 = vpop.f32.mrf.mxu0
  %v1630 = vpop.f32.mrf.mxu0
  %v1631 = vadd.f32 0.0, %v1630
  %v1632 = vpop.f32.mrf.mxu0
  %1633 = vmatprep.mubr.bf16.mxu0 0
  %1634 = vmatmul.mubr.bf16.gmra.mxu0 %v1036
  %v1635 = vpop.f32.mrf.mxu0
  %v1636 = vadd.f32 0.0, %v1635
  %v1637 = vpop.f32.mrf.mxu0
  %v1638 = vpop.f32.mrf.mxu0
  %v1639 = vadd.f32 0.0, %v1638
  %v1640 = vpop.f32.mrf.mxu0
  %1641 = vmatprep.mubr.bf16.mxu0 0
  %1642 = vmatmul.mubr.bf16.gmra.mxu0 %v1039
  %v1643 = vpop.f32.mrf.mxu0
  %v1644 = vadd.f32 0.0, %v1643
  %v1645 = vpop.f32.mrf.mxu0
  %v1646 = vpop.f32.mrf.mxu0
  %v1647 = vadd.f32 0.0, %v1646
  %v1648 = vpop.f32.mrf.mxu0
  %1649 = vmatprep.mubr.bf16.mxu0 0
  %1650 = vmatmul.mubr.bf16.gmra.mxu0 %v1042
  %v1651 = vpop.f32.mrf.mxu0
  %v1652 = vadd.f32 0.0, %v1651
  %v1653 = vpop.f32.mrf.mxu0
  %v1654 = vpop.f32.mrf.mxu0
  %v1655 = vadd.f32 0.0, %v1654
  %v1656 = vpop.f32.mrf.mxu0
  %1657 = vmatprep.mubr.bf16.mxu0 0
  %1658 = vmatmul.mubr.bf16.gmra.mxu0 %v1045
  %v1659 = vpop.f32.mrf.mxu0
  %v1660 = vadd.f32 0.0, %v1659
  %v1661 = vpop.f32.mrf.mxu0
  %v1662 = vpop.f32.mrf.mxu0
  %v1663 = vadd.f32 0.0, %v1662
  %v1664 = vpop.f32.mrf.mxu0
  %1665 = vmatprep.mubr.bf16.mxu0 0
  %1666 = vmatmul.mubr.bf16.gmra.mxu0 %v1048
  %v1667 = vpop.f32.mrf.mxu0
  %v1668 = vadd.f32 0.0, %v1667
  %v1669 = vpop.f32.mrf.mxu0
  %v1670 = vpop.f32.mrf.mxu0
  %v1671 = vadd.f32 0.0, %v1670
  %v1672 = vpop.f32.mrf.mxu0
  %1673 = vmatprep.mubr.bf16.mxu0 0
  %1674 = vmatmul.mubr.bf16.gmra.mxu0 %v1051
  %v1675 = vpop.f32.mrf.mxu0
  %v1676 = vadd.f32 0.0, %v1675
  %v1677 = vpop.f32.mrf.mxu0
  %v1678 = vpop.f32.mrf.mxu0
  %v1679 = vadd.f32 0.0, %v1678
  %v1680 = vpop.f32.mrf.mxu0
  %1681 = vmatprep.mubr.bf16.mxu0 0
  %1682 = vmatmul.mubr.bf16.gmra.mxu0 %v1054
  %v1683 = vpop.f32.mrf.mxu0
  %v1684 = vadd.f32 0.0, %v1683
  %v1685 = vpop.f32.mrf.mxu0
  %v1686 = vpop.f32.mrf.mxu0
  %v1687 = vadd.f32 0.0, %v1686
  %v1688 = vpop.f32.mrf.mxu0
  %1689 = vmatprep.mubr.bf16.mxu0 0
  %1690 = vmatmul.mubr.bf16.gmra.mxu0 %v1057
  %v1691 = vpop.f32.mrf.mxu0
  %v1692 = vadd.f32 0.0, %v1691
  %v1693 = vpop.f32.mrf.mxu0
  %v1694 = vpop.f32.mrf.mxu0
  %v1695 = vadd.f32 0.0, %v1694
  %v1696 = vpop.f32.mrf.mxu0
  %1697 = vmatprep.mubr.bf16.mxu0 0
  %1698 = vmatmul.mubr.bf16.gmra.mxu0 %v1060
  %v1699 = vpop.f32.mrf.mxu0
  %v1700 = vadd.f32 0.0, %v1699
  %v1701 = vpop.f32.mrf.mxu0
  %v1702 = vpop.f32.mrf.mxu0
  %v1703 = vadd.f32 0.0, %v1702
  %v1704 = vpop.f32.mrf.mxu0
  %1705 = vmatprep.mubr.bf16.mxu0 0
  %1706 = vmatmul.mubr.bf16.gmra.mxu0 %v1063
  %v1707 = vpop.f32.mrf.mxu0
  %v1708 = vadd.f32 0.0, %v1707
  %v1709 = vpop.f32.mrf.mxu0
  %v1710 = vpop.f32.mrf.mxu0
  %v1711 = vadd.f32 0.0, %v1710
  %v1712 = vpop.f32.mrf.mxu0
  %1713 = vmatprep.mubr.bf16.mxu0 0
  %1714 = vmatmul.mubr.bf16.gmra.mxu0 %v1066
  %v1715 = vpop.f32.mrf.mxu0
  %v1716 = vadd.f32 0.0, %v1715
  %v1717 = vpop.f32.mrf.mxu0
  %v1718 = vpop.f32.mrf.mxu0
  %v1719 = vadd.f32 0.0, %v1718
  %v1720 = vpop.f32.mrf.mxu0
  %1721 = vmatprep.mubr.bf16.mxu0 0
  %1722 = vmatmul.mubr.bf16.gmra.mxu0 %v1069
  %v1723 = vpop.f32.mrf.mxu0
  %v1724 = vadd.f32 0.0, %v1723
  %v1725 = vpop.f32.mrf.mxu0
  %v1726 = vpop.f32.mrf.mxu0
  %v1727 = vadd.f32 0.0, %v1726
  %v1728 = vpop.f32.mrf.mxu0
  %1729 = vmatprep.mubr.bf16.mxu0 0
  %1730 = vmatmul.mubr.bf16.gmra.mxu0 %v1072
  %v1731 = vpop.f32.mrf.mxu0
  %v1732 = vadd.f32 0.0, %v1731
  %v1733 = vpop.f32.mrf.mxu0
  %v1734 = vpop.f32.mrf.mxu0
  %v1735 = vadd.f32 0.0, %v1734
  %v1736 = vpop.f32.mrf.mxu0
  %1737 = vmatprep.mubr.bf16.mxu0 0
  %1738 = vmatmul.mubr.bf16.gmra.mxu0 %v1075
  %v1739 = vpop.f32.mrf.mxu0
  %v1740 = vadd.f32 0.0, %v1739
  %v1741 = vpop.f32.mrf.mxu0
  %v1742 = vpop.f32.mrf.mxu0
  %v1743 = vadd.f32 0.0, %v1742
  %v1744 = vpop.f32.mrf.mxu0
  %1745 = vmatprep.mubr.bf16.mxu0 0
  %1746 = vmatmul.mubr.bf16.gmra.mxu0 %v1078
  %v1747 = vpop.f32.mrf.mxu0
  %v1748 = vadd.f32 0.0, %v1747
  %v1749 = vpop.f32.mrf.mxu0
  %v1750 = vpop.f32.mrf.mxu0
  %v1751 = vadd.f32 0.0, %v1750
  %v1752 = vpop.f32.mrf.mxu0
  %1753 = vmatprep.mubr.bf16.mxu0 0
  %1754 = vmatmul.mubr.bf16.gmra.mxu0 %v1081
  %v1755 = vpop.f32.mrf.mxu0
  %v1756 = vadd.f32 0.0, %v1755
  %v1757 = vpop.f32.mrf.mxu0
  %v1758 = vpop.f32.mrf.mxu0
  %v1759 = vadd.f32 0.0, %v1758
  %v1760 = vpop.f32.mrf.mxu0
  %1761 = vmatprep.mubr.bf16.mxu0 0
  %1762 = vmatmul.mubr.bf16.gmra.mxu0 %v1084
  %v1763 = vpop.f32.mrf.mxu0
  %v1764 = vadd.f32 0.0, %v1763
  %v1765 = vpop.f32.mrf.mxu0
  %v1766 = vpop.f32.mrf.mxu0
  %v1767 = vadd.f32 0.0, %v1766
  %v1768 = vpop.f32.mrf.mxu0
  %1769 = vmatprep.mubr.bf16.mxu0 0
  %1770 = vmatmul.mubr.bf16.gmra.mxu0 %v1087
  %v1771 = vpop.f32.mrf.mxu0
  %v1772 = vadd.f32 0.0, %v1771
  %v1773 = vpop.f32.mrf.mxu0
  %v1774 = vpop.f32.mrf.mxu0
  %v1775 = vadd.f32 0.0, %v1774
  %v1776 = vpop.f32.mrf.mxu0
  %1777 = vmatprep.mubr.bf16.mxu0 0
  %1778 = vmatmul.mubr.bf16.gmra.mxu0 %v1090
  %v1779 = vpop.f32.mrf.mxu0
  %v1780 = vadd.f32 0.0, %v1779
  %v1781 = vpop.f32.mrf.mxu0
  %v1782 = vpop.f32.mrf.mxu0
  %v1783 = vadd.f32 0.0, %v1782
  %v1784 = vpop.f32.mrf.mxu0
  %1785 = vmatprep.mubr.bf16.mxu0 0
  %1786 = vmatmul.mubr.bf16.gmra.mxu0 %v1093
  %v1787 = vpop.f32.mrf.mxu0
  %v1788 = vadd.f32 0.0, %v1787
  %v1789 = vpop.f32.mrf.mxu0
  %v1790 = vpop.f32.mrf.mxu0
  %v1791 = vadd.f32 0.0, %v1790
  %v1792 = vpop.f32.mrf.mxu0
  %1793 = vmatprep.mubr.bf16.mxu0 0
  %1794 = vmatmul.mubr.bf16.gmra.mxu0 %v1096
  %v1795 = vpop.f32.mrf.mxu0
  %v1796 = vadd.f32 0.0, %v1795
  %v1797 = vpop.f32.mrf.mxu0
  %v1798 = vpop.f32.mrf.mxu0
  %v1799 = vadd.f32 0.0, %v1798
  %v1800 = vpop.f32.mrf.mxu0
  %1801 = vmatprep.mubr.bf16.mxu0 0
  %1802 = vmatmul.mubr.bf16.gmra.mxu0 %v1099
  %v1803 = vpop.f32.mrf.mxu0
  %v1804 = vadd.f32 0.0, %v1803
  %v1805 = vpop.f32.mrf.mxu0
  %v1806 = vpop.f32.mrf.mxu0
  %v1807 = vadd.f32 0.0, %v1806
  %v1808 = vpop.f32.mrf.mxu0
  %1809 = vmatprep.mubr.bf16.mxu0 0
  %1810 = vmatmul.mubr.bf16.gmra.mxu0 %v1102
  %v1811 = vpop.f32.mrf.mxu0
  %v1812 = vadd.f32 0.0, %v1811
  %v1813 = vpop.f32.mrf.mxu0
  %v1814 = vpop.f32.mrf.mxu0
  %v1815 = vadd.f32 0.0, %v1814
  %v1816 = vpop.f32.mrf.mxu0
  %1817 = vmatprep.mubr.bf16.mxu0 0
  %1818 = vmatmul.mubr.bf16.gmra.mxu0 %v1105
  %v1819 = vpop.f32.mrf.mxu0
  %v1820 = vadd.f32 0.0, %v1819
  %v1821 = vpop.f32.mrf.mxu0
  %v1822 = vpop.f32.mrf.mxu0
  %v1823 = vadd.f32 0.0, %v1822
  %v1824 = vpop.f32.mrf.mxu0
  %1825 = vmatprep.mubr.bf16.mxu0 0
  %1826 = vmatmul.mubr.bf16.gmra.mxu0 %v1108
  %v1827 = vpop.f32.mrf.mxu0
  %v1828 = vadd.f32 0.0, %v1827
  %v1829 = vpop.f32.mrf.mxu0
  %v1830 = vpop.f32.mrf.mxu0
  %v1831 = vadd.f32 0.0, %v1830
  %v1832 = vpop.f32.mrf.mxu0
  %1833 = vmatprep.mubr.bf16.mxu0 0
  %1834 = vmatmul.mubr.bf16.gmra.mxu0 %v1111
  %v1835 = vpop.f32.mrf.mxu0
  %v1836 = vadd.f32 0.0, %v1835
  %v1837 = vpop.f32.mrf.mxu0
  %v1838 = vpop.f32.mrf.mxu0
  %v1839 = vadd.f32 0.0, %v1838
  %v1840 = vpop.f32.mrf.mxu0
  %1841 = vmatprep.mubr.bf16.mxu0 0
  %1842 = vmatmul.mubr.bf16.gmra.mxu0 %v1114
  %v1843 = vpop.f32.mrf.mxu0
  %v1844 = vadd.f32 0.0, %v1843
  %v1845 = vpop.f32.mrf.mxu0
  %v1846 = vpop.f32.mrf.mxu0
  %v1847 = vadd.f32 0.0, %v1846
  %v1848 = vpop.f32.mrf.mxu0
  %1849 = vmatprep.mubr.bf16.mxu0 0
  %1850 = vmatmul.mubr.bf16.gmra.mxu0 %v1117
  %v1851 = vpop.f32.mrf.mxu0
  %v1852 = vadd.f32 0.0, %v1851
  %v1853 = vpop.f32.mrf.mxu0
  %v1854 = vpop.f32.mrf.mxu0
  %v1855 = vadd.f32 0.0, %v1854
  %v1856 = vpop.f32.mrf.mxu0
  %1857 = vmatprep.mubr.bf16.mxu0 0
  %1858 = vmatmul.mubr.bf16.gmra.mxu0 %v1120
  %v1859 = vpop.f32.mrf.mxu0
  %v1860 = vadd.f32 0.0, %v1859
  %v1861 = vpop.f32.mrf.mxu0
  %v1862 = vpop.f32.mrf.mxu0
  %v1863 = vadd.f32 0.0, %v1862
  %v1864 = vpop.f32.mrf.mxu0
  %1865 = vmatprep.mubr.bf16.mxu0 0
  %1866 = vmatmul.mubr.bf16.gmra.mxu0 %v1123
  %v1867 = vpop.f32.mrf.mxu0
  %v1868 = vadd.f32 0.0, %v1867
  %v1869 = vpop.f32.mrf.mxu0
  %v1870 = vpop.f32.mrf.mxu0
  %v1871 = vadd.f32 0.0, %v1870
  %v1872 = vpop.f32.mrf.mxu0
  %1873 = vmatprep.mubr.bf16.mxu0 0
  %1874 = vmatmul.mubr.bf16.gmra.mxu0 %v1126
  %v1875 = vpop.f32.mrf.mxu0
  %v1876 = vadd.f32 0.0, %v1875
  %v1877 = vpop.f32.mrf.mxu0
  %v1878 = vpop.f32.mrf.mxu0
  %v1879 = vadd.f32 0.0, %v1878
  %v1880 = vpop.f32.mrf.mxu0
  %1881 = vmatprep.mubr.bf16.mxu0 0
  %1882 = vmatmul.mubr.bf16.gmra.mxu0 %v1129
  %v1883 = vpop.f32.mrf.mxu0
  %v1884 = vadd.f32 0.0, %v1883
  %v1885 = vpop.f32.mrf.mxu0
  %v1886 = vpop.f32.mrf.mxu0
  %v1887 = vadd.f32 0.0, %v1886
  %v1888 = vpop.f32.mrf.mxu0
  %1889 = vmatprep.mubr.bf16.mxu0 0
  %1890 = vmatmul.mubr.bf16.gmra.mxu0 %v1132
  %v1891 = vpop.f32.mrf.mxu0
  %v1892 = vadd.f32 0.0, %v1891
  %v1893 = vpop.f32.mrf.mxu0
  %v1894 = vpop.f32.mrf.mxu0
  %v1895 = vadd.f32 0.0, %v1894
  %v1896 = vpop.f32.mrf.mxu0
  %1897 = vmatprep.mubr.bf16.mxu0 0
  %1898 = vmatmul.mubr.bf16.gmra.mxu0 %v1135
  %v1899 = vpop.f32.mrf.mxu0
  %v1900 = vadd.f32 0.0, %v1899
  %v1901 = vpop.f32.mrf.mxu0
  %v1902 = vpop.f32.mrf.mxu0
  %v1903 = vadd.f32 0.0, %v1902
  %v1904 = vpop.f32.mrf.mxu0
  %1905 = vmatprep.mubr.bf16.mxu0 0
  %1906 = vmatmul.mubr.bf16.gmra.mxu0 %v1138
  %v1907 = vpop.f32.mrf.mxu0
  %v1908 = vadd.f32 0.0, %v1907
  %v1909 = vpop.f32.mrf.mxu0
  %v1910 = vpop.f32.mrf.mxu0
  %v1911 = vadd.f32 0.0, %v1910
  %v1912 = vpop.f32.mrf.mxu0
  %1913 = vmatprep.mubr.bf16.mxu0 0
  %1914 = vmatmul.mubr.bf16.gmra.mxu0 %v1141
  %v1915 = vpop.f32.mrf.mxu0
  %v1916 = vadd.f32 0.0, %v1915
  %v1917 = vpop.f32.mrf.mxu0
  %v1918 = vpop.f32.mrf.mxu0
  %v1919 = vadd.f32 0.0, %v1918
  %v1920 = vpop.f32.mrf.mxu0
  %1921 = vmatprep.mubr.bf16.mxu0 0
  %1922 = vmatmul.mubr.bf16.gmra.mxu0 %v1144
  %v1923 = vpop.f32.mrf.mxu0
  %v1924 = vadd.f32 0.0, %v1923
  %v1925 = vpop.f32.mrf.mxu0
  %v1926 = vpop.f32.mrf.mxu0
  %v1927 = vadd.f32 0.0, %v1926
  %v1928 = vpop.f32.mrf.mxu0
  %1929 = vmatprep.mubr.bf16.mxu0 0
  %1930 = vmatmul.mubr.bf16.gmra.mxu0 %v1147
  %v1931 = vpop.f32.mrf.mxu0
  %v1932 = vadd.f32 0.0, %v1931
  %v1933 = vpop.f32.mrf.mxu0
  %v1934 = vpop.f32.mrf.mxu0
  %v1935 = vadd.f32 0.0, %v1934
  %v1936 = vpop.f32.mrf.mxu0
  %1937 = vmatprep.mubr.bf16.mxu0 0
  %1938 = vmatmul.mubr.bf16.gmra.mxu0 %v1150
  %v1939 = vpop.f32.mrf.mxu0
  %v1940 = vadd.f32 0.0, %v1939
  %v1941 = vpop.f32.mrf.mxu0
  %v1942 = vpop.f32.mrf.mxu0
  %v1943 = vadd.f32 0.0, %v1942
  %v1944 = vpop.f32.mrf.mxu0
  %1945 = vmatprep.mubr.bf16.mxu0 0
  %1946 = vmatmul.mubr.bf16.gmra.mxu0 %v1153
  %v1947 = vpop.f32.mrf.mxu0
  %v1948 = vadd.f32 0.0, %v1947
  %v1949 = vpop.f32.mrf.mxu0
  %v1950 = vpop.f32.mrf.mxu0
  %v1951 = vadd.f32 0.0, %v1950
  %v1952 = vpop.f32.mrf.mxu0
  %1953 = vmatprep.mubr.bf16.mxu0 0
  %1954 = vmatmul.mubr.bf16.gmra.mxu0 %v1156
  %v1955 = vpop.f32.mrf.mxu0
  %v1956 = vadd.f32 0.0, %v1955
  %v1957 = vpop.f32.mrf.mxu0
  %v1958 = vpop.f32.mrf.mxu0
  %v1959 = vadd.f32 0.0, %v1958
  %v1960 = vpop.f32.mrf.mxu0
  %1961 = vmatprep.mubr.bf16.mxu0 0
  %1962 = vmatmul.mubr.bf16.gmra.mxu0 %v1159
  %v1963 = vpop.f32.mrf.mxu0
  %v1964 = vadd.f32 0.0, %v1963
  %v1965 = vpop.f32.mrf.mxu0
  %v1966 = vpop.f32.mrf.mxu0
  %v1967 = vadd.f32 0.0, %v1966
  %v1968 = vpop.f32.mrf.mxu0
  %1969 = vmatprep.mubr.bf16.mxu0 0
  %1970 = vmatmul.mubr.bf16.gmra.mxu0 %v1162
  %v1971 = vpop.f32.mrf.mxu0
  %v1972 = vadd.f32 0.0, %v1971
  %v1973 = vpop.f32.mrf.mxu0
  %v1974 = vpop.f32.mrf.mxu0
  %v1975 = vadd.f32 0.0, %v1974
  %v1976 = vpop.f32.mrf.mxu0
  %1977 = vmatprep.mubr.bf16.mxu0 0
  %1978 = vmatmul.mubr.bf16.gmra.mxu0 %v1165
  %v1979 = vpop.f32.mrf.mxu0
  %v1980 = vadd.f32 0.0, %v1979
  %v1981 = vpop.f32.mrf.mxu0
  %v1982 = vpop.f32.mrf.mxu0
  %v1983 = vadd.f32 0.0, %v1982
  %v1984 = vpop.f32.mrf.mxu0
  %1985 = vmatprep.mubr.bf16.mxu0 0
  %1986 = vmatmul.mubr.bf16.gmra.mxu0 %v1168
  %v1987 = vpop.f32.mrf.mxu0
  %v1988 = vadd.f32 0.0, %v1987
  %v1989 = vpop.f32.mrf.mxu0
  %v1990 = vpop.f32.mrf.mxu0
  %v1991 = vadd.f32 0.0, %v1990
  %v1992 = vpop.f32.mrf.mxu0
  %1993 = vmatprep.mubr.bf16.mxu0 0
  %1994 = vmatmul.mubr.bf16.gmra.mxu0 %v1171
  %v1995 = vpop.f32.mrf.mxu0
  %v1996 = vadd.f32 0.0, %v1995
  %v1997 = vpop.f32.mrf.mxu0
  %v1998 = vpop.f32.mrf.mxu0
  %v1999 = vadd.f32 0.0, %v1998
  %v2000 = vpop.f32.mrf.mxu0
  %2001 = vmatprep.mubr.bf16.mxu0 0
  %2002 = vmatmul.mubr.bf16.gmra.mxu0 %v1174
  %v2003 = vpop.f32.mrf.mxu0
  %v2004 = vadd.f32 0.0, %v2003
  %v2005 = vpop.f32.mrf.mxu0
  %v2006 = vpop.f32.mrf.mxu0
  %v2007 = vadd.f32 0.0, %v2006
  %v2008 = vpop.f32.mrf.mxu0
  %2009 = vmatprep.mubr.bf16.mxu0 0
  %2010 = vmatmul.mubr.bf16.gmra.mxu0 %v1177
  %v2011 = vpop.f32.mrf.mxu0
  %v2012 = vadd.f32 0.0, %v2011
  %v2013 = vpop.f32.mrf.mxu0
  %v2014 = vpop.f32.mrf.mxu0
  %v2015 = vadd.f32 0.0, %v2014
  %v2016 = vpop.f32.mrf.mxu0
  %2017 = vmatprep.mubr.bf16.mxu0 0
  %2018 = vmatmul.mubr.bf16.gmra.mxu0 %v1180
  %v2019 = vpop.f32.mrf.mxu0
  %v2020 = vadd.f32 0.0, %v2019
  %v2021 = vpop.f32.mrf.mxu0
  %v2022 = vpop.f32.mrf.mxu0
  %v2023 = vadd.f32 0.0, %v2022
  %v2024 = vpop.f32.mrf.mxu0
  %2025 = vmatprep.mubr.bf16.mxu0 0
  %2026 = vmatmul.mubr.bf16.gmra.mxu0 %v1183
  %v2027 = vpop.f32.mrf.mxu0
  %v2028 = vadd.f32 0.0, %v2027
  %v2029 = vpop.f32.mrf.mxu0
  %v2030 = vpop.f32.mrf.mxu0
  %v2031 = vadd.f32 0.0, %v2030
  %v2032 = vpop.f32.mrf.mxu0
  %2033 = vmatprep.mubr.bf16.mxu0 0
  %2034 = vmatmul.mubr.bf16.gmra.mxu0 %v1186
  %v2035 = vpop.f32.mrf.mxu0
  %v2036 = vadd.f32 0.0, %v2035
  %v2037 = vpop.f32.mrf.mxu0
  %v2038 = vpop.f32.mrf.mxu0
  %v2039 = vadd.f32 0.0, %v2038
  %v2040 = vpop.f32.mrf.mxu0
  %2041 = vmatprep.mubr.bf16.mxu0 0
  %2042 = vmatmul.mubr.bf16.gmra.mxu0 %v1189
  %v2043 = vpop.f32.mrf.mxu0
  %v2044 = vadd.f32 0.0, %v2043
  %v2045 = vpop.f32.mrf.mxu0
  %v2046 = vpop.f32.mrf.mxu0
  %v2047 = vadd.f32 0.0, %v2046
  %v2048 = vpop.f32.mrf.mxu0
  %2049 = vmatprep.mubr.bf16.mxu0 0
  %2050 = vmatmul.mubr.bf16.gmra.mxu0 %v1192
  %v2051 = vpop.f32.mrf.mxu0
  %v2052 = vadd.f32 0.0, %v2051
  %v2053 = vpop.f32.mrf.mxu0
  %v2054 = vpop.f32.mrf.mxu0
  %v2055 = vadd.f32 0.0, %v2054
  %v2056 = vpop.f32.mrf.mxu0
  %2057 = vmatprep.mubr.bf16.mxu0 0
  %2058 = vmatmul.mubr.bf16.gmra.mxu0 %v1195
  %v2059 = vpop.f32.mrf.mxu0
  %v2060 = vadd.f32 0.0, %v2059
  %v2061 = vpop.f32.mrf.mxu0
  %v2062 = vpop.f32.mrf.mxu0
  %v2063 = vadd.f32 0.0, %v2062
  %v2064 = vpop.f32.mrf.mxu0
  %2065 = vmatprep.mubr.bf16.mxu0 0
  %2066 = vmatmul.mubr.bf16.gmra.mxu0 %v1198
  %v2067 = vpop.f32.mrf.mxu0
  %v2068 = vadd.f32 0.0, %v2067
  %v2069 = vpop.f32.mrf.mxu0
  %v2070 = vpop.f32.mrf.mxu0
  %v2071 = vadd.f32 0.0, %v2070
  %v2072 = vpop.f32.mrf.mxu0
  %2073 = vmatprep.mubr.bf16.mxu0 0
  %2074 = vmatmul.mubr.bf16.gmra.mxu0 %v1201
  %v2075 = vpop.f32.mrf.mxu0
  %v2076 = vadd.f32 0.0, %v2075
  %v2077 = vpop.f32.mrf.mxu0
  %v2078 = vpop.f32.mrf.mxu0
  %v2079 = vadd.f32 0.0, %v2078
  %v2080 = vpop.f32.mrf.mxu0
  %2081 = vmatprep.mubr.bf16.mxu0 0
  %2082 = vmatmul.mubr.bf16.gmra.mxu0 %v1204
  %v2083 = vpop.f32.mrf.mxu0
  %v2084 = vadd.f32 0.0, %v2083
  %v2085 = vpop.f32.mrf.mxu0
  %v2086 = vpop.f32.mrf.mxu0
  %v2087 = vadd.f32 0.0, %v2086
  %v2088 = vpop.f32.mrf.mxu0
  %2089 = vmatprep.mubr.bf16.mxu0 0
  %2090 = vmatmul.mubr.bf16.gmra.mxu0 %v1207
  %v2091 = vpop.f32.mrf.mxu0
  %v2092 = vadd.f32 0.0, %v2091
  %v2093 = vpop.f32.mrf.mxu0
  %v2094 = vpop.f32.mrf.mxu0
  %v2095 = vadd.f32 0.0, %v2094
  %v2096 = vpop.f32.mrf.mxu0
  %2097 = vmatprep.mubr.bf16.mxu0 0
  %2098 = vmatmul.mubr.bf16.gmra.mxu0 %v1210
  %v2099 = vpop.f32.mrf.mxu0
  %v2100 = vadd.f32 0.0, %v2099
  %v2101 = vpop.f32.mrf.mxu0
  %v2102 = vpop.f32.mrf.mxu0
  %v2103 = vadd.f32 0.0, %v2102
  %v2104 = vpop.f32.mrf.mxu0
  %2105 = vmatprep.mubr.bf16.mxu0 0
  %2106 = vmatmul.mubr.bf16.gmra.mxu0 %v1213
  %v2107 = vpop.f32.mrf.mxu0
  %v2108 = vadd.f32 0.0, %v2107
  %v2109 = vpop.f32.mrf.mxu0
  %v2110 = vpop.f32.mrf.mxu0
  %v2111 = vadd.f32 0.0, %v2110
  %v2112 = vpop.f32.mrf.mxu0
  %2113 = vmatprep.mubr.bf16.mxu0 0
  %2114 = vmatmul.mubr.bf16.gmra.mxu0 %v1216
  %v2115 = vpop.f32.mrf.mxu0
  %v2116 = vadd.f32 0.0, %v2115
  %v2117 = vpop.f32.mrf.mxu0
  %v2118 = vpop.f32.mrf.mxu0
  %v2119 = vadd.f32 0.0, %v2118
  %v2120 = vpop.f32.mrf.mxu0
  %2121 = vmatprep.mubr.bf16.mxu0 0
  %2122 = vmatmul.mubr.bf16.gmra.mxu0 %v1219
  %v2123 = vpop.f32.mrf.mxu0
  %v2124 = vadd.f32 0.0, %v2123
  %v2125 = vpop.f32.mrf.mxu0
  %v2126 = vpop.f32.mrf.mxu0
  %v2127 = vadd.f32 0.0, %v2126
  %v2128 = vpop.f32.mrf.mxu0
  %2129 = vmatprep.mubr.bf16.mxu0 0
  %2130 = vmatmul.mubr.bf16.gmra.mxu0 %v1222
  %v2131 = vpop.f32.mrf.mxu0
  %v2132 = vadd.f32 0.0, %v2131
  %v2133 = vpop.f32.mrf.mxu0
  %v2134 = vpop.f32.mrf.mxu0
  %v2135 = vadd.f32 0.0, %v2134
  %v2136 = vpop.f32.mrf.mxu0
  %2137 = vmatprep.mubr.bf16.mxu0 0
  %2138 = vmatmul.mubr.bf16.gmra.mxu0 %v1225
  %v2139 = vpop.f32.mrf.mxu0
  %v2140 = vadd.f32 0.0, %v2139
  %v2141 = vpop.f32.mrf.mxu0
  %v2142 = vpop.f32.mrf.mxu0
  %v2143 = vadd.f32 0.0, %v2142
  %v2144 = vpop.f32.mrf.mxu0
  %2145 = vmatprep.mubr.bf16.mxu0 0
  %2146 = vmatmul.mubr.bf16.gmra.mxu0 %v1228
  %v2147 = vpop.f32.mrf.mxu0
  %v2148 = vadd.f32 0.0, %v2147
  %v2149 = vpop.f32.mrf.mxu0
  %v2150 = vpop.f32.mrf.mxu0
  %v2151 = vadd.f32 0.0, %v2150
  %v2152 = vpop.f32.mrf.mxu0
  %2153 = vmatprep.mubr.bf16.mxu0 0
  %2154 = vmatmul.mubr.bf16.gmra.mxu0 %v1231
  %v2155 = vpop.f32.mrf.mxu0
  %v2156 = vadd.f32 0.0, %v2155
  %v2157 = vpop.f32.mrf.mxu0
  %v2158 = vpop.f32.mrf.mxu0
  %v2159 = vadd.f32 0.0, %v2158
  %v2160 = vpop.f32.mrf.mxu0
  %2161 = vmatprep.mubr.bf16.mxu0 0
  %2162 = vmatmul.mubr.bf16.gmra.mxu0 %v1234
  %v2163 = vpop.f32.mrf.mxu0
  %v2164 = vadd.f32 0.0, %v2163
  %v2165 = vpop.f32.mrf.mxu0
  %v2166 = vpop.f32.mrf.mxu0
  %v2167 = vadd.f32 0.0, %v2166
  %v2168 = vpop.f32.mrf.mxu0
  %2169 = vmatprep.mubr.bf16.mxu0 0
  %2170 = vmatmul.mubr.bf16.gmra.mxu0 %v1237
  %v2171 = vpop.f32.mrf.mxu0
  %v2172 = vadd.f32 0.0, %v2171
  %v2173 = vpop.f32.mrf.mxu0
  %v2174 = vpop.f32.mrf.mxu0
  %v2175 = vadd.f32 0.0, %v2174
  %v2176 = vpop.f32.mrf.mxu0
  %2177 = vmatprep.mubr.bf16.mxu0 0
  %2178 = vmatmul.mubr.bf16.gmra.mxu0 %v1240
  %v2179 = vpop.f32.mrf.mxu0
  %v2180 = vadd.f32 0.0, %v2179
  %v2181 = vpop.f32.mrf.mxu0
  %v2182 = vpop.f32.mrf.mxu0
  %v2183 = vadd.f32 0.0, %v2182
  %v2184 = vpop.f32.mrf.mxu0
  %2185 = vmatprep.mubr.bf16.mxu0 0
  %2186 = vmatmul.mubr.bf16.gmra.mxu0 %v1243
  %v2187 = vpop.f32.mrf.mxu0
  %v2188 = vadd.f32 0.0, %v2187
  %v2189 = vpop.f32.mrf.mxu0
  %v2190 = vpop.f32.mrf.mxu0
  %v2191 = vadd.f32 0.0, %v2190
  %v2192 = vpop.f32.mrf.mxu0
  %2193 = vmatprep.mubr.bf16.mxu0 0
  %2194 = vmatmul.mubr.bf16.gmra.mxu0 %v1246
  %v2195 = vpop.f32.mrf.mxu0
  %v2196 = vadd.f32 0.0, %v2195
  %v2197 = vpop.f32.mrf.mxu0
  %v2198 = vpop.f32.mrf.mxu0
  %v2199 = vadd.f32 0.0, %v2198
  %v2200 = vpop.f32.mrf.mxu0
  %2201 = vmatprep.mubr.bf16.mxu0 0
  %2202 = vmatmul.mubr.bf16.gmra.mxu0 %v1249
  %v2203 = vpop.f32.mrf.mxu0
  %v2204 = vadd.f32 0.0, %v2203
  %v2205 = vpop.f32.mrf.mxu0
  %v2206 = vpop.f32.mrf.mxu0
  %v2207 = vadd.f32 0.0, %v2206
  %v2208 = vpop.f32.mrf.mxu0
  %2209 = vmatprep.mubr.bf16.mxu0 0
  %2210 = vmatmul.mubr.bf16.gmra.mxu0 %v1252
  %v2211 = vpop.f32.mrf.mxu0
  %v2212 = vadd.f32 0.0, %v2211
  %v2213 = vpop.f32.mrf.mxu0
  %v2214 = vpop.f32.mrf.mxu0
  %v2215 = vadd.f32 0.0, %v2214
  %v2216 = vpop.f32.mrf.mxu0
  %2217 = vmatprep.mubr.bf16.mxu0 0
  %2218 = vmatmul.mubr.bf16.gmra.mxu0 %v1255
  %v2219 = vpop.f32.mrf.mxu0
  %v2220 = vadd.f32 0.0, %v2219
  %v2221 = vpop.f32.mrf.mxu0
  %v2222 = vpop.f32.mrf.mxu0
  %v2223 = vadd.f32 0.0, %v2222
  %v2224 = vpop.f32.mrf.mxu0
  %2225 = vmatprep.mubr.bf16.mxu0 0
  %2226 = vmatmul.mubr.bf16.gmra.mxu0 %v1258
  %v2227 = vpop.f32.mrf.mxu0
  %v2228 = vadd.f32 0.0, %v2227
  %v2229 = vpop.f32.mrf.mxu0
  %v2230 = vpop.f32.mrf.mxu0
  %v2231 = vadd.f32 0.0, %v2230
  %v2232 = vpop.f32.mrf.mxu0
  %2233 = vmatprep.mubr.bf16.mxu0 0
  %2234 = vmatmul.mubr.bf16.gmra.mxu0 %v1261
  %v2235 = vpop.f32.mrf.mxu0
  %v2236 = vadd.f32 0.0, %v2235
  %v2237 = vpop.f32.mrf.mxu0
  %v2238 = vpop.f32.mrf.mxu0
  %v2239 = vadd.f32 0.0, %v2238
  %v2240 = vpop.f32.mrf.mxu0
  %2241 = vmatprep.mubr.bf16.mxu0 0
  %2242 = vmatmul.mubr.bf16.gmra.mxu0 %v1264
  %v2243 = vpop.f32.mrf.mxu0
  %v2244 = vadd.f32 0.0, %v2243
  %v2245 = vpop.f32.mrf.mxu0
  %v2246 = vpop.f32.mrf.mxu0
  %v2247 = vadd.f32 0.0, %v2246
  %v2248 = vpop.f32.mrf.mxu0
  %2249 = vmatprep.mubr.bf16.mxu0 0
  %2250 = vmatmul.mubr.bf16.gmra.mxu0 %v1267
  %v2251 = vpop.f32.mrf.mxu0
  %v2252 = vadd.f32 0.0, %v2251
  %v2253 = vpop.f32.mrf.mxu0
  %v2254 = vpop.f32.mrf.mxu0
  %v2255 = vadd.f32 0.0, %v2254
  %v2256 = vpop.f32.mrf.mxu0
  %2257 = vmatprep.mubr.bf16.mxu0 0
  %2258 = vmatmul.mubr.bf16.gmra.mxu0 %v1270
  %v2259 = vpop.f32.mrf.mxu0
  %v2260 = vadd.f32 0.0, %v2259
  %v2261 = vpop.f32.mrf.mxu0
  %v2262 = vpop.f32.mrf.mxu0
  %v2263 = vadd.f32 0.0, %v2262
  %v2264 = vpop.f32.mrf.mxu0
  %2265 = vmatprep.mubr.bf16.mxu0 0
  %2266 = vmatmul.mubr.bf16.gmra.mxu0 %v1273
  %v2267 = vpop.f32.mrf.mxu0
  %v2268 = vadd.f32 0.0, %v2267
  %v2269 = vpop.f32.mrf.mxu0
  %v2270 = vpop.f32.mrf.mxu0
  %v2271 = vadd.f32 0.0, %v2270
  %v2272 = vpop.f32.mrf.mxu0
  %2273 = vmatprep.mubr.bf16.mxu0 0
  %2274 = vmatmul.mubr.bf16.gmra.mxu0 %v1276
  %v2275 = vpop.f32.mrf.mxu0
  %v2276 = vadd.f32 0.0, %v2275
  %v2277 = vpop.f32.mrf.mxu0
  %v2278 = vpop.f32.mrf.mxu0
  %v2279 = vadd.f32 0.0, %v2278
  %v2280 = vpop.f32.mrf.mxu0
  %2281 = vmatprep.mubr.bf16.mxu0 0
  %2282 = vmatmul.mubr.bf16.gmra.mxu0 %v1279
  %v2283 = vpop.f32.mrf.mxu0
  %v2284 = vadd.f32 0.0, %v2283
  %v2285 = vpop.f32.mrf.mxu0
  %v2286 = vpop.f32.mrf.mxu0
  %v2287 = vadd.f32 0.0, %v2286
  %v2288 = vpop.f32.mrf.mxu0
  %2289 = vmatprep.mubr.bf16.mxu0 0
  %2290 = vmatmul.mubr.bf16.gmra.mxu0 %v1282
  %v2291 = vpop.f32.mrf.mxu0
  %v2292 = vadd.f32 0.0, %v2291
  %v2293 = vpop.f32.mrf.mxu0
  %v2294 = vpop.f32.mrf.mxu0
  %v2295 = vadd.f32 0.0, %v2294
  %v2296 = vpop.f32.mrf.mxu0
  %2297 = vmatprep.mubr.bf16.mxu0 0
  %2298 = vmatmul.mubr.bf16.gmra.mxu0 %v1285
  %v2299 = vpop.f32.mrf.mxu0
  %v2300 = vadd.f32 0.0, %v2299
  %v2301 = vpop.f32.mrf.mxu0
  %v2302 = vpop.f32.mrf.mxu0
  %v2303 = vadd.f32 0.0, %v2302
  %v2304 = vpop.f32.mrf.mxu0
  %2305 = vmatprep.mubr.bf16.mxu0 0
  %2306 = vmatmul.mubr.bf16.gmra.mxu0 %v1288
  %v2307 = vpop.f32.mrf.mxu0
  %v2308 = vadd.f32 0.0, %v2307
  %v2309 = vpop.f32.mrf.mxu0
  %v2310 = vpop.f32.mrf.mxu0
  %v2311 = vadd.f32 0.0, %v2310
  %v2312 = vpop.f32.mrf.mxu0
  %2313 = vmatprep.mubr.bf16.mxu0 0
  %2314 = vmatmul.mubr.bf16.gmra.mxu0 %v1291
  %v2315 = vpop.f32.mrf.mxu0
  %v2316 = vadd.f32 0.0, %v2315
  %v2317 = vpop.f32.mrf.mxu0
  %v2318 = vpop.f32.mrf.mxu0
  %v2319 = vadd.f32 0.0, %v2318
  %v2320 = vpop.f32.mrf.mxu0
  %2321 = vmatprep.mubr.bf16.mxu0 0
  %2322 = vmatmul.mubr.bf16.gmra.mxu0 %v1294
  %v2323 = vpop.f32.mrf.mxu0
  %v2324 = vadd.f32 0.0, %v2323
  %v2325 = vpop.f32.mrf.mxu0
  %v2326 = vpop.f32.mrf.mxu0
  %v2327 = vadd.f32 0.0, %v2326
  %v2328 = vpop.f32.mrf.mxu0
  %2329 = vmatprep.mubr.bf16.mxu0 0
  %2330 = vmatmul.mubr.bf16.gmra.mxu0 %v1297
  %v2331 = vpop.f32.mrf.mxu0
  %v2332 = vadd.f32 0.0, %v2331
  %v2333 = vpop.f32.mrf.mxu0
  %v2334 = vpop.f32.mrf.mxu0
  %v2335 = vadd.f32 0.0, %v2334
  %v2336 = vpop.f32.mrf.mxu0
  %2337 = vmatprep.mubr.bf16.mxu0 0
  %2338 = vmatmul.mubr.bf16.gmra.mxu0 %v1300
  %v2339 = vpop.f32.mrf.mxu0
  %v2340 = vadd.f32 0.0, %v2339
  %v2341 = vpop.f32.mrf.mxu0
  %v2342 = vpop.f32.mrf.mxu0
  %v2343 = vadd.f32 0.0, %v2342
  %v2344 = vpop.f32.mrf.mxu0
  %2345 = vmatprep.mubr.bf16.mxu0 0
  %2346 = vmatmul.mubr.bf16.gmra.mxu0 %v1303
  %v2347 = vpop.f32.mrf.mxu0
  %v2348 = vadd.f32 0.0, %v2347
  %v2349 = vpop.f32.mrf.mxu0
  %v2350 = vpop.f32.mrf.mxu0
  %v2351 = vadd.f32 0.0, %v2350
  %v2352 = vpop.f32.mrf.mxu0
  %2353 = vmatprep.mubr.bf16.mxu0 0
  %2354 = vmatmul.mubr.bf16.gmra.mxu0 %v1306
  %v2355 = vpop.f32.mrf.mxu0
  %v2356 = vadd.f32 0.0, %v2355
  %v2357 = vpop.f32.mrf.mxu0
  %v2358 = vpop.f32.mrf.mxu0
  %v2359 = vadd.f32 0.0, %v2358
  %v2360 = vpop.f32.mrf.mxu0
  %2361 = vmatprep.mubr.bf16.mxu0 0
  %2362 = vmatmul.mubr.bf16.gmra.mxu0 %v1309
  %v2363 = vpop.f32.mrf.mxu0
  %v2364 = vadd.f32 0.0, %v2363
  %v2365 = vpop.f32.mrf.mxu0
  %v2366 = vpop.f32.mrf.mxu0
  %v2367 = vadd.f32 0.0, %v2366
  %v2368 = vpop.f32.mrf.mxu0
  %2369 = vmatprep.mubr.bf16.mxu0 0
  %2370 = vmatmul.mubr.bf16.gmra.mxu0 %v1312
  %v2371 = vpop.f32.mrf.mxu0
  %v2372 = vadd.f32 0.0, %v2371
  %v2373 = vpop.f32.mrf.mxu0
  %v2374 = vpop.f32.mrf.mxu0
  %v2375 = vadd.f32 0.0, %v2374
  %v2376 = vpop.f32.mrf.mxu0
  %2377 = vdwg.mxu0
  %v2378 = vld [vmem:[%s2] sm:$0x1]
  %v2380 = vlaneseq
  %v2381 = vshrl.u32 %v2380, 7
  %v2382 = vsub.s32 0, %v2381
  %v2383 = vrot.slane %v2378, %v2382
  %v2385 = vmul.f32 %v1356, %v2383
  %v2386 = vmul.f32 %v1359, %v2383
  %v2387 = vmul.f32 %v1364, %v2383
  %v2388 = vmul.f32 %v1367, %v2383
  %v2389 = vmul.f32 %v1372, %v2383
  %v2390 = vmul.f32 %v1375, %v2383
  %v2391 = vmul.f32 %v1380, %v2383
  %v2392 = vmul.f32 %v1383, %v2383
  %v2393 = vmul.f32 %v1388, %v2383
  %v2394 = vmul.f32 %v1391, %v2383
  %v2395 = vmul.f32 %v1396, %v2383
  %v2396 = vmul.f32 %v1399, %v2383
  %v2397 = vmul.f32 %v1404, %v2383
  %v2398 = vmul.f32 %v1407, %v2383
  %v2399 = vmul.f32 %v1412, %v2383
  %v2400 = vmul.f32 %v1415, %v2383
  %v2401 = vmul.f32 %v1420, %v2383
  %v2402 = vmul.f32 %v1423, %v2383
  %v2403 = vmul.f32 %v1428, %v2383
  %v2404 = vmul.f32 %v1431, %v2383
  %v2405 = vmul.f32 %v1436, %v2383
  %v2406 = vmul.f32 %v1439, %v2383
  %v2407 = vmul.f32 %v1444, %v2383
  %v2408 = vmul.f32 %v1447, %v2383
  %v2409 = vmul.f32 %v1452, %v2383
  %v2410 = vmul.f32 %v1455, %v2383
  %v2411 = vmul.f32 %v1460, %v2383
  %v2412 = vmul.f32 %v1463, %v2383
  %v2413 = vmul.f32 %v1468, %v2383
  %v2414 = vmul.f32 %v1471, %v2383
  %v2415 = vmul.f32 %v1476, %v2383
  %v2416 = vmul.f32 %v1479, %v2383
  %v2417 = vmul.f32 %v1484, %v2383
  %v2418 = vmul.f32 %v1487, %v2383
  %v2419 = vmul.f32 %v1492, %v2383
  %v2420 = vmul.f32 %v1495, %v2383
  %v2421 = vmul.f32 %v1500, %v2383
  %v2422 = vmul.f32 %v1503, %v2383
  %v2423 = vmul.f32 %v1508, %v2383
  %v2424 = vmul.f32 %v1511, %v2383
  %v2425 = vmul.f32 %v1516, %v2383
  %v2426 = vmul.f32 %v1519, %v2383
  %v2427 = vmul.f32 %v1524, %v2383
  %v2428 = vmul.f32 %v1527, %v2383
  %v2429 = vmul.f32 %v1532, %v2383
  %v2430 = vmul.f32 %v1535, %v2383
  %v2431 = vmul.f32 %v1540, %v2383
  %v2432 = vmul.f32 %v1543, %v2383
  %v2433 = vmul.f32 %v1548, %v2383
  %v2434 = vmul.f32 %v1551, %v2383
  %v2435 = vmul.f32 %v1556, %v2383
  %v2436 = vmul.f32 %v1559, %v2383
  %v2437 = vmul.f32 %v1564, %v2383
  %v2438 = vmul.f32 %v1567, %v2383
  %v2439 = vmul.f32 %v1572, %v2383
  %v2440 = vmul.f32 %v1575, %v2383
  %v2441 = vmul.f32 %v1580, %v2383
  %v2442 = vmul.f32 %v1583, %v2383
  %v2443 = vmul.f32 %v1588, %v2383
  %v2444 = vmul.f32 %v1591, %v2383
  %v2445 = vmul.f32 %v1596, %v2383
  %v2446 = vmul.f32 %v1599, %v2383
  %v2447 = vmul.f32 %v1604, %v2383
  %v2448 = vmul.f32 %v1607, %v2383
  %v2449 = vmul.f32 %v1612, %v2383
  %v2450 = vmul.f32 %v1615, %v2383
  %v2451 = vmul.f32 %v1620, %v2383
  %v2452 = vmul.f32 %v1623, %v2383
  %v2453 = vmul.f32 %v1628, %v2383
  %v2454 = vmul.f32 %v1631, %v2383
  %v2455 = vmul.f32 %v1636, %v2383
  %v2456 = vmul.f32 %v1639, %v2383
  %v2457 = vmul.f32 %v1644, %v2383
  %v2458 = vmul.f32 %v1647, %v2383
  %v2459 = vmul.f32 %v1652, %v2383
  %v2460 = vmul.f32 %v1655, %v2383
  %v2461 = vmul.f32 %v1660, %v2383
  %v2462 = vmul.f32 %v1663, %v2383
  %v2463 = vmul.f32 %v1668, %v2383
  %v2464 = vmul.f32 %v1671, %v2383
  %v2465 = vmul.f32 %v1676, %v2383
  %v2466 = vmul.f32 %v1679, %v2383
  %v2467 = vmul.f32 %v1684, %v2383
  %v2468 = vmul.f32 %v1687, %v2383
  %v2469 = vmul.f32 %v1692, %v2383
  %v2470 = vmul.f32 %v1695, %v2383
  %v2471 = vmul.f32 %v1700, %v2383
  %v2472 = vmul.f32 %v1703, %v2383
  %v2473 = vmul.f32 %v1708, %v2383
  %v2474 = vmul.f32 %v1711, %v2383
  %v2475 = vmul.f32 %v1716, %v2383
  %v2476 = vmul.f32 %v1719, %v2383
  %v2477 = vmul.f32 %v1724, %v2383
  %v2478 = vmul.f32 %v1727, %v2383
  %v2479 = vmul.f32 %v1732, %v2383
  %v2480 = vmul.f32 %v1735, %v2383
  %v2481 = vmul.f32 %v1740, %v2383
  %v2482 = vmul.f32 %v1743, %v2383
  %v2483 = vmul.f32 %v1748, %v2383
  %v2484 = vmul.f32 %v1751, %v2383
  %v2485 = vmul.f32 %v1756, %v2383
  %v2486 = vmul.f32 %v1759, %v2383
  %v2487 = vmul.f32 %v1764, %v2383
  %v2488 = vmul.f32 %v1767, %v2383
  %v2489 = vmul.f32 %v1772, %v2383
  %v2490 = vmul.f32 %v1775, %v2383
  %v2491 = vmul.f32 %v1780, %v2383
  %v2492 = vmul.f32 %v1783, %v2383
  %v2493 = vmul.f32 %v1788, %v2383
  %v2494 = vmul.f32 %v1791, %v2383
  %v2495 = vmul.f32 %v1796, %v2383
  %v2496 = vmul.f32 %v1799, %v2383
  %v2497 = vmul.f32 %v1804, %v2383
  %v2498 = vmul.f32 %v1807, %v2383
  %v2499 = vmul.f32 %v1812, %v2383
  %v2500 = vmul.f32 %v1815, %v2383
  %v2501 = vmul.f32 %v1820, %v2383
  %v2502 = vmul.f32 %v1823, %v2383
  %v2503 = vmul.f32 %v1828, %v2383
  %v2504 = vmul.f32 %v1831, %v2383
  %v2505 = vmul.f32 %v1836, %v2383
  %v2506 = vmul.f32 %v1839, %v2383
  %v2507 = vmul.f32 %v1844, %v2383
  %v2508 = vmul.f32 %v1847, %v2383
  %v2509 = vmul.f32 %v1852, %v2383
  %v2510 = vmul.f32 %v1855, %v2383
  %v2511 = vmul.f32 %v1860, %v2383
  %v2512 = vmul.f32 %v1863, %v2383
  %v2513 = vmul.f32 %v1868, %v2383
  %v2514 = vmul.f32 %v1871, %v2383
  %v2515 = vmul.f32 %v1876, %v2383
  %v2516 = vmul.f32 %v1879, %v2383
  %v2517 = vmul.f32 %v1884, %v2383
  %v2518 = vmul.f32 %v1887, %v2383
  %v2519 = vmul.f32 %v1892, %v2383
  %v2520 = vmul.f32 %v1895, %v2383
  %v2521 = vmul.f32 %v1900, %v2383
  %v2522 = vmul.f32 %v1903, %v2383
  %v2523 = vmul.f32 %v1908, %v2383
  %v2524 = vmul.f32 %v1911, %v2383
  %v2525 = vmul.f32 %v1916, %v2383
  %v2526 = vmul.f32 %v1919, %v2383
  %v2527 = vmul.f32 %v1924, %v2383
  %v2528 = vmul.f32 %v1927, %v2383
  %v2529 = vmul.f32 %v1932, %v2383
  %v2530 = vmul.f32 %v1935, %v2383
  %v2531 = vmul.f32 %v1940, %v2383
  %v2532 = vmul.f32 %v1943, %v2383
  %v2533 = vmul.f32 %v1948, %v2383
  %v2534 = vmul.f32 %v1951, %v2383
  %v2535 = vmul.f32 %v1956, %v2383
  %v2536 = vmul.f32 %v1959, %v2383
  %v2537 = vmul.f32 %v1964, %v2383
  %v2538 = vmul.f32 %v1967, %v2383
  %v2539 = vmul.f32 %v1972, %v2383
  %v2540 = vmul.f32 %v1975, %v2383
  %v2541 = vmul.f32 %v1980, %v2383
  %v2542 = vmul.f32 %v1983, %v2383
  %v2543 = vmul.f32 %v1988, %v2383
  %v2544 = vmul.f32 %v1991, %v2383
  %v2545 = vmul.f32 %v1996, %v2383
  %v2546 = vmul.f32 %v1999, %v2383
  %v2547 = vmul.f32 %v2004, %v2383
  %v2548 = vmul.f32 %v2007, %v2383
  %v2549 = vmul.f32 %v2012, %v2383
  %v2550 = vmul.f32 %v2015, %v2383
  %v2551 = vmul.f32 %v2020, %v2383
  %v2552 = vmul.f32 %v2023, %v2383
  %v2553 = vmul.f32 %v2028, %v2383
  %v2554 = vmul.f32 %v2031, %v2383
  %v2555 = vmul.f32 %v2036, %v2383
  %v2556 = vmul.f32 %v2039, %v2383
  %v2557 = vmul.f32 %v2044, %v2383
  %v2558 = vmul.f32 %v2047, %v2383
  %v2559 = vmul.f32 %v2052, %v2383
  %v2560 = vmul.f32 %v2055, %v2383
  %v2561 = vmul.f32 %v2060, %v2383
  %v2562 = vmul.f32 %v2063, %v2383
  %v2563 = vmul.f32 %v2068, %v2383
  %v2564 = vmul.f32 %v2071, %v2383
  %v2565 = vmul.f32 %v2076, %v2383
  %v2566 = vmul.f32 %v2079, %v2383
  %v2567 = vmul.f32 %v2084, %v2383
  %v2568 = vmul.f32 %v2087, %v2383
  %v2569 = vmul.f32 %v2092, %v2383
  %v2570 = vmul.f32 %v2095, %v2383
  %v2571 = vmul.f32 %v2100, %v2383
  %v2572 = vmul.f32 %v2103, %v2383
  %v2573 = vmul.f32 %v2108, %v2383
  %v2574 = vmul.f32 %v2111, %v2383
  %v2575 = vmul.f32 %v2116, %v2383
  %v2576 = vmul.f32 %v2119, %v2383
  %v2577 = vmul.f32 %v2124, %v2383
  %v2578 = vmul.f32 %v2127, %v2383
  %v2579 = vmul.f32 %v2132, %v2383
  %v2580 = vmul.f32 %v2135, %v2383
  %v2581 = vmul.f32 %v2140, %v2383
  %v2582 = vmul.f32 %v2143, %v2383
  %v2583 = vmul.f32 %v2148, %v2383
  %v2584 = vmul.f32 %v2151, %v2383
  %v2585 = vmul.f32 %v2156, %v2383
  %v2586 = vmul.f32 %v2159, %v2383
  %v2587 = vmul.f32 %v2164, %v2383
  %v2588 = vmul.f32 %v2167, %v2383
  %v2589 = vmul.f32 %v2172, %v2383
  %v2590 = vmul.f32 %v2175, %v2383
  %v2591 = vmul.f32 %v2180, %v2383
  %v2592 = vmul.f32 %v2183, %v2383
  %v2593 = vmul.f32 %v2188, %v2383
  %v2594 = vmul.f32 %v2191, %v2383
  %v2595 = vmul.f32 %v2196, %v2383
  %v2596 = vmul.f32 %v2199, %v2383
  %v2597 = vmul.f32 %v2204, %v2383
  %v2598 = vmul.f32 %v2207, %v2383
  %v2599 = vmul.f32 %v2212, %v2383
  %v2600 = vmul.f32 %v2215, %v2383
  %v2601 = vmul.f32 %v2220, %v2383
  %v2602 = vmul.f32 %v2223, %v2383
  %v2603 = vmul.f32 %v2228, %v2383
  %v2604 = vmul.f32 %v2231, %v2383
  %v2605 = vmul.f32 %v2236, %v2383
  %v2606 = vmul.f32 %v2239, %v2383
  %v2607 = vmul.f32 %v2244, %v2383
  %v2608 = vmul.f32 %v2247, %v2383
  %v2609 = vmul.f32 %v2252, %v2383
  %v2610 = vmul.f32 %v2255, %v2383
  %v2611 = vmul.f32 %v2260, %v2383
  %v2612 = vmul.f32 %v2263, %v2383
  %v2613 = vmul.f32 %v2268, %v2383
  %v2614 = vmul.f32 %v2271, %v2383
  %v2615 = vmul.f32 %v2276, %v2383
  %v2616 = vmul.f32 %v2279, %v2383
  %v2617 = vmul.f32 %v2284, %v2383
  %v2618 = vmul.f32 %v2287, %v2383
  %v2619 = vmul.f32 %v2292, %v2383
  %v2620 = vmul.f32 %v2295, %v2383
  %v2621 = vmul.f32 %v2300, %v2383
  %v2622 = vmul.f32 %v2303, %v2383
  %v2623 = vmul.f32 %v2308, %v2383
  %v2624 = vmul.f32 %v2311, %v2383
  %v2625 = vmul.f32 %v2316, %v2383
  %v2626 = vmul.f32 %v2319, %v2383
  %v2627 = vmul.f32 %v2324, %v2383
  %v2628 = vmul.f32 %v2327, %v2383
  %v2629 = vmul.f32 %v2332, %v2383
  %v2630 = vmul.f32 %v2335, %v2383
  %v2631 = vmul.f32 %v2340, %v2383
  %v2632 = vmul.f32 %v2343, %v2383
  %v2633 = vmul.f32 %v2348, %v2383
  %v2634 = vmul.f32 %v2351, %v2383
  %v2635 = vmul.f32 %v2356, %v2383
  %v2636 = vmul.f32 %v2359, %v2383
  %v2637 = vmul.f32 %v2364, %v2383
  %v2638 = vmul.f32 %v2367, %v2383
  %v2639 = vmul.f32 %v2372, %v2383
  %v2640 = vmul.f32 %v2375, %v2383
  %v2641 = vld [vmem:[%s3] sm:$0x1]
  %v2643 = vlaneseq
  %v2644 = vshrl.u32 %v2643, 7
  %v2645 = vsub.s32 0, %v2644
  %v2646 = vrot.slane %v2641, %v2645
  %v2648 = vadd.f32 %v2385, %v2646
  %v2649 = vadd.f32 %v2386, %v2646
  %v2650 = vadd.f32 %v2387, %v2646
  %v2651 = vadd.f32 %v2388, %v2646
  %v2652 = vadd.f32 %v2389, %v2646
  %v2653 = vadd.f32 %v2390, %v2646
  %v2654 = vadd.f32 %v2391, %v2646
  %v2655 = vadd.f32 %v2392, %v2646
  %v2656 = vadd.f32 %v2393, %v2646
  %v2657 = vadd.f32 %v2394, %v2646
  %v2658 = vadd.f32 %v2395, %v2646
  %v2659 = vadd.f32 %v2396, %v2646
  %v2660 = vadd.f32 %v2397, %v2646
  %v2661 = vadd.f32 %v2398, %v2646
  %v2662 = vadd.f32 %v2399, %v2646
  %v2663 = vadd.f32 %v2400, %v2646
  %v2664 = vadd.f32 %v2401, %v2646
  %v2665 = vadd.f32 %v2402, %v2646
  %v2666 = vadd.f32 %v2403, %v2646
  %v2667 = vadd.f32 %v2404, %v2646
  %v2668 = vadd.f32 %v2405, %v2646
  %v2669 = vadd.f32 %v2406, %v2646
  %v2670 = vadd.f32 %v2407, %v2646
  %v2671 = vadd.f32 %v2408, %v2646
  %v2672 = vadd.f32 %v2409, %v2646
  %v2673 = vadd.f32 %v2410, %v2646
  %v2674 = vadd.f32 %v2411, %v2646
  %v2675 = vadd.f32 %v2412, %v2646
  %v2676 = vadd.f32 %v2413, %v2646
  %v2677 = vadd.f32 %v2414, %v2646
  %v2678 = vadd.f32 %v2415, %v2646
  %v2679 = vadd.f32 %v2416, %v2646
  %v2680 = vadd.f32 %v2417, %v2646
  %v2681 = vadd.f32 %v2418, %v2646
  %v2682 = vadd.f32 %v2419, %v2646
  %v2683 = vadd.f32 %v2420, %v2646
  %v2684 = vadd.f32 %v2421, %v2646
  %v2685 = vadd.f32 %v2422, %v2646
  %v2686 = vadd.f32 %v2423, %v2646
  %v2687 = vadd.f32 %v2424, %v2646
  %v2688 = vadd.f32 %v2425, %v2646
  %v2689 = vadd.f32 %v2426, %v2646
  %v2690 = vadd.f32 %v2427, %v2646
  %v2691 = vadd.f32 %v2428, %v2646
  %v2692 = vadd.f32 %v2429, %v2646
  %v2693 = vadd.f32 %v2430, %v2646
  %v2694 = vadd.f32 %v2431, %v2646
  %v2695 = vadd.f32 %v2432, %v2646
  %v2696 = vadd.f32 %v2433, %v2646
  %v2697 = vadd.f32 %v2434, %v2646
  %v2698 = vadd.f32 %v2435, %v2646
  %v2699 = vadd.f32 %v2436, %v2646
  %v2700 = vadd.f32 %v2437, %v2646
  %v2701 = vadd.f32 %v2438, %v2646
  %v2702 = vadd.f32 %v2439, %v2646
  %v2703 = vadd.f32 %v2440, %v2646
  %v2704 = vadd.f32 %v2441, %v2646
  %v2705 = vadd.f32 %v2442, %v2646
  %v2706 = vadd.f32 %v2443, %v2646
  %v2707 = vadd.f32 %v2444, %v2646
  %v2708 = vadd.f32 %v2445, %v2646
  %v2709 = vadd.f32 %v2446, %v2646
  %v2710 = vadd.f32 %v2447, %v2646
  %v2711 = vadd.f32 %v2448, %v2646
  %v2712 = vadd.f32 %v2449, %v2646
  %v2713 = vadd.f32 %v2450, %v2646
  %v2714 = vadd.f32 %v2451, %v2646
  %v2715 = vadd.f32 %v2452, %v2646
  %v2716 = vadd.f32 %v2453, %v2646
  %v2717 = vadd.f32 %v2454, %v2646
  %v2718 = vadd.f32 %v2455, %v2646
  %v2719 = vadd.f32 %v2456, %v2646
  %v2720 = vadd.f32 %v2457, %v2646
  %v2721 = vadd.f32 %v2458, %v2646
  %v2722 = vadd.f32 %v2459, %v2646
  %v2723 = vadd.f32 %v2460, %v2646
  %v2724 = vadd.f32 %v2461, %v2646
  %v2725 = vadd.f32 %v2462, %v2646
  %v2726 = vadd.f32 %v2463, %v2646
  %v2727 = vadd.f32 %v2464, %v2646
  %v2728 = vadd.f32 %v2465, %v2646
  %v2729 = vadd.f32 %v2466, %v2646
  %v2730 = vadd.f32 %v2467, %v2646
  %v2731 = vadd.f32 %v2468, %v2646
  %v2732 = vadd.f32 %v2469, %v2646
  %v2733 = vadd.f32 %v2470, %v2646
  %v2734 = vadd.f32 %v2471, %v2646
  %v2735 = vadd.f32 %v2472, %v2646
  %v2736 = vadd.f32 %v2473, %v2646
  %v2737 = vadd.f32 %v2474, %v2646
  %v2738 = vadd.f32 %v2475, %v2646
  %v2739 = vadd.f32 %v2476, %v2646
  %v2740 = vadd.f32 %v2477, %v2646
  %v2741 = vadd.f32 %v2478, %v2646
  %v2742 = vadd.f32 %v2479, %v2646
  %v2743 = vadd.f32 %v2480, %v2646
  %v2744 = vadd.f32 %v2481, %v2646
  %v2745 = vadd.f32 %v2482, %v2646
  %v2746 = vadd.f32 %v2483, %v2646
  %v2747 = vadd.f32 %v2484, %v2646
  %v2748 = vadd.f32 %v2485, %v2646
  %v2749 = vadd.f32 %v2486, %v2646
  %v2750 = vadd.f32 %v2487, %v2646
  %v2751 = vadd.f32 %v2488, %v2646
  %v2752 = vadd.f32 %v2489, %v2646
  %v2753 = vadd.f32 %v2490, %v2646
  %v2754 = vadd.f32 %v2491, %v2646
  %v2755 = vadd.f32 %v2492, %v2646
  %v2756 = vadd.f32 %v2493, %v2646
  %v2757 = vadd.f32 %v2494, %v2646
  %v2758 = vadd.f32 %v2495, %v2646
  %v2759 = vadd.f32 %v2496, %v2646
  %v2760 = vadd.f32 %v2497, %v2646
  %v2761 = vadd.f32 %v2498, %v2646
  %v2762 = vadd.f32 %v2499, %v2646
  %v2763 = vadd.f32 %v2500, %v2646
  %v2764 = vadd.f32 %v2501, %v2646
  %v2765 = vadd.f32 %v2502, %v2646
  %v2766 = vadd.f32 %v2503, %v2646
  %v2767 = vadd.f32 %v2504, %v2646
  %v2768 = vadd.f32 %v2505, %v2646
  %v2769 = vadd.f32 %v2506, %v2646
  %v2770 = vadd.f32 %v2507, %v2646
  %v2771 = vadd.f32 %v2508, %v2646
  %v2772 = vadd.f32 %v2509, %v2646
  %v2773 = vadd.f32 %v2510, %v2646
  %v2774 = vadd.f32 %v2511, %v2646
  %v2775 = vadd.f32 %v2512, %v2646
  %v2776 = vadd.f32 %v2513, %v2646
  %v2777 = vadd.f32 %v2514, %v2646
  %v2778 = vadd.f32 %v2515, %v2646
  %v2779 = vadd.f32 %v2516, %v2646
  %v2780 = vadd.f32 %v2517, %v2646
  %v2781 = vadd.f32 %v2518, %v2646
  %v2782 = vadd.f32 %v2519, %v2646
  %v2783 = vadd.f32 %v2520, %v2646
  %v2784 = vadd.f32 %v2521, %v2646
  %v2785 = vadd.f32 %v2522, %v2646
  %v2786 = vadd.f32 %v2523, %v2646
  %v2787 = vadd.f32 %v2524, %v2646
  %v2788 = vadd.f32 %v2525, %v2646
  %v2789 = vadd.f32 %v2526, %v2646
  %v2790 = vadd.f32 %v2527, %v2646
  %v2791 = vadd.f32 %v2528, %v2646
  %v2792 = vadd.f32 %v2529, %v2646
  %v2793 = vadd.f32 %v2530, %v2646
  %v2794 = vadd.f32 %v2531, %v2646
  %v2795 = vadd.f32 %v2532, %v2646
  %v2796 = vadd.f32 %v2533, %v2646
  %v2797 = vadd.f32 %v2534, %v2646
  %v2798 = vadd.f32 %v2535, %v2646
  %v2799 = vadd.f32 %v2536, %v2646
  %v2800 = vadd.f32 %v2537, %v2646
  %v2801 = vadd.f32 %v2538, %v2646
  %v2802 = vadd.f32 %v2539, %v2646
  %v2803 = vadd.f32 %v2540, %v2646
  %v2804 = vadd.f32 %v2541, %v2646
  %v2805 = vadd.f32 %v2542, %v2646
  %v2806 = vadd.f32 %v2543, %v2646
  %v2807 = vadd.f32 %v2544, %v2646
  %v2808 = vadd.f32 %v2545, %v2646
  %v2809 = vadd.f32 %v2546, %v2646
  %v2810 = vadd.f32 %v2547, %v2646
  %v2811 = vadd.f32 %v2548, %v2646
  %v2812 = vadd.f32 %v2549, %v2646
  %v2813 = vadd.f32 %v2550, %v2646
  %v2814 = vadd.f32 %v2551, %v2646
  %v2815 = vadd.f32 %v2552, %v2646
  %v2816 = vadd.f32 %v2553, %v2646
  %v2817 = vadd.f32 %v2554, %v2646
  %v2818 = vadd.f32 %v2555, %v2646
  %v2819 = vadd.f32 %v2556, %v2646
  %v2820 = vadd.f32 %v2557, %v2646
  %v2821 = vadd.f32 %v2558, %v2646
  %v2822 = vadd.f32 %v2559, %v2646
  %v2823 = vadd.f32 %v2560, %v2646
  %v2824 = vadd.f32 %v2561, %v2646
  %v2825 = vadd.f32 %v2562, %v2646
  %v2826 = vadd.f32 %v2563, %v2646
  %v2827 = vadd.f32 %v2564, %v2646
  %v2828 = vadd.f32 %v2565, %v2646
  %v2829 = vadd.f32 %v2566, %v2646
  %v2830 = vadd.f32 %v2567, %v2646
  %v2831 = vadd.f32 %v2568, %v2646
  %v2832 = vadd.f32 %v2569, %v2646
  %v2833 = vadd.f32 %v2570, %v2646
  %v2834 = vadd.f32 %v2571, %v2646
  %v2835 = vadd.f32 %v2572, %v2646
  %v2836 = vadd.f32 %v2573, %v2646
  %v2837 = vadd.f32 %v2574, %v2646
  %v2838 = vadd.f32 %v2575, %v2646
  %v2839 = vadd.f32 %v2576, %v2646
  %v2840 = vadd.f32 %v2577, %v2646
  %v2841 = vadd.f32 %v2578, %v2646
  %v2842 = vadd.f32 %v2579, %v2646
  %v2843 = vadd.f32 %v2580, %v2646
  %v2844 = vadd.f32 %v2581, %v2646
  %v2845 = vadd.f32 %v2582, %v2646
  %v2846 = vadd.f32 %v2583, %v2646
  %v2847 = vadd.f32 %v2584, %v2646
  %v2848 = vadd.f32 %v2585, %v2646
  %v2849 = vadd.f32 %v2586, %v2646
  %v2850 = vadd.f32 %v2587, %v2646
  %v2851 = vadd.f32 %v2588, %v2646
  %v2852 = vadd.f32 %v2589, %v2646
  %v2853 = vadd.f32 %v2590, %v2646
  %v2854 = vadd.f32 %v2591, %v2646
  %v2855 = vadd.f32 %v2592, %v2646
  %v2856 = vadd.f32 %v2593, %v2646
  %v2857 = vadd.f32 %v2594, %v2646
  %v2858 = vadd.f32 %v2595, %v2646
  %v2859 = vadd.f32 %v2596, %v2646
  %v2860 = vadd.f32 %v2597, %v2646
  %v2861 = vadd.f32 %v2598, %v2646
  %v2862 = vadd.f32 %v2599, %v2646
  %v2863 = vadd.f32 %v2600, %v2646
  %v2864 = vadd.f32 %v2601, %v2646
  %v2865 = vadd.f32 %v2602, %v2646
  %v2866 = vadd.f32 %v2603, %v2646
  %v2867 = vadd.f32 %v2604, %v2646
  %v2868 = vadd.f32 %v2605, %v2646
  %v2869 = vadd.f32 %v2606, %v2646
  %v2870 = vadd.f32 %v2607, %v2646
  %v2871 = vadd.f32 %v2608, %v2646
  %v2872 = vadd.f32 %v2609, %v2646
  %v2873 = vadd.f32 %v2610, %v2646
  %v2874 = vadd.f32 %v2611, %v2646
  %v2875 = vadd.f32 %v2612, %v2646
  %v2876 = vadd.f32 %v2613, %v2646
  %v2877 = vadd.f32 %v2614, %v2646
  %v2878 = vadd.f32 %v2615, %v2646
  %v2879 = vadd.f32 %v2616, %v2646
  %v2880 = vadd.f32 %v2617, %v2646
  %v2881 = vadd.f32 %v2618, %v2646
  %v2882 = vadd.f32 %v2619, %v2646
  %v2883 = vadd.f32 %v2620, %v2646
  %v2884 = vadd.f32 %v2621, %v2646
  %v2885 = vadd.f32 %v2622, %v2646
  %v2886 = vadd.f32 %v2623, %v2646
  %v2887 = vadd.f32 %v2624, %v2646
  %v2888 = vadd.f32 %v2625, %v2646
  %v2889 = vadd.f32 %v2626, %v2646
  %v2890 = vadd.f32 %v2627, %v2646
  %v2891 = vadd.f32 %v2628, %v2646
  %v2892 = vadd.f32 %v2629, %v2646
  %v2893 = vadd.f32 %v2630, %v2646
  %v2894 = vadd.f32 %v2631, %v2646
  %v2895 = vadd.f32 %v2632, %v2646
  %v2896 = vadd.f32 %v2633, %v2646
  %v2897 = vadd.f32 %v2634, %v2646
  %v2898 = vadd.f32 %v2635, %v2646
  %v2899 = vadd.f32 %v2636, %v2646
  %v2900 = vadd.f32 %v2637, %v2646
  %v2901 = vadd.f32 %v2638, %v2646
  %v2902 = vadd.f32 %v2639, %v2646
  %v2903 = vadd.f32 %v2640, %v2646
  %v2904 = vxor.u32 %v2648, 2147483648
  %v2905 = vxor.u32 %v2649, 2147483648
  %v2906 = vxor.u32 %v2650, 2147483648
  %v2907 = vxor.u32 %v2651, 2147483648
  %v2908 = vxor.u32 %v2652, 2147483648
  %v2909 = vxor.u32 %v2653, 2147483648
  %v2910 = vxor.u32 %v2654, 2147483648
  %v2911 = vxor.u32 %v2655, 2147483648
  %v2912 = vxor.u32 %v2656, 2147483648
  %v2913 = vxor.u32 %v2657, 2147483648
  %v2914 = vxor.u32 %v2658, 2147483648
  %v2915 = vxor.u32 %v2659, 2147483648
  %v2916 = vxor.u32 %v2660, 2147483648
  %v2917 = vxor.u32 %v2661, 2147483648
  %v2918 = vxor.u32 %v2662, 2147483648
  %v2919 = vxor.u32 %v2663, 2147483648
  %v2920 = vxor.u32 %v2664, 2147483648
  %v2921 = vxor.u32 %v2665, 2147483648
  %v2922 = vxor.u32 %v2666, 2147483648
  %v2923 = vxor.u32 %v2667, 2147483648
  %v2924 = vxor.u32 %v2668, 2147483648
  %v2925 = vxor.u32 %v2669, 2147483648
  %v2926 = vxor.u32 %v2670, 2147483648
  %v2927 = vxor.u32 %v2671, 2147483648
  %v2928 = vxor.u32 %v2672, 2147483648
  %v2929 = vxor.u32 %v2673, 2147483648
  %v2930 = vxor.u32 %v2674, 2147483648
  %v2931 = vxor.u32 %v2675, 2147483648
  %v2932 = vxor.u32 %v2676, 2147483648
  %v2933 = vxor.u32 %v2677, 2147483648
  %v2934 = vxor.u32 %v2678, 2147483648
  %v2935 = vxor.u32 %v2679, 2147483648
  %v2936 = vxor.u32 %v2680, 2147483648
  %v2937 = vxor.u32 %v2681, 2147483648
  %v2938 = vxor.u32 %v2682, 2147483648
  %v2939 = vxor.u32 %v2683, 2147483648
  %v2940 = vxor.u32 %v2684, 2147483648
  %v2941 = vxor.u32 %v2685, 2147483648
  %v2942 = vxor.u32 %v2686, 2147483648
  %v2943 = vxor.u32 %v2687, 2147483648
  %v2944 = vxor.u32 %v2688, 2147483648
  %v2945 = vxor.u32 %v2689, 2147483648
  %v2946 = vxor.u32 %v2690, 2147483648
  %v2947 = vxor.u32 %v2691, 2147483648
  %v2948 = vxor.u32 %v2692, 2147483648
  %v2949 = vxor.u32 %v2693, 2147483648
  %v2950 = vxor.u32 %v2694, 2147483648
  %v2951 = vxor.u32 %v2695, 2147483648
  %v2952 = vxor.u32 %v2696, 2147483648
  %v2953 = vxor.u32 %v2697, 2147483648
  %v2954 = vxor.u32 %v2698, 2147483648
  %v2955 = vxor.u32 %v2699, 2147483648
  %v2956 = vxor.u32 %v2700, 2147483648
  %v2957 = vxor.u32 %v2701, 2147483648
  %v2958 = vxor.u32 %v2702, 2147483648
  %v2959 = vxor.u32 %v2703, 2147483648
  %v2960 = vxor.u32 %v2704, 2147483648
  %v2961 = vxor.u32 %v2705, 2147483648
  %v2962 = vxor.u32 %v2706, 2147483648
  %v2963 = vxor.u32 %v2707, 2147483648
  %v2964 = vxor.u32 %v2708, 2147483648
  %v2965 = vxor.u32 %v2709, 2147483648
  %v2966 = vxor.u32 %v2710, 2147483648
  %v2967 = vxor.u32 %v2711, 2147483648
  %v2968 = vxor.u32 %v2712, 2147483648
  %v2969 = vxor.u32 %v2713, 2147483648
  %v2970 = vxor.u32 %v2714, 2147483648
  %v2971 = vxor.u32 %v2715, 2147483648
  %v2972 = vxor.u32 %v2716, 2147483648
  %v2973 = vxor.u32 %v2717, 2147483648
  %v2974 = vxor.u32 %v2718, 2147483648
  %v2975 = vxor.u32 %v2719, 2147483648
  %v2976 = vxor.u32 %v2720, 2147483648
  %v2977 = vxor.u32 %v2721, 2147483648
  %v2978 = vxor.u32 %v2722, 2147483648
  %v2979 = vxor.u32 %v2723, 2147483648
  %v2980 = vxor.u32 %v2724, 2147483648
  %v2981 = vxor.u32 %v2725, 2147483648
  %v2982 = vxor.u32 %v2726, 2147483648
  %v2983 = vxor.u32 %v2727, 2147483648
  %v2984 = vxor.u32 %v2728, 2147483648
  %v2985 = vxor.u32 %v2729, 2147483648
  %v2986 = vxor.u32 %v2730, 2147483648
  %v2987 = vxor.u32 %v2731, 2147483648
  %v2988 = vxor.u32 %v2732, 2147483648
  %v2989 = vxor.u32 %v2733, 2147483648
  %v2990 = vxor.u32 %v2734, 2147483648
  %v2991 = vxor.u32 %v2735, 2147483648
  %v2992 = vxor.u32 %v2736, 2147483648
  %v2993 = vxor.u32 %v2737, 2147483648
  %v2994 = vxor.u32 %v2738, 2147483648
  %v2995 = vxor.u32 %v2739, 2147483648
  %v2996 = vxor.u32 %v2740, 2147483648
  %v2997 = vxor.u32 %v2741, 2147483648
  %v2998 = vxor.u32 %v2742, 2147483648
  %v2999 = vxor.u32 %v2743, 2147483648
  %v3000 = vxor.u32 %v2744, 2147483648
  %v3001 = vxor.u32 %v2745, 2147483648
  %v3002 = vxor.u32 %v2746, 2147483648
  %v3003 = vxor.u32 %v2747, 2147483648
  %v3004 = vxor.u32 %v2748, 2147483648
  %v3005 = vxor.u32 %v2749, 2147483648
  %v3006 = vxor.u32 %v2750, 2147483648
  %v3007 = vxor.u32 %v2751, 2147483648
  %v3008 = vxor.u32 %v2752, 2147483648
  %v3009 = vxor.u32 %v2753, 2147483648
  %v3010 = vxor.u32 %v2754, 2147483648
  %v3011 = vxor.u32 %v2755, 2147483648
  %v3012 = vxor.u32 %v2756, 2147483648
  %v3013 = vxor.u32 %v2757, 2147483648
  %v3014 = vxor.u32 %v2758, 2147483648
  %v3015 = vxor.u32 %v2759, 2147483648
  %v3016 = vxor.u32 %v2760, 2147483648
  %v3017 = vxor.u32 %v2761, 2147483648
  %v3018 = vxor.u32 %v2762, 2147483648
  %v3019 = vxor.u32 %v2763, 2147483648
  %v3020 = vxor.u32 %v2764, 2147483648
  %v3021 = vxor.u32 %v2765, 2147483648
  %v3022 = vxor.u32 %v2766, 2147483648
  %v3023 = vxor.u32 %v2767, 2147483648
  %v3024 = vxor.u32 %v2768, 2147483648
  %v3025 = vxor.u32 %v2769, 2147483648
  %v3026 = vxor.u32 %v2770, 2147483648
  %v3027 = vxor.u32 %v2771, 2147483648
  %v3028 = vxor.u32 %v2772, 2147483648
  %v3029 = vxor.u32 %v2773, 2147483648
  %v3030 = vxor.u32 %v2774, 2147483648
  %v3031 = vxor.u32 %v2775, 2147483648
  %v3032 = vxor.u32 %v2776, 2147483648
  %v3033 = vxor.u32 %v2777, 2147483648
  %v3034 = vxor.u32 %v2778, 2147483648
  %v3035 = vxor.u32 %v2779, 2147483648
  %v3036 = vxor.u32 %v2780, 2147483648
  %v3037 = vxor.u32 %v2781, 2147483648
  %v3038 = vxor.u32 %v2782, 2147483648
  %v3039 = vxor.u32 %v2783, 2147483648
  %v3040 = vxor.u32 %v2784, 2147483648
  %v3041 = vxor.u32 %v2785, 2147483648
  %v3042 = vxor.u32 %v2786, 2147483648
  %v3043 = vxor.u32 %v2787, 2147483648
  %v3044 = vxor.u32 %v2788, 2147483648
  %v3045 = vxor.u32 %v2789, 2147483648
  %v3046 = vxor.u32 %v2790, 2147483648
  %v3047 = vxor.u32 %v2791, 2147483648
  %v3048 = vxor.u32 %v2792, 2147483648
  %v3049 = vxor.u32 %v2793, 2147483648
  %v3050 = vxor.u32 %v2794, 2147483648
  %v3051 = vxor.u32 %v2795, 2147483648
  %v3052 = vxor.u32 %v2796, 2147483648
  %v3053 = vxor.u32 %v2797, 2147483648
  %v3054 = vxor.u32 %v2798, 2147483648
  %v3055 = vxor.u32 %v2799, 2147483648
  %v3056 = vxor.u32 %v2800, 2147483648
  %v3057 = vxor.u32 %v2801, 2147483648
  %v3058 = vxor.u32 %v2802, 2147483648
  %v3059 = vxor.u32 %v2803, 2147483648
  %v3060 = vxor.u32 %v2804, 2147483648
  %v3061 = vxor.u32 %v2805, 2147483648
  %v3062 = vxor.u32 %v2806, 2147483648
  %v3063 = vxor.u32 %v2807, 2147483648
  %v3064 = vxor.u32 %v2808, 2147483648
  %v3065 = vxor.u32 %v2809, 2147483648
  %v3066 = vxor.u32 %v2810, 2147483648
  %v3067 = vxor.u32 %v2811, 2147483648
  %v3068 = vxor.u32 %v2812, 2147483648
  %v3069 = vxor.u32 %v2813, 2147483648
  %v3070 = vxor.u32 %v2814, 2147483648
  %v3071 = vxor.u32 %v2815, 2147483648
  %v3072 = vxor.u32 %v2816, 2147483648
  %v3073 = vxor.u32 %v2817, 2147483648
  %v3074 = vxor.u32 %v2818, 2147483648
  %v3075 = vxor.u32 %v2819, 2147483648
  %v3076 = vxor.u32 %v2820, 2147483648
  %v3077 = vxor.u32 %v2821, 2147483648
  %v3078 = vxor.u32 %v2822, 2147483648
  %v3079 = vxor.u32 %v2823, 2147483648
  %v3080 = vxor.u32 %v2824, 2147483648
  %v3081 = vxor.u32 %v2825, 2147483648
  %v3082 = vxor.u32 %v2826, 2147483648
  %v3083 = vxor.u32 %v2827, 2147483648
  %v3084 = vxor.u32 %v2828, 2147483648
  %v3085 = vxor.u32 %v2829, 2147483648
  %v3086 = vxor.u32 %v2830, 2147483648
  %v3087 = vxor.u32 %v2831, 2147483648
  %v3088 = vxor.u32 %v2832, 2147483648
  %v3089 = vxor.u32 %v2833, 2147483648
  %v3090 = vxor.u32 %v2834, 2147483648
  %v3091 = vxor.u32 %v2835, 2147483648
  %v3092 = vxor.u32 %v2836, 2147483648
  %v3093 = vxor.u32 %v2837, 2147483648
  %v3094 = vxor.u32 %v2838, 2147483648
  %v3095 = vxor.u32 %v2839, 2147483648
  %v3096 = vxor.u32 %v2840, 2147483648
  %v3097 = vxor.u32 %v2841, 2147483648
  %v3098 = vxor.u32 %v2842, 2147483648
  %v3099 = vxor.u32 %v2843, 2147483648
  %v3100 = vxor.u32 %v2844, 2147483648
  %v3101 = vxor.u32 %v2845, 2147483648
  %v3102 = vxor.u32 %v2846, 2147483648
  %v3103 = vxor.u32 %v2847, 2147483648
  %v3104 = vxor.u32 %v2848, 2147483648
  %v3105 = vxor.u32 %v2849, 2147483648
  %v3106 = vxor.u32 %v2850, 2147483648
  %v3107 = vxor.u32 %v2851, 2147483648
  %v3108 = vxor.u32 %v2852, 2147483648
  %v3109 = vxor.u32 %v2853, 2147483648
  %v3110 = vxor.u32 %v2854, 2147483648
  %v3111 = vxor.u32 %v2855, 2147483648
  %v3112 = vxor.u32 %v2856, 2147483648
  %v3113 = vxor.u32 %v2857, 2147483648
  %v3114 = vxor.u32 %v2858, 2147483648
  %v3115 = vxor.u32 %v2859, 2147483648
  %v3116 = vxor.u32 %v2860, 2147483648
  %v3117 = vxor.u32 %v2861, 2147483648
  %v3118 = vxor.u32 %v2862, 2147483648
  %v3119 = vxor.u32 %v2863, 2147483648
  %v3120 = vxor.u32 %v2864, 2147483648
  %v3121 = vxor.u32 %v2865, 2147483648
  %v3122 = vxor.u32 %v2866, 2147483648
  %v3123 = vxor.u32 %v2867, 2147483648
  %v3124 = vxor.u32 %v2868, 2147483648
  %v3125 = vxor.u32 %v2869, 2147483648
  %v3126 = vxor.u32 %v2870, 2147483648
  %v3127 = vxor.u32 %v2871, 2147483648
  %v3128 = vxor.u32 %v2872, 2147483648
  %v3129 = vxor.u32 %v2873, 2147483648
  %v3130 = vxor.u32 %v2874, 2147483648
  %v3131 = vxor.u32 %v2875, 2147483648
  %v3132 = vxor.u32 %v2876, 2147483648
  %v3133 = vxor.u32 %v2877, 2147483648
  %v3134 = vxor.u32 %v2878, 2147483648
  %v3135 = vxor.u32 %v2879, 2147483648
  %v3136 = vxor.u32 %v2880, 2147483648
  %v3137 = vxor.u32 %v2881, 2147483648
  %v3138 = vxor.u32 %v2882, 2147483648
  %v3139 = vxor.u32 %v2883, 2147483648
  %v3140 = vxor.u32 %v2884, 2147483648
  %v3141 = vxor.u32 %v2885, 2147483648
  %v3142 = vxor.u32 %v2886, 2147483648
  %v3143 = vxor.u32 %v2887, 2147483648
  %v3144 = vxor.u32 %v2888, 2147483648
  %v3145 = vxor.u32 %v2889, 2147483648
  %v3146 = vxor.u32 %v2890, 2147483648
  %v3147 = vxor.u32 %v2891, 2147483648
  %v3148 = vxor.u32 %v2892, 2147483648
  %v3149 = vxor.u32 %v2893, 2147483648
  %v3150 = vxor.u32 %v2894, 2147483648
  %v3151 = vxor.u32 %v2895, 2147483648
  %v3152 = vxor.u32 %v2896, 2147483648
  %v3153 = vxor.u32 %v2897, 2147483648
  %v3154 = vxor.u32 %v2898, 2147483648
  %v3155 = vxor.u32 %v2899, 2147483648
  %v3156 = vxor.u32 %v2900, 2147483648
  %v3157 = vxor.u32 %v2901, 2147483648
  %v3158 = vxor.u32 %v2902, 2147483648
  %v3159 = vxor.u32 %v2903, 2147483648
  %v3160 = vmul.f32 %v2904, 1.442695
  %v3161 = vpow.pop %v3160
  %v3162 = vmul.f32 %v2905, 1.442695
  %v3163 = vpow.pop %v3162
  %v3164 = vmul.f32 %v2906, 1.442695
  %v3165 = vpow.pop %v3164
  %v3166 = vmul.f32 %v2907, 1.442695
  %v3167 = vpow.pop %v3166
  %v3168 = vmul.f32 %v2908, 1.442695
  %v3169 = vpow.pop %v3168
  %v3170 = vmul.f32 %v2909, 1.442695
  %v3171 = vpow.pop %v3170
  %v3172 = vmul.f32 %v2910, 1.442695
  %v3173 = vpow.pop %v3172
  %v3174 = vmul.f32 %v2911, 1.442695
  %v3175 = vpow.pop %v3174
  %v3176 = vmul.f32 %v2912, 1.442695
  %v3177 = vpow.pop %v3176
  %v3178 = vmul.f32 %v2913, 1.442695
  %v3179 = vpow.pop %v3178
  %v3180 = vmul.f32 %v2914, 1.442695
  %v3181 = vpow.pop %v3180
  %v3182 = vmul.f32 %v2915, 1.442695
  %v3183 = vpow.pop %v3182
  %v3184 = vmul.f32 %v2916, 1.442695
  %v3185 = vpow.pop %v3184
  %v3186 = vmul.f32 %v2917, 1.442695
  %v3187 = vpow.pop %v3186
  %v3188 = vmul.f32 %v2918, 1.442695
  %v3189 = vpow.pop %v3188
  %v3190 = vmul.f32 %v2919, 1.442695
  %v3191 = vpow.pop %v3190
  %v3192 = vmul.f32 %v2920, 1.442695
  %v3193 = vpow.pop %v3192
  %v3194 = vmul.f32 %v2921, 1.442695
  %v3195 = vpow.pop %v3194
  %v3196 = vmul.f32 %v2922, 1.442695
  %v3197 = vpow.pop %v3196
  %v3198 = vmul.f32 %v2923, 1.442695
  %v3199 = vpow.pop %v3198
  %v3200 = vmul.f32 %v2924, 1.442695
  %v3201 = vpow.pop %v3200
  %v3202 = vmul.f32 %v2925, 1.442695
  %v3203 = vpow.pop %v3202
  %v3204 = vmul.f32 %v2926, 1.442695
  %v3205 = vpow.pop %v3204
  %v3206 = vmul.f32 %v2927, 1.442695
  %v3207 = vpow.pop %v3206
  %v3208 = vmul.f32 %v2928, 1.442695
  %v3209 = vpow.pop %v3208
  %v3210 = vmul.f32 %v2929, 1.442695
  %v3211 = vpow.pop %v3210
  %v3212 = vmul.f32 %v2930, 1.442695
  %v3213 = vpow.pop %v3212
  %v3214 = vmul.f32 %v2931, 1.442695
  %v3215 = vpow.pop %v3214
  %v3216 = vmul.f32 %v2932, 1.442695
  %v3217 = vpow.pop %v3216
  %v3218 = vmul.f32 %v2933, 1.442695
  %v3219 = vpow.pop %v3218
  %v3220 = vmul.f32 %v2934, 1.442695
  %v3221 = vpow.pop %v3220
  %v3222 = vmul.f32 %v2935, 1.442695
  %v3223 = vpow.pop %v3222
  %v3224 = vmul.f32 %v2936, 1.442695
  %v3225 = vpow.pop %v3224
  %v3226 = vmul.f32 %v2937, 1.442695
  %v3227 = vpow.pop %v3226
  %v3228 = vmul.f32 %v2938, 1.442695
  %v3229 = vpow.pop %v3228
  %v3230 = vmul.f32 %v2939, 1.442695
  %v3231 = vpow.pop %v3230
  %v3232 = vmul.f32 %v2940, 1.442695
  %v3233 = vpow.pop %v3232
  %v3234 = vmul.f32 %v2941, 1.442695
  %v3235 = vpow.pop %v3234
  %v3236 = vmul.f32 %v2942, 1.442695
  %v3237 = vpow.pop %v3236
  %v3238 = vmul.f32 %v2943, 1.442695
  %v3239 = vpow.pop %v3238
  %v3240 = vmul.f32 %v2944, 1.442695
  %v3241 = vpow.pop %v3240
  %v3242 = vmul.f32 %v2945, 1.442695
  %v3243 = vpow.pop %v3242
  %v3244 = vmul.f32 %v2946, 1.442695
  %v3245 = vpow.pop %v3244
  %v3246 = vmul.f32 %v2947, 1.442695
  %v3247 = vpow.pop %v3246
  %v3248 = vmul.f32 %v2948, 1.442695
  %v3249 = vpow.pop %v3248
  %v3250 = vmul.f32 %v2949, 1.442695
  %v3251 = vpow.pop %v3250
  %v3252 = vmul.f32 %v2950, 1.442695
  %v3253 = vpow.pop %v3252
  %v3254 = vmul.f32 %v2951, 1.442695
  %v3255 = vpow.pop %v3254
  %v3256 = vmul.f32 %v2952, 1.442695
  %v3257 = vpow.pop %v3256
  %v3258 = vmul.f32 %v2953, 1.442695
  %v3259 = vpow.pop %v3258
  %v3260 = vmul.f32 %v2954, 1.442695
  %v3261 = vpow.pop %v3260
  %v3262 = vmul.f32 %v2955, 1.442695
  %v3263 = vpow.pop %v3262
  %v3264 = vmul.f32 %v2956, 1.442695
  %v3265 = vpow.pop %v3264
  %v3266 = vmul.f32 %v2957, 1.442695
  %v3267 = vpow.pop %v3266
  %v3268 = vmul.f32 %v2958, 1.442695
  %v3269 = vpow.pop %v3268
  %v3270 = vmul.f32 %v2959, 1.442695
  %v3271 = vpow.pop %v3270
  %v3272 = vmul.f32 %v2960, 1.442695
  %v3273 = vpow.pop %v3272
  %v3274 = vmul.f32 %v2961, 1.442695
  %v3275 = vpow.pop %v3274
  %v3276 = vmul.f32 %v2962, 1.442695
  %v3277 = vpow.pop %v3276
  %v3278 = vmul.f32 %v2963, 1.442695
  %v3279 = vpow.pop %v3278
  %v3280 = vmul.f32 %v2964, 1.442695
  %v3281 = vpow.pop %v3280
  %v3282 = vmul.f32 %v2965, 1.442695
  %v3283 = vpow.pop %v3282
  %v3284 = vmul.f32 %v2966, 1.442695
  %v3285 = vpow.pop %v3284
  %v3286 = vmul.f32 %v2967, 1.442695
  %v3287 = vpow.pop %v3286
  %v3288 = vmul.f32 %v2968, 1.442695
  %v3289 = vpow.pop %v3288
  %v3290 = vmul.f32 %v2969, 1.442695
  %v3291 = vpow.pop %v3290
  %v3292 = vmul.f32 %v2970, 1.442695
  %v3293 = vpow.pop %v3292
  %v3294 = vmul.f32 %v2971, 1.442695
  %v3295 = vpow.pop %v3294
  %v3296 = vmul.f32 %v2972, 1.442695
  %v3297 = vpow.pop %v3296
  %v3298 = vmul.f32 %v2973, 1.442695
  %v3299 = vpow.pop %v3298
  %v3300 = vmul.f32 %v2974, 1.442695
  %v3301 = vpow.pop %v3300
  %v3302 = vmul.f32 %v2975, 1.442695
  %v3303 = vpow.pop %v3302
  %v3304 = vmul.f32 %v2976, 1.442695
  %v3305 = vpow.pop %v3304
  %v3306 = vmul.f32 %v2977, 1.442695
  %v3307 = vpow.pop %v3306
  %v3308 = vmul.f32 %v2978, 1.442695
  %v3309 = vpow.pop %v3308
  %v3310 = vmul.f32 %v2979, 1.442695
  %v3311 = vpow.pop %v3310
  %v3312 = vmul.f32 %v2980, 1.442695
  %v3313 = vpow.pop %v3312
  %v3314 = vmul.f32 %v2981, 1.442695
  %v3315 = vpow.pop %v3314
  %v3316 = vmul.f32 %v2982, 1.442695
  %v3317 = vpow.pop %v3316
  %v3318 = vmul.f32 %v2983, 1.442695
  %v3319 = vpow.pop %v3318
  %v3320 = vmul.f32 %v2984, 1.442695
  %v3321 = vpow.pop %v3320
  %v3322 = vmul.f32 %v2985, 1.442695
  %v3323 = vpow.pop %v3322
  %v3324 = vmul.f32 %v2986, 1.442695
  %v3325 = vpow.pop %v3324
  %v3326 = vmul.f32 %v2987, 1.442695
  %v3327 = vpow.pop %v3326
  %v3328 = vmul.f32 %v2988, 1.442695
  %v3329 = vpow.pop %v3328
  %v3330 = vmul.f32 %v2989, 1.442695
  %v3331 = vpow.pop %v3330
  %v3332 = vmul.f32 %v2990, 1.442695
  %v3333 = vpow.pop %v3332
  %v3334 = vmul.f32 %v2991, 1.442695
  %v3335 = vpow.pop %v3334
  %v3336 = vmul.f32 %v2992, 1.442695
  %v3337 = vpow.pop %v3336
  %v3338 = vmul.f32 %v2993, 1.442695
  %v3339 = vpow.pop %v3338
  %v3340 = vmul.f32 %v2994, 1.442695
  %v3341 = vpow.pop %v3340
  %v3342 = vmul.f32 %v2995, 1.442695
  %v3343 = vpow.pop %v3342
  %v3344 = vmul.f32 %v2996, 1.442695
  %v3345 = vpow.pop %v3344
  %v3346 = vmul.f32 %v2997, 1.442695
  %v3347 = vpow.pop %v3346
  %v3348 = vmul.f32 %v2998, 1.442695
  %v3349 = vpow.pop %v3348
  %v3350 = vmul.f32 %v2999, 1.442695
  %v3351 = vpow.pop %v3350
  %v3352 = vmul.f32 %v3000, 1.442695
  %v3353 = vpow.pop %v3352
  %v3354 = vmul.f32 %v3001, 1.442695
  %v3355 = vpow.pop %v3354
  %v3356 = vmul.f32 %v3002, 1.442695
  %v3357 = vpow.pop %v3356
  %v3358 = vmul.f32 %v3003, 1.442695
  %v3359 = vpow.pop %v3358
  %v3360 = vmul.f32 %v3004, 1.442695
  %v3361 = vpow.pop %v3360
  %v3362 = vmul.f32 %v3005, 1.442695
  %v3363 = vpow.pop %v3362
  %v3364 = vmul.f32 %v3006, 1.442695
  %v3365 = vpow.pop %v3364
  %v3366 = vmul.f32 %v3007, 1.442695
  %v3367 = vpow.pop %v3366
  %v3368 = vmul.f32 %v3008, 1.442695
  %v3369 = vpow.pop %v3368
  %v3370 = vmul.f32 %v3009, 1.442695
  %v3371 = vpow.pop %v3370
  %v3372 = vmul.f32 %v3010, 1.442695
  %v3373 = vpow.pop %v3372
  %v3374 = vmul.f32 %v3011, 1.442695
  %v3375 = vpow.pop %v3374
  %v3376 = vmul.f32 %v3012, 1.442695
  %v3377 = vpow.pop %v3376
  %v3378 = vmul.f32 %v3013, 1.442695
  %v3379 = vpow.pop %v3378
  %v3380 = vmul.f32 %v3014, 1.442695
  %v3381 = vpow.pop %v3380
  %v3382 = vmul.f32 %v3015, 1.442695
  %v3383 = vpow.pop %v3382
  %v3384 = vmul.f32 %v3016, 1.442695
  %v3385 = vpow.pop %v3384
  %v3386 = vmul.f32 %v3017, 1.442695
  %v3387 = vpow.pop %v3386
  %v3388 = vmul.f32 %v3018, 1.442695
  %v3389 = vpow.pop %v3388
  %v3390 = vmul.f32 %v3019, 1.442695
  %v3391 = vpow.pop %v3390
  %v3392 = vmul.f32 %v3020, 1.442695
  %v3393 = vpow.pop %v3392
  %v3394 = vmul.f32 %v3021, 1.442695
  %v3395 = vpow.pop %v3394
  %v3396 = vmul.f32 %v3022, 1.442695
  %v3397 = vpow.pop %v3396
  %v3398 = vmul.f32 %v3023, 1.442695
  %v3399 = vpow.pop %v3398
  %v3400 = vmul.f32 %v3024, 1.442695
  %v3401 = vpow.pop %v3400
  %v3402 = vmul.f32 %v3025, 1.442695
  %v3403 = vpow.pop %v3402
  %v3404 = vmul.f32 %v3026, 1.442695
  %v3405 = vpow.pop %v3404
  %v3406 = vmul.f32 %v3027, 1.442695
  %v3407 = vpow.pop %v3406
  %v3408 = vmul.f32 %v3028, 1.442695
  %v3409 = vpow.pop %v3408
  %v3410 = vmul.f32 %v3029, 1.442695
  %v3411 = vpow.pop %v3410
  %v3412 = vmul.f32 %v3030, 1.442695
  %v3413 = vpow.pop %v3412
  %v3414 = vmul.f32 %v3031, 1.442695
  %v3415 = vpow.pop %v3414
  %v3416 = vmul.f32 %v3032, 1.442695
  %v3417 = vpow.pop %v3416
  %v3418 = vmul.f32 %v3033, 1.442695
  %v3419 = vpow.pop %v3418
  %v3420 = vmul.f32 %v3034, 1.442695
  %v3421 = vpow.pop %v3420
  %v3422 = vmul.f32 %v3035, 1.442695
  %v3423 = vpow.pop %v3422
  %v3424 = vmul.f32 %v3036, 1.442695
  %v3425 = vpow.pop %v3424
  %v3426 = vmul.f32 %v3037, 1.442695
  %v3427 = vpow.pop %v3426
  %v3428 = vmul.f32 %v3038, 1.442695
  %v3429 = vpow.pop %v3428
  %v3430 = vmul.f32 %v3039, 1.442695
  %v3431 = vpow.pop %v3430
  %v3432 = vmul.f32 %v3040, 1.442695
  %v3433 = vpow.pop %v3432
  %v3434 = vmul.f32 %v3041, 1.442695
  %v3435 = vpow.pop %v3434
  %v3436 = vmul.f32 %v3042, 1.442695
  %v3437 = vpow.pop %v3436
  %v3438 = vmul.f32 %v3043, 1.442695
  %v3439 = vpow.pop %v3438
  %v3440 = vmul.f32 %v3044, 1.442695
  %v3441 = vpow.pop %v3440
  %v3442 = vmul.f32 %v3045, 1.442695
  %v3443 = vpow.pop %v3442
  %v3444 = vmul.f32 %v3046, 1.442695
  %v3445 = vpow.pop %v3444
  %v3446 = vmul.f32 %v3047, 1.442695
  %v3447 = vpow.pop %v3446
  %v3448 = vmul.f32 %v3048, 1.442695
  %v3449 = vpow.pop %v3448
  %v3450 = vmul.f32 %v3049, 1.442695
  %v3451 = vpow.pop %v3450
  %v3452 = vmul.f32 %v3050, 1.442695
  %v3453 = vpow.pop %v3452
  %v3454 = vmul.f32 %v3051, 1.442695
  %v3455 = vpow.pop %v3454
  %v3456 = vmul.f32 %v3052, 1.442695
  %v3457 = vpow.pop %v3456
  %v3458 = vmul.f32 %v3053, 1.442695
  %v3459 = vpow.pop %v3458
  %v3460 = vmul.f32 %v3054, 1.442695
  %v3461 = vpow.pop %v3460
  %v3462 = vmul.f32 %v3055, 1.442695
  %v3463 = vpow.pop %v3462
  %v3464 = vmul.f32 %v3056, 1.442695
  %v3465 = vpow.pop %v3464
  %v3466 = vmul.f32 %v3057, 1.442695
  %v3467 = vpow.pop %v3466
  %v3468 = vmul.f32 %v3058, 1.442695
  %v3469 = vpow.pop %v3468
  %v3470 = vmul.f32 %v3059, 1.442695
  %v3471 = vpow.pop %v3470
  %v3472 = vmul.f32 %v3060, 1.442695
  %v3473 = vpow.pop %v3472
  %v3474 = vmul.f32 %v3061, 1.442695
  %v3475 = vpow.pop %v3474
  %v3476 = vmul.f32 %v3062, 1.442695
  %v3477 = vpow.pop %v3476
  %v3478 = vmul.f32 %v3063, 1.442695
  %v3479 = vpow.pop %v3478
  %v3480 = vmul.f32 %v3064, 1.442695
  %v3481 = vpow.pop %v3480
  %v3482 = vmul.f32 %v3065, 1.442695
  %v3483 = vpow.pop %v3482
  %v3484 = vmul.f32 %v3066, 1.442695
  %v3485 = vpow.pop %v3484
  %v3486 = vmul.f32 %v3067, 1.442695
  %v3487 = vpow.pop %v3486
  %v3488 = vmul.f32 %v3068, 1.442695
  %v3489 = vpow.pop %v3488
  %v3490 = vmul.f32 %v3069, 1.442695
  %v3491 = vpow.pop %v3490
  %v3492 = vmul.f32 %v3070, 1.442695
  %v3493 = vpow.pop %v3492
  %v3494 = vmul.f32 %v3071, 1.442695
  %v3495 = vpow.pop %v3494
  %v3496 = vmul.f32 %v3072, 1.442695
  %v3497 = vpow.pop %v3496
  %v3498 = vmul.f32 %v3073, 1.442695
  %v3499 = vpow.pop %v3498
  %v3500 = vmul.f32 %v3074, 1.442695
  %v3501 = vpow.pop %v3500
  %v3502 = vmul.f32 %v3075, 1.442695
  %v3503 = vpow.pop %v3502
  %v3504 = vmul.f32 %v3076, 1.442695
  %v3505 = vpow.pop %v3504
  %v3506 = vmul.f32 %v3077, 1.442695
  %v3507 = vpow.pop %v3506
  %v3508 = vmul.f32 %v3078, 1.442695
  %v3509 = vpow.pop %v3508
  %v3510 = vmul.f32 %v3079, 1.442695
  %v3511 = vpow.pop %v3510
  %v3512 = vmul.f32 %v3080, 1.442695
  %v3513 = vpow.pop %v3512
  %v3514 = vmul.f32 %v3081, 1.442695
  %v3515 = vpow.pop %v3514
  %v3516 = vmul.f32 %v3082, 1.442695
  %v3517 = vpow.pop %v3516
  %v3518 = vmul.f32 %v3083, 1.442695
  %v3519 = vpow.pop %v3518
  %v3520 = vmul.f32 %v3084, 1.442695
  %v3521 = vpow.pop %v3520
  %v3522 = vmul.f32 %v3085, 1.442695
  %v3523 = vpow.pop %v3522
  %v3524 = vmul.f32 %v3086, 1.442695
  %v3525 = vpow.pop %v3524
  %v3526 = vmul.f32 %v3087, 1.442695
  %v3527 = vpow.pop %v3526
  %v3528 = vmul.f32 %v3088, 1.442695
  %v3529 = vpow.pop %v3528
  %v3530 = vmul.f32 %v3089, 1.442695
  %v3531 = vpow.pop %v3530
  %v3532 = vmul.f32 %v3090, 1.442695
  %v3533 = vpow.pop %v3532
  %v3534 = vmul.f32 %v3091, 1.442695
  %v3535 = vpow.pop %v3534
  %v3536 = vmul.f32 %v3092, 1.442695
  %v3537 = vpow.pop %v3536
  %v3538 = vmul.f32 %v3093, 1.442695
  %v3539 = vpow.pop %v3538
  %v3540 = vmul.f32 %v3094, 1.442695
  %v3541 = vpow.pop %v3540
  %v3542 = vmul.f32 %v3095, 1.442695
  %v3543 = vpow.pop %v3542
  %v3544 = vmul.f32 %v3096, 1.442695
  %v3545 = vpow.pop %v3544
  %v3546 = vmul.f32 %v3097, 1.442695
  %v3547 = vpow.pop %v3546
  %v3548 = vmul.f32 %v3098, 1.442695
  %v3549 = vpow.pop %v3548
  %v3550 = vmul.f32 %v3099, 1.442695
  %v3551 = vpow.pop %v3550
  %v3552 = vmul.f32 %v3100, 1.442695
  %v3553 = vpow.pop %v3552
  %v3554 = vmul.f32 %v3101, 1.442695
  %v3555 = vpow.pop %v3554
  %v3556 = vmul.f32 %v3102, 1.442695
  %v3557 = vpow.pop %v3556
  %v3558 = vmul.f32 %v3103, 1.442695
  %v3559 = vpow.pop %v3558
  %v3560 = vmul.f32 %v3104, 1.442695
  %v3561 = vpow.pop %v3560
  %v3562 = vmul.f32 %v3105, 1.442695
  %v3563 = vpow.pop %v3562
  %v3564 = vmul.f32 %v3106, 1.442695
  %v3565 = vpow.pop %v3564
  %v3566 = vmul.f32 %v3107, 1.442695
  %v3567 = vpow.pop %v3566
  %v3568 = vmul.f32 %v3108, 1.442695
  %v3569 = vpow.pop %v3568
  %v3570 = vmul.f32 %v3109, 1.442695
  %v3571 = vpow.pop %v3570
  %v3572 = vmul.f32 %v3110, 1.442695
  %v3573 = vpow.pop %v3572
  %v3574 = vmul.f32 %v3111, 1.442695
  %v3575 = vpow.pop %v3574
  %v3576 = vmul.f32 %v3112, 1.442695
  %v3577 = vpow.pop %v3576
  %v3578 = vmul.f32 %v3113, 1.442695
  %v3579 = vpow.pop %v3578
  %v3580 = vmul.f32 %v3114, 1.442695
  %v3581 = vpow.pop %v3580
  %v3582 = vmul.f32 %v3115, 1.442695
  %v3583 = vpow.pop %v3582
  %v3584 = vmul.f32 %v3116, 1.442695
  %v3585 = vpow.pop %v3584
  %v3586 = vmul.f32 %v3117, 1.442695
  %v3587 = vpow.pop %v3586
  %v3588 = vmul.f32 %v3118, 1.442695
  %v3589 = vpow.pop %v3588
  %v3590 = vmul.f32 %v3119, 1.442695
  %v3591 = vpow.pop %v3590
  %v3592 = vmul.f32 %v3120, 1.442695
  %v3593 = vpow.pop %v3592
  %v3594 = vmul.f32 %v3121, 1.442695
  %v3595 = vpow.pop %v3594
  %v3596 = vmul.f32 %v3122, 1.442695
  %v3597 = vpow.pop %v3596
  %v3598 = vmul.f32 %v3123, 1.442695
  %v3599 = vpow.pop %v3598
  %v3600 = vmul.f32 %v3124, 1.442695
  %v3601 = vpow.pop %v3600
  %v3602 = vmul.f32 %v3125, 1.442695
  %v3603 = vpow.pop %v3602
  %v3604 = vmul.f32 %v3126, 1.442695
  %v3605 = vpow.pop %v3604
  %v3606 = vmul.f32 %v3127, 1.442695
  %v3607 = vpow.pop %v3606
  %v3608 = vmul.f32 %v3128, 1.442695
  %v3609 = vpow.pop %v3608
  %v3610 = vmul.f32 %v3129, 1.442695
  %v3611 = vpow.pop %v3610
  %v3612 = vmul.f32 %v3130, 1.442695
  %v3613 = vpow.pop %v3612
  %v3614 = vmul.f32 %v3131, 1.442695
  %v3615 = vpow.pop %v3614
  %v3616 = vmul.f32 %v3132, 1.442695
  %v3617 = vpow.pop %v3616
  %v3618 = vmul.f32 %v3133, 1.442695
  %v3619 = vpow.pop %v3618
  %v3620 = vmul.f32 %v3134, 1.442695
  %v3621 = vpow.pop %v3620
  %v3622 = vmul.f32 %v3135, 1.442695
  %v3623 = vpow.pop %v3622
  %v3624 = vmul.f32 %v3136, 1.442695
  %v3625 = vpow.pop %v3624
  %v3626 = vmul.f32 %v3137, 1.442695
  %v3627 = vpow.pop %v3626
  %v3628 = vmul.f32 %v3138, 1.442695
  %v3629 = vpow.pop %v3628
  %v3630 = vmul.f32 %v3139, 1.442695
  %v3631 = vpow.pop %v3630
  %v3632 = vmul.f32 %v3140, 1.442695
  %v3633 = vpow.pop %v3632
  %v3634 = vmul.f32 %v3141, 1.442695
  %v3635 = vpow.pop %v3634
  %v3636 = vmul.f32 %v3142, 1.442695
  %v3637 = vpow.pop %v3636
  %v3638 = vmul.f32 %v3143, 1.442695
  %v3639 = vpow.pop %v3638
  %v3640 = vmul.f32 %v3144, 1.442695
  %v3641 = vpow.pop %v3640
  %v3642 = vmul.f32 %v3145, 1.442695
  %v3643 = vpow.pop %v3642
  %v3644 = vmul.f32 %v3146, 1.442695
  %v3645 = vpow.pop %v3644
  %v3646 = vmul.f32 %v3147, 1.442695
  %v3647 = vpow.pop %v3646
  %v3648 = vmul.f32 %v3148, 1.442695
  %v3649 = vpow.pop %v3648
  %v3650 = vmul.f32 %v3149, 1.442695
  %v3651 = vpow.pop %v3650
  %v3652 = vmul.f32 %v3150, 1.442695
  %v3653 = vpow.pop %v3652
  %v3654 = vmul.f32 %v3151, 1.442695
  %v3655 = vpow.pop %v3654
  %v3656 = vmul.f32 %v3152, 1.442695
  %v3657 = vpow.pop %v3656
  %v3658 = vmul.f32 %v3153, 1.442695
  %v3659 = vpow.pop %v3658
  %v3660 = vmul.f32 %v3154, 1.442695
  %v3661 = vpow.pop %v3660
  %v3662 = vmul.f32 %v3155, 1.442695
  %v3663 = vpow.pop %v3662
  %v3664 = vmul.f32 %v3156, 1.442695
  %v3665 = vpow.pop %v3664
  %v3666 = vmul.f32 %v3157, 1.442695
  %v3667 = vpow.pop %v3666
  %v3668 = vmul.f32 %v3158, 1.442695
  %v3669 = vpow.pop %v3668
  %v3670 = vmul.f32 %v3159, 1.442695
  %v3671 = vpow.pop %v3670
  %v3672 = vadd.f32 %v3161, 1.0
  %v3673 = vadd.f32 %v3163, 1.0
  %v3674 = vadd.f32 %v3165, 1.0
  %v3675 = vadd.f32 %v3167, 1.0
  %v3676 = vadd.f32 %v3169, 1.0
  %v3677 = vadd.f32 %v3171, 1.0
  %v3678 = vadd.f32 %v3173, 1.0
  %v3679 = vadd.f32 %v3175, 1.0
  %v3680 = vadd.f32 %v3177, 1.0
  %v3681 = vadd.f32 %v3179, 1.0
  %v3682 = vadd.f32 %v3181, 1.0
  %v3683 = vadd.f32 %v3183, 1.0
  %v3684 = vadd.f32 %v3185, 1.0
  %v3685 = vadd.f32 %v3187, 1.0
  %v3686 = vadd.f32 %v3189, 1.0
  %v3687 = vadd.f32 %v3191, 1.0
  %v3688 = vadd.f32 %v3193, 1.0
  %v3689 = vadd.f32 %v3195, 1.0
  %v3690 = vadd.f32 %v3197, 1.0
  %v3691 = vadd.f32 %v3199, 1.0
  %v3692 = vadd.f32 %v3201, 1.0
  %v3693 = vadd.f32 %v3203, 1.0
  %v3694 = vadd.f32 %v3205, 1.0
  %v3695 = vadd.f32 %v3207, 1.0
  %v3696 = vadd.f32 %v3209, 1.0
  %v3697 = vadd.f32 %v3211, 1.0
  %v3698 = vadd.f32 %v3213, 1.0
  %v3699 = vadd.f32 %v3215, 1.0
  %v3700 = vadd.f32 %v3217, 1.0
  %v3701 = vadd.f32 %v3219, 1.0
  %v3702 = vadd.f32 %v3221, 1.0
  %v3703 = vadd.f32 %v3223, 1.0
  %v3704 = vadd.f32 %v3225, 1.0
  %v3705 = vadd.f32 %v3227, 1.0
  %v3706 = vadd.f32 %v3229, 1.0
  %v3707 = vadd.f32 %v3231, 1.0
  %v3708 = vadd.f32 %v3233, 1.0
  %v3709 = vadd.f32 %v3235, 1.0
  %v3710 = vadd.f32 %v3237, 1.0
  %v3711 = vadd.f32 %v3239, 1.0
  %v3712 = vadd.f32 %v3241, 1.0
  %v3713 = vadd.f32 %v3243, 1.0
  %v3714 = vadd.f32 %v3245, 1.0
  %v3715 = vadd.f32 %v3247, 1.0
  %v3716 = vadd.f32 %v3249, 1.0
  %v3717 = vadd.f32 %v3251, 1.0
  %v3718 = vadd.f32 %v3253, 1.0
  %v3719 = vadd.f32 %v3255, 1.0
  %v3720 = vadd.f32 %v3257, 1.0
  %v3721 = vadd.f32 %v3259, 1.0
  %v3722 = vadd.f32 %v3261, 1.0
  %v3723 = vadd.f32 %v3263, 1.0
  %v3724 = vadd.f32 %v3265, 1.0
  %v3725 = vadd.f32 %v3267, 1.0
  %v3726 = vadd.f32 %v3269, 1.0
  %v3727 = vadd.f32 %v3271, 1.0
  %v3728 = vadd.f32 %v3273, 1.0
  %v3729 = vadd.f32 %v3275, 1.0
  %v3730 = vadd.f32 %v3277, 1.0
  %v3731 = vadd.f32 %v3279, 1.0
  %v3732 = vadd.f32 %v3281, 1.0
  %v3733 = vadd.f32 %v3283, 1.0
  %v3734 = vadd.f32 %v3285, 1.0
  %v3735 = vadd.f32 %v3287, 1.0
  %v3736 = vadd.f32 %v3289, 1.0
  %v3737 = vadd.f32 %v3291, 1.0
  %v3738 = vadd.f32 %v3293, 1.0
  %v3739 = vadd.f32 %v3295, 1.0
  %v3740 = vadd.f32 %v3297, 1.0
  %v3741 = vadd.f32 %v3299, 1.0
  %v3742 = vadd.f32 %v3301, 1.0
  %v3743 = vadd.f32 %v3303, 1.0
  %v3744 = vadd.f32 %v3305, 1.0
  %v3745 = vadd.f32 %v3307, 1.0
  %v3746 = vadd.f32 %v3309, 1.0
  %v3747 = vadd.f32 %v3311, 1.0
  %v3748 = vadd.f32 %v3313, 1.0
  %v3749 = vadd.f32 %v3315, 1.0
  %v3750 = vadd.f32 %v3317, 1.0
  %v3751 = vadd.f32 %v3319, 1.0
  %v3752 = vadd.f32 %v3321, 1.0
  %v3753 = vadd.f32 %v3323, 1.0
  %v3754 = vadd.f32 %v3325, 1.0
  %v3755 = vadd.f32 %v3327, 1.0
  %v3756 = vadd.f32 %v3329, 1.0
  %v3757 = vadd.f32 %v3331, 1.0
  %v3758 = vadd.f32 %v3333, 1.0
  %v3759 = vadd.f32 %v3335, 1.0
  %v3760 = vadd.f32 %v3337, 1.0
  %v3761 = vadd.f32 %v3339, 1.0
  %v3762 = vadd.f32 %v3341, 1.0
  %v3763 = vadd.f32 %v3343, 1.0
  %v3764 = vadd.f32 %v3345, 1.0
  %v3765 = vadd.f32 %v3347, 1.0
  %v3766 = vadd.f32 %v3349, 1.0
  %v3767 = vadd.f32 %v3351, 1.0
  %v3768 = vadd.f32 %v3353, 1.0
  %v3769 = vadd.f32 %v3355, 1.0
  %v3770 = vadd.f32 %v3357, 1.0
  %v3771 = vadd.f32 %v3359, 1.0
  %v3772 = vadd.f32 %v3361, 1.0
  %v3773 = vadd.f32 %v3363, 1.0
  %v3774 = vadd.f32 %v3365, 1.0
  %v3775 = vadd.f32 %v3367, 1.0
  %v3776 = vadd.f32 %v3369, 1.0
  %v3777 = vadd.f32 %v3371, 1.0
  %v3778 = vadd.f32 %v3373, 1.0
  %v3779 = vadd.f32 %v3375, 1.0
  %v3780 = vadd.f32 %v3377, 1.0
  %v3781 = vadd.f32 %v3379, 1.0
  %v3782 = vadd.f32 %v3381, 1.0
  %v3783 = vadd.f32 %v3383, 1.0
  %v3784 = vadd.f32 %v3385, 1.0
  %v3785 = vadd.f32 %v3387, 1.0
  %v3786 = vadd.f32 %v3389, 1.0
  %v3787 = vadd.f32 %v3391, 1.0
  %v3788 = vadd.f32 %v3393, 1.0
  %v3789 = vadd.f32 %v3395, 1.0
  %v3790 = vadd.f32 %v3397, 1.0
  %v3791 = vadd.f32 %v3399, 1.0
  %v3792 = vadd.f32 %v3401, 1.0
  %v3793 = vadd.f32 %v3403, 1.0
  %v3794 = vadd.f32 %v3405, 1.0
  %v3795 = vadd.f32 %v3407, 1.0
  %v3796 = vadd.f32 %v3409, 1.0
  %v3797 = vadd.f32 %v3411, 1.0
  %v3798 = vadd.f32 %v3413, 1.0
  %v3799 = vadd.f32 %v3415, 1.0
  %v3800 = vadd.f32 %v3417, 1.0
  %v3801 = vadd.f32 %v3419, 1.0
  %v3802 = vadd.f32 %v3421, 1.0
  %v3803 = vadd.f32 %v3423, 1.0
  %v3804 = vadd.f32 %v3425, 1.0
  %v3805 = vadd.f32 %v3427, 1.0
  %v3806 = vadd.f32 %v3429, 1.0
  %v3807 = vadd.f32 %v3431, 1.0
  %v3808 = vadd.f32 %v3433, 1.0
  %v3809 = vadd.f32 %v3435, 1.0
  %v3810 = vadd.f32 %v3437, 1.0
  %v3811 = vadd.f32 %v3439, 1.0
  %v3812 = vadd.f32 %v3441, 1.0
  %v3813 = vadd.f32 %v3443, 1.0
  %v3814 = vadd.f32 %v3445, 1.0
  %v3815 = vadd.f32 %v3447, 1.0
  %v3816 = vadd.f32 %v3449, 1.0
  %v3817 = vadd.f32 %v3451, 1.0
  %v3818 = vadd.f32 %v3453, 1.0
  %v3819 = vadd.f32 %v3455, 1.0
  %v3820 = vadd.f32 %v3457, 1.0
  %v3821 = vadd.f32 %v3459, 1.0
  %v3822 = vadd.f32 %v3461, 1.0
  %v3823 = vadd.f32 %v3463, 1.0
  %v3824 = vadd.f32 %v3465, 1.0
  %v3825 = vadd.f32 %v3467, 1.0
  %v3826 = vadd.f32 %v3469, 1.0
  %v3827 = vadd.f32 %v3471, 1.0
  %v3828 = vadd.f32 %v3473, 1.0
  %v3829 = vadd.f32 %v3475, 1.0
  %v3830 = vadd.f32 %v3477, 1.0
  %v3831 = vadd.f32 %v3479, 1.0
  %v3832 = vadd.f32 %v3481, 1.0
  %v3833 = vadd.f32 %v3483, 1.0
  %v3834 = vadd.f32 %v3485, 1.0
  %v3835 = vadd.f32 %v3487, 1.0
  %v3836 = vadd.f32 %v3489, 1.0
  %v3837 = vadd.f32 %v3491, 1.0
  %v3838 = vadd.f32 %v3493, 1.0
  %v3839 = vadd.f32 %v3495, 1.0
  %v3840 = vadd.f32 %v3497, 1.0
  %v3841 = vadd.f32 %v3499, 1.0
  %v3842 = vadd.f32 %v3501, 1.0
  %v3843 = vadd.f32 %v3503, 1.0
  %v3844 = vadd.f32 %v3505, 1.0
  %v3845 = vadd.f32 %v3507, 1.0
  %v3846 = vadd.f32 %v3509, 1.0
  %v3847 = vadd.f32 %v3511, 1.0
  %v3848 = vadd.f32 %v3513, 1.0
  %v3849 = vadd.f32 %v3515, 1.0
  %v3850 = vadd.f32 %v3517, 1.0
  %v3851 = vadd.f32 %v3519, 1.0
  %v3852 = vadd.f32 %v3521, 1.0
  %v3853 = vadd.f32 %v3523, 1.0
  %v3854 = vadd.f32 %v3525, 1.0
  %v3855 = vadd.f32 %v3527, 1.0
  %v3856 = vadd.f32 %v3529, 1.0
  %v3857 = vadd.f32 %v3531, 1.0
  %v3858 = vadd.f32 %v3533, 1.0
  %v3859 = vadd.f32 %v3535, 1.0
  %v3860 = vadd.f32 %v3537, 1.0
  %v3861 = vadd.f32 %v3539, 1.0
  %v3862 = vadd.f32 %v3541, 1.0
  %v3863 = vadd.f32 %v3543, 1.0
  %v3864 = vadd.f32 %v3545, 1.0
  %v3865 = vadd.f32 %v3547, 1.0
  %v3866 = vadd.f32 %v3549, 1.0
  %v3867 = vadd.f32 %v3551, 1.0
  %v3868 = vadd.f32 %v3553, 1.0
  %v3869 = vadd.f32 %v3555, 1.0
  %v3870 = vadd.f32 %v3557, 1.0
  %v3871 = vadd.f32 %v3559, 1.0
  %v3872 = vadd.f32 %v3561, 1.0
  %v3873 = vadd.f32 %v3563, 1.0
  %v3874 = vadd.f32 %v3565, 1.0
  %v3875 = vadd.f32 %v3567, 1.0
  %v3876 = vadd.f32 %v3569, 1.0
  %v3877 = vadd.f32 %v3571, 1.0
  %v3878 = vadd.f32 %v3573, 1.0
  %v3879 = vadd.f32 %v3575, 1.0
  %v3880 = vadd.f32 %v3577, 1.0
  %v3881 = vadd.f32 %v3579, 1.0
  %v3882 = vadd.f32 %v3581, 1.0
  %v3883 = vadd.f32 %v3583, 1.0
  %v3884 = vadd.f32 %v3585, 1.0
  %v3885 = vadd.f32 %v3587, 1.0
  %v3886 = vadd.f32 %v3589, 1.0
  %v3887 = vadd.f32 %v3591, 1.0
  %v3888 = vadd.f32 %v3593, 1.0
  %v3889 = vadd.f32 %v3595, 1.0
  %v3890 = vadd.f32 %v3597, 1.0
  %v3891 = vadd.f32 %v3599, 1.0
  %v3892 = vadd.f32 %v3601, 1.0
  %v3893 = vadd.f32 %v3603, 1.0
  %v3894 = vadd.f32 %v3605, 1.0
  %v3895 = vadd.f32 %v3607, 1.0
  %v3896 = vadd.f32 %v3609, 1.0
  %v3897 = vadd.f32 %v3611, 1.0
  %v3898 = vadd.f32 %v3613, 1.0
  %v3899 = vadd.f32 %v3615, 1.0
  %v3900 = vadd.f32 %v3617, 1.0
  %v3901 = vadd.f32 %v3619, 1.0
  %v3902 = vadd.f32 %v3621, 1.0
  %v3903 = vadd.f32 %v3623, 1.0
  %v3904 = vadd.f32 %v3625, 1.0
  %v3905 = vadd.f32 %v3627, 1.0
  %v3906 = vadd.f32 %v3629, 1.0
  %v3907 = vadd.f32 %v3631, 1.0
  %v3908 = vadd.f32 %v3633, 1.0
  %v3909 = vadd.f32 %v3635, 1.0
  %v3910 = vadd.f32 %v3637, 1.0
  %v3911 = vadd.f32 %v3639, 1.0
  %v3912 = vadd.f32 %v3641, 1.0
  %v3913 = vadd.f32 %v3643, 1.0
  %v3914 = vadd.f32 %v3645, 1.0
  %v3915 = vadd.f32 %v3647, 1.0
  %v3916 = vadd.f32 %v3649, 1.0
  %v3917 = vadd.f32 %v3651, 1.0
  %v3918 = vadd.f32 %v3653, 1.0
  %v3919 = vadd.f32 %v3655, 1.0
  %v3920 = vadd.f32 %v3657, 1.0
  %v3921 = vadd.f32 %v3659, 1.0
  %v3922 = vadd.f32 %v3661, 1.0
  %v3923 = vadd.f32 %v3663, 1.0
  %v3924 = vadd.f32 %v3665, 1.0
  %v3925 = vadd.f32 %v3667, 1.0
  %v3926 = vadd.f32 %v3669, 1.0
  %v3927 = vadd.f32 %v3671, 1.0
  %v3928 = vrcp.pop %v3672
  %v3929 = vmul.f32 1.0, %v3928
  %v3930 = vrcp.pop %v3673
  %v3931 = vmul.f32 1.0, %v3930
  %v3932 = vrcp.pop %v3674
  %v3933 = vmul.f32 1.0, %v3932
  %v3934 = vrcp.pop %v3675
  %v3935 = vmul.f32 1.0, %v3934
  %v3936 = vrcp.pop %v3676
  %v3937 = vmul.f32 1.0, %v3936
  %v3938 = vrcp.pop %v3677
  %v3939 = vmul.f32 1.0, %v3938
  %v3940 = vrcp.pop %v3678
  %v3941 = vmul.f32 1.0, %v3940
  %v3942 = vrcp.pop %v3679
  %v3943 = vmul.f32 1.0, %v3942
  %v3944 = vrcp.pop %v3680
  %v3945 = vmul.f32 1.0, %v3944
  %v3946 = vrcp.pop %v3681
  %v3947 = vmul.f32 1.0, %v3946
  %v3948 = vrcp.pop %v3682
  %v3949 = vmul.f32 1.0, %v3948
  %v3950 = vrcp.pop %v3683
  %v3951 = vmul.f32 1.0, %v3950
  %v3952 = vrcp.pop %v3684
  %v3953 = vmul.f32 1.0, %v3952
  %v3954 = vrcp.pop %v3685
  %v3955 = vmul.f32 1.0, %v3954
  %v3956 = vrcp.pop %v3686
  %v3957 = vmul.f32 1.0, %v3956
  %v3958 = vrcp.pop %v3687
  %v3959 = vmul.f32 1.0, %v3958
  %v3960 = vrcp.pop %v3688
  %v3961 = vmul.f32 1.0, %v3960
  %v3962 = vrcp.pop %v3689
  %v3963 = vmul.f32 1.0, %v3962
  %v3964 = vrcp.pop %v3690
  %v3965 = vmul.f32 1.0, %v3964
  %v3966 = vrcp.pop %v3691
  %v3967 = vmul.f32 1.0, %v3966
  %v3968 = vrcp.pop %v3692
  %v3969 = vmul.f32 1.0, %v3968
  %v3970 = vrcp.pop %v3693
  %v3971 = vmul.f32 1.0, %v3970
  %v3972 = vrcp.pop %v3694
  %v3973 = vmul.f32 1.0, %v3972
  %v3974 = vrcp.pop %v3695
  %v3975 = vmul.f32 1.0, %v3974
  %v3976 = vrcp.pop %v3696
  %v3977 = vmul.f32 1.0, %v3976
  %v3978 = vrcp.pop %v3697
  %v3979 = vmul.f32 1.0, %v3978
  %v3980 = vrcp.pop %v3698
  %v3981 = vmul.f32 1.0, %v3980
  %v3982 = vrcp.pop %v3699
  %v3983 = vmul.f32 1.0, %v3982
  %v3984 = vrcp.pop %v3700
  %v3985 = vmul.f32 1.0, %v3984
  %v3986 = vrcp.pop %v3701
  %v3987 = vmul.f32 1.0, %v3986
  %v3988 = vrcp.pop %v3702
  %v3989 = vmul.f32 1.0, %v3988
  %v3990 = vrcp.pop %v3703
  %v3991 = vmul.f32 1.0, %v3990
  %v3992 = vrcp.pop %v3704
  %v3993 = vmul.f32 1.0, %v3992
  %v3994 = vrcp.pop %v3705
  %v3995 = vmul.f32 1.0, %v3994
  %v3996 = vrcp.pop %v3706
  %v3997 = vmul.f32 1.0, %v3996
  %v3998 = vrcp.pop %v3707
  %v3999 = vmul.f32 1.0, %v3998
  %v4000 = vrcp.pop %v3708
  %v4001 = vmul.f32 1.0, %v4000
  %v4002 = vrcp.pop %v3709
  %v4003 = vmul.f32 1.0, %v4002
  %v4004 = vrcp.pop %v3710
  %v4005 = vmul.f32 1.0, %v4004
  %v4006 = vrcp.pop %v3711
  %v4007 = vmul.f32 1.0, %v4006
  %v4008 = vrcp.pop %v3712
  %v4009 = vmul.f32 1.0, %v4008
  %v4010 = vrcp.pop %v3713
  %v4011 = vmul.f32 1.0, %v4010
  %v4012 = vrcp.pop %v3714
  %v4013 = vmul.f32 1.0, %v4012
  %v4014 = vrcp.pop %v3715
  %v4015 = vmul.f32 1.0, %v4014
  %v4016 = vrcp.pop %v3716
  %v4017 = vmul.f32 1.0, %v4016
  %v4018 = vrcp.pop %v3717
  %v4019 = vmul.f32 1.0, %v4018
  %v4020 = vrcp.pop %v3718
  %v4021 = vmul.f32 1.0, %v4020
  %v4022 = vrcp.pop %v3719
  %v4023 = vmul.f32 1.0, %v4022
  %v4024 = vrcp.pop %v3720
  %v4025 = vmul.f32 1.0, %v4024
  %v4026 = vrcp.pop %v3721
  %v4027 = vmul.f32 1.0, %v4026
  %v4028 = vrcp.pop %v3722
  %v4029 = vmul.f32 1.0, %v4028
  %v4030 = vrcp.pop %v3723
  %v4031 = vmul.f32 1.0, %v4030
  %v4032 = vrcp.pop %v3724
  %v4033 = vmul.f32 1.0, %v4032
  %v4034 = vrcp.pop %v3725
  %v4035 = vmul.f32 1.0, %v4034
  %v4036 = vrcp.pop %v3726
  %v4037 = vmul.f32 1.0, %v4036
  %v4038 = vrcp.pop %v3727
  %v4039 = vmul.f32 1.0, %v4038
  %v4040 = vrcp.pop %v3728
  %v4041 = vmul.f32 1.0, %v4040
  %v4042 = vrcp.pop %v3729
  %v4043 = vmul.f32 1.0, %v4042
  %v4044 = vrcp.pop %v3730
  %v4045 = vmul.f32 1.0, %v4044
  %v4046 = vrcp.pop %v3731
  %v4047 = vmul.f32 1.0, %v4046
  %v4048 = vrcp.pop %v3732
  %v4049 = vmul.f32 1.0, %v4048
  %v4050 = vrcp.pop %v3733
  %v4051 = vmul.f32 1.0, %v4050
  %v4052 = vrcp.pop %v3734
  %v4053 = vmul.f32 1.0, %v4052
  %v4054 = vrcp.pop %v3735
  %v4055 = vmul.f32 1.0, %v4054
  %v4056 = vrcp.pop %v3736
  %v4057 = vmul.f32 1.0, %v4056
  %v4058 = vrcp.pop %v3737
  %v4059 = vmul.f32 1.0, %v4058
  %v4060 = vrcp.pop %v3738
  %v4061 = vmul.f32 1.0, %v4060
  %v4062 = vrcp.pop %v3739
  %v4063 = vmul.f32 1.0, %v4062
  %v4064 = vrcp.pop %v3740
  %v4065 = vmul.f32 1.0, %v4064
  %v4066 = vrcp.pop %v3741
  %v4067 = vmul.f32 1.0, %v4066
  %v4068 = vrcp.pop %v3742
  %v4069 = vmul.f32 1.0, %v4068
  %v4070 = vrcp.pop %v3743
  %v4071 = vmul.f32 1.0, %v4070
  %v4072 = vrcp.pop %v3744
  %v4073 = vmul.f32 1.0, %v4072
  %v4074 = vrcp.pop %v3745
  %v4075 = vmul.f32 1.0, %v4074
  %v4076 = vrcp.pop %v3746
  %v4077 = vmul.f32 1.0, %v4076
  %v4078 = vrcp.pop %v3747
  %v4079 = vmul.f32 1.0, %v4078
  %v4080 = vrcp.pop %v3748
  %v4081 = vmul.f32 1.0, %v4080
  %v4082 = vrcp.pop %v3749
  %v4083 = vmul.f32 1.0, %v4082
  %v4084 = vrcp.pop %v3750
  %v4085 = vmul.f32 1.0, %v4084
  %v4086 = vrcp.pop %v3751
  %v4087 = vmul.f32 1.0, %v4086
  %v4088 = vrcp.pop %v3752
  %v4089 = vmul.f32 1.0, %v4088
  %v4090 = vrcp.pop %v3753
  %v4091 = vmul.f32 1.0, %v4090
  %v4092 = vrcp.pop %v3754
  %v4093 = vmul.f32 1.0, %v4092
  %v4094 = vrcp.pop %v3755
  %v4095 = vmul.f32 1.0, %v4094
  %v4096 = vrcp.pop %v3756
  %v4097 = vmul.f32 1.0, %v4096
  %v4098 = vrcp.pop %v3757
  %v4099 = vmul.f32 1.0, %v4098
  %v4100 = vrcp.pop %v3758
  %v4101 = vmul.f32 1.0, %v4100
  %v4102 = vrcp.pop %v3759
  %v4103 = vmul.f32 1.0, %v4102
  %v4104 = vrcp.pop %v3760
  %v4105 = vmul.f32 1.0, %v4104
  %v4106 = vrcp.pop %v3761
  %v4107 = vmul.f32 1.0, %v4106
  %v4108 = vrcp.pop %v3762
  %v4109 = vmul.f32 1.0, %v4108
  %v4110 = vrcp.pop %v3763
  %v4111 = vmul.f32 1.0, %v4110
  %v4112 = vrcp.pop %v3764
  %v4113 = vmul.f32 1.0, %v4112
  %v4114 = vrcp.pop %v3765
  %v4115 = vmul.f32 1.0, %v4114
  %v4116 = vrcp.pop %v3766
  %v4117 = vmul.f32 1.0, %v4116
  %v4118 = vrcp.pop %v3767
  %v4119 = vmul.f32 1.0, %v4118
  %v4120 = vrcp.pop %v3768
  %v4121 = vmul.f32 1.0, %v4120
  %v4122 = vrcp.pop %v3769
  %v4123 = vmul.f32 1.0, %v4122
  %v4124 = vrcp.pop %v3770
  %v4125 = vmul.f32 1.0, %v4124
  %v4126 = vrcp.pop %v3771
  %v4127 = vmul.f32 1.0, %v4126
  %v4128 = vrcp.pop %v3772
  %v4129 = vmul.f32 1.0, %v4128
  %v4130 = vrcp.pop %v3773
  %v4131 = vmul.f32 1.0, %v4130
  %v4132 = vrcp.pop %v3774
  %v4133 = vmul.f32 1.0, %v4132
  %v4134 = vrcp.pop %v3775
  %v4135 = vmul.f32 1.0, %v4134
  %v4136 = vrcp.pop %v3776
  %v4137 = vmul.f32 1.0, %v4136
  %v4138 = vrcp.pop %v3777
  %v4139 = vmul.f32 1.0, %v4138
  %v4140 = vrcp.pop %v3778
  %v4141 = vmul.f32 1.0, %v4140
  %v4142 = vrcp.pop %v3779
  %v4143 = vmul.f32 1.0, %v4142
  %v4144 = vrcp.pop %v3780
  %v4145 = vmul.f32 1.0, %v4144
  %v4146 = vrcp.pop %v3781
  %v4147 = vmul.f32 1.0, %v4146
  %v4148 = vrcp.pop %v3782
  %v4149 = vmul.f32 1.0, %v4148
  %v4150 = vrcp.pop %v3783
  %v4151 = vmul.f32 1.0, %v4150
  %v4152 = vrcp.pop %v3784
  %v4153 = vmul.f32 1.0, %v4152
  %v4154 = vrcp.pop %v3785
  %v4155 = vmul.f32 1.0, %v4154
  %v4156 = vrcp.pop %v3786
  %v4157 = vmul.f32 1.0, %v4156
  %v4158 = vrcp.pop %v3787
  %v4159 = vmul.f32 1.0, %v4158
  %v4160 = vrcp.pop %v3788
  %v4161 = vmul.f32 1.0, %v4160
  %v4162 = vrcp.pop %v3789
  %v4163 = vmul.f32 1.0, %v4162
  %v4164 = vrcp.pop %v3790
  %v4165 = vmul.f32 1.0, %v4164
  %v4166 = vrcp.pop %v3791
  %v4167 = vmul.f32 1.0, %v4166
  %v4168 = vrcp.pop %v3792
  %v4169 = vmul.f32 1.0, %v4168
  %v4170 = vrcp.pop %v3793
  %v4171 = vmul.f32 1.0, %v4170
  %v4172 = vrcp.pop %v3794
  %v4173 = vmul.f32 1.0, %v4172
  %v4174 = vrcp.pop %v3795
  %v4175 = vmul.f32 1.0, %v4174
  %v4176 = vrcp.pop %v3796
  %v4177 = vmul.f32 1.0, %v4176
  %v4178 = vrcp.pop %v3797
  %v4179 = vmul.f32 1.0, %v4178
  %v4180 = vrcp.pop %v3798
  %v4181 = vmul.f32 1.0, %v4180
  %v4182 = vrcp.pop %v3799
  %v4183 = vmul.f32 1.0, %v4182
  %v4184 = vrcp.pop %v3800
  %v4185 = vmul.f32 1.0, %v4184
  %v4186 = vrcp.pop %v3801
  %v4187 = vmul.f32 1.0, %v4186
  %v4188 = vrcp.pop %v3802
  %v4189 = vmul.f32 1.0, %v4188
  %v4190 = vrcp.pop %v3803
  %v4191 = vmul.f32 1.0, %v4190
  %v4192 = vrcp.pop %v3804
  %v4193 = vmul.f32 1.0, %v4192
  %v4194 = vrcp.pop %v3805
  %v4195 = vmul.f32 1.0, %v4194
  %v4196 = vrcp.pop %v3806
  %v4197 = vmul.f32 1.0, %v4196
  %v4198 = vrcp.pop %v3807
  %v4199 = vmul.f32 1.0, %v4198
  %v4200 = vrcp.pop %v3808
  %v4201 = vmul.f32 1.0, %v4200
  %v4202 = vrcp.pop %v3809
  %v4203 = vmul.f32 1.0, %v4202
  %v4204 = vrcp.pop %v3810
  %v4205 = vmul.f32 1.0, %v4204
  %v4206 = vrcp.pop %v3811
  %v4207 = vmul.f32 1.0, %v4206
  %v4208 = vrcp.pop %v3812
  %v4209 = vmul.f32 1.0, %v4208
  %v4210 = vrcp.pop %v3813
  %v4211 = vmul.f32 1.0, %v4210
  %v4212 = vrcp.pop %v3814
  %v4213 = vmul.f32 1.0, %v4212
  %v4214 = vrcp.pop %v3815
  %v4215 = vmul.f32 1.0, %v4214
  %v4216 = vrcp.pop %v3816
  %v4217 = vmul.f32 1.0, %v4216
  %v4218 = vrcp.pop %v3817
  %v4219 = vmul.f32 1.0, %v4218
  %v4220 = vrcp.pop %v3818
  %v4221 = vmul.f32 1.0, %v4220
  %v4222 = vrcp.pop %v3819
  %v4223 = vmul.f32 1.0, %v4222
  %v4224 = vrcp.pop %v3820
  %v4225 = vmul.f32 1.0, %v4224
  %v4226 = vrcp.pop %v3821
  %v4227 = vmul.f32 1.0, %v4226
  %v4228 = vrcp.pop %v3822
  %v4229 = vmul.f32 1.0, %v4228
  %v4230 = vrcp.pop %v3823
  %v4231 = vmul.f32 1.0, %v4230
  %v4232 = vrcp.pop %v3824
  %v4233 = vmul.f32 1.0, %v4232
  %v4234 = vrcp.pop %v3825
  %v4235 = vmul.f32 1.0, %v4234
  %v4236 = vrcp.pop %v3826
  %v4237 = vmul.f32 1.0, %v4236
  %v4238 = vrcp.pop %v3827
  %v4239 = vmul.f32 1.0, %v4238
  %v4240 = vrcp.pop %v3828
  %v4241 = vmul.f32 1.0, %v4240
  %v4242 = vrcp.pop %v3829
  %v4243 = vmul.f32 1.0, %v4242
  %v4244 = vrcp.pop %v3830
  %v4245 = vmul.f32 1.0, %v4244
  %v4246 = vrcp.pop %v3831
  %v4247 = vmul.f32 1.0, %v4246
  %v4248 = vrcp.pop %v3832
  %v4249 = vmul.f32 1.0, %v4248
  %v4250 = vrcp.pop %v3833
  %v4251 = vmul.f32 1.0, %v4250
  %v4252 = vrcp.pop %v3834
  %v4253 = vmul.f32 1.0, %v4252
  %v4254 = vrcp.pop %v3835
  %v4255 = vmul.f32 1.0, %v4254
  %v4256 = vrcp.pop %v3836
  %v4257 = vmul.f32 1.0, %v4256
  %v4258 = vrcp.pop %v3837
  %v4259 = vmul.f32 1.0, %v4258
  %v4260 = vrcp.pop %v3838
  %v4261 = vmul.f32 1.0, %v4260
  %v4262 = vrcp.pop %v3839
  %v4263 = vmul.f32 1.0, %v4262
  %v4264 = vrcp.pop %v3840
  %v4265 = vmul.f32 1.0, %v4264
  %v4266 = vrcp.pop %v3841
  %v4267 = vmul.f32 1.0, %v4266
  %v4268 = vrcp.pop %v3842
  %v4269 = vmul.f32 1.0, %v4268
  %v4270 = vrcp.pop %v3843
  %v4271 = vmul.f32 1.0, %v4270
  %v4272 = vrcp.pop %v3844
  %v4273 = vmul.f32 1.0, %v4272
  %v4274 = vrcp.pop %v3845
  %v4275 = vmul.f32 1.0, %v4274
  %v4276 = vrcp.pop %v3846
  %v4277 = vmul.f32 1.0, %v4276
  %v4278 = vrcp.pop %v3847
  %v4279 = vmul.f32 1.0, %v4278
  %v4280 = vrcp.pop %v3848
  %v4281 = vmul.f32 1.0, %v4280
  %v4282 = vrcp.pop %v3849
  %v4283 = vmul.f32 1.0, %v4282
  %v4284 = vrcp.pop %v3850
  %v4285 = vmul.f32 1.0, %v4284
  %v4286 = vrcp.pop %v3851
  %v4287 = vmul.f32 1.0, %v4286
  %v4288 = vrcp.pop %v3852
  %v4289 = vmul.f32 1.0, %v4288
  %v4290 = vrcp.pop %v3853
  %v4291 = vmul.f32 1.0, %v4290
  %v4292 = vrcp.pop %v3854
  %v4293 = vmul.f32 1.0, %v4292
  %v4294 = vrcp.pop %v3855
  %v4295 = vmul.f32 1.0, %v4294
  %v4296 = vrcp.pop %v3856
  %v4297 = vmul.f32 1.0, %v4296
  %v4298 = vrcp.pop %v3857
  %v4299 = vmul.f32 1.0, %v4298
  %v4300 = vrcp.pop %v3858
  %v4301 = vmul.f32 1.0, %v4300
  %v4302 = vrcp.pop %v3859
  %v4303 = vmul.f32 1.0, %v4302
  %v4304 = vrcp.pop %v3860
  %v4305 = vmul.f32 1.0, %v4304
  %v4306 = vrcp.pop %v3861
  %v4307 = vmul.f32 1.0, %v4306
  %v4308 = vrcp.pop %v3862
  %v4309 = vmul.f32 1.0, %v4308
  %v4310 = vrcp.pop %v3863
  %v4311 = vmul.f32 1.0, %v4310
  %v4312 = vrcp.pop %v3864
  %v4313 = vmul.f32 1.0, %v4312
  %v4314 = vrcp.pop %v3865
  %v4315 = vmul.f32 1.0, %v4314
  %v4316 = vrcp.pop %v3866
  %v4317 = vmul.f32 1.0, %v4316
  %v4318 = vrcp.pop %v3867
  %v4319 = vmul.f32 1.0, %v4318
  %v4320 = vrcp.pop %v3868
  %v4321 = vmul.f32 1.0, %v4320
  %v4322 = vrcp.pop %v3869
  %v4323 = vmul.f32 1.0, %v4322
  %v4324 = vrcp.pop %v3870
  %v4325 = vmul.f32 1.0, %v4324
  %v4326 = vrcp.pop %v3871
  %v4327 = vmul.f32 1.0, %v4326
  %v4328 = vrcp.pop %v3872
  %v4329 = vmul.f32 1.0, %v4328
  %v4330 = vrcp.pop %v3873
  %v4331 = vmul.f32 1.0, %v4330
  %v4332 = vrcp.pop %v3874
  %v4333 = vmul.f32 1.0, %v4332
  %v4334 = vrcp.pop %v3875
  %v4335 = vmul.f32 1.0, %v4334
  %v4336 = vrcp.pop %v3876
  %v4337 = vmul.f32 1.0, %v4336
  %v4338 = vrcp.pop %v3877
  %v4339 = vmul.f32 1.0, %v4338
  %v4340 = vrcp.pop %v3878
  %v4341 = vmul.f32 1.0, %v4340
  %v4342 = vrcp.pop %v3879
  %v4343 = vmul.f32 1.0, %v4342
  %v4344 = vrcp.pop %v3880
  %v4345 = vmul.f32 1.0, %v4344
  %v4346 = vrcp.pop %v3881
  %v4347 = vmul.f32 1.0, %v4346
  %v4348 = vrcp.pop %v3882
  %v4349 = vmul.f32 1.0, %v4348
  %v4350 = vrcp.pop %v3883
  %v4351 = vmul.f32 1.0, %v4350
  %v4352 = vrcp.pop %v3884
  %v4353 = vmul.f32 1.0, %v4352
  %v4354 = vrcp.pop %v3885
  %v4355 = vmul.f32 1.0, %v4354
  %v4356 = vrcp.pop %v3886
  %v4357 = vmul.f32 1.0, %v4356
  %v4358 = vrcp.pop %v3887
  %v4359 = vmul.f32 1.0, %v4358
  %v4360 = vrcp.pop %v3888
  %v4361 = vmul.f32 1.0, %v4360
  %v4362 = vrcp.pop %v3889
  %v4363 = vmul.f32 1.0, %v4362
  %v4364 = vrcp.pop %v3890
  %v4365 = vmul.f32 1.0, %v4364
  %v4366 = vrcp.pop %v3891
  %v4367 = vmul.f32 1.0, %v4366
  %v4368 = vrcp.pop %v3892
  %v4369 = vmul.f32 1.0, %v4368
  %v4370 = vrcp.pop %v3893
  %v4371 = vmul.f32 1.0, %v4370
  %v4372 = vrcp.pop %v3894
  %v4373 = vmul.f32 1.0, %v4372
  %v4374 = vrcp.pop %v3895
  %v4375 = vmul.f32 1.0, %v4374
  %v4376 = vrcp.pop %v3896
  %v4377 = vmul.f32 1.0, %v4376
  %v4378 = vrcp.pop %v3897
  %v4379 = vmul.f32 1.0, %v4378
  %v4380 = vrcp.pop %v3898
  %v4381 = vmul.f32 1.0, %v4380
  %v4382 = vrcp.pop %v3899
  %v4383 = vmul.f32 1.0, %v4382
  %v4384 = vrcp.pop %v3900
  %v4385 = vmul.f32 1.0, %v4384
  %v4386 = vrcp.pop %v3901
  %v4387 = vmul.f32 1.0, %v4386
  %v4388 = vrcp.pop %v3902
  %v4389 = vmul.f32 1.0, %v4388
  %v4390 = vrcp.pop %v3903
  %v4391 = vmul.f32 1.0, %v4390
  %v4392 = vrcp.pop %v3904
  %v4393 = vmul.f32 1.0, %v4392
  %v4394 = vrcp.pop %v3905
  %v4395 = vmul.f32 1.0, %v4394
  %v4396 = vrcp.pop %v3906
  %v4397 = vmul.f32 1.0, %v4396
  %v4398 = vrcp.pop %v3907
  %v4399 = vmul.f32 1.0, %v4398
  %v4400 = vrcp.pop %v3908
  %v4401 = vmul.f32 1.0, %v4400
  %v4402 = vrcp.pop %v3909
  %v4403 = vmul.f32 1.0, %v4402
  %v4404 = vrcp.pop %v3910
  %v4405 = vmul.f32 1.0, %v4404
  %v4406 = vrcp.pop %v3911
  %v4407 = vmul.f32 1.0, %v4406
  %v4408 = vrcp.pop %v3912
  %v4409 = vmul.f32 1.0, %v4408
  %v4410 = vrcp.pop %v3913
  %v4411 = vmul.f32 1.0, %v4410
  %v4412 = vrcp.pop %v3914
  %v4413 = vmul.f32 1.0, %v4412
  %v4414 = vrcp.pop %v3915
  %v4415 = vmul.f32 1.0, %v4414
  %v4416 = vrcp.pop %v3916
  %v4417 = vmul.f32 1.0, %v4416
  %v4418 = vrcp.pop %v3917
  %v4419 = vmul.f32 1.0, %v4418
  %v4420 = vrcp.pop %v3918
  %v4421 = vmul.f32 1.0, %v4420
  %v4422 = vrcp.pop %v3919
  %v4423 = vmul.f32 1.0, %v4422
  %v4424 = vrcp.pop %v3920
  %v4425 = vmul.f32 1.0, %v4424
  %v4426 = vrcp.pop %v3921
  %v4427 = vmul.f32 1.0, %v4426
  %v4428 = vrcp.pop %v3922
  %v4429 = vmul.f32 1.0, %v4428
  %v4430 = vrcp.pop %v3923
  %v4431 = vmul.f32 1.0, %v4430
  %v4432 = vrcp.pop %v3924
  %v4433 = vmul.f32 1.0, %v4432
  %v4434 = vrcp.pop %v3925
  %v4435 = vmul.f32 1.0, %v4434
  %v4436 = vrcp.pop %v3926
  %v4437 = vmul.f32 1.0, %v4436
  %v4438 = vrcp.pop %v3927
  %v4439 = vmul.f32 1.0, %v4438
  %v4440 = vmul.f32 %v2648, %v3929
  %v4441 = vmul.f32 %v2649, %v3931
  %v4442 = vmul.f32 %v2650, %v3933
  %v4443 = vmul.f32 %v2651, %v3935
  %v4444 = vmul.f32 %v2652, %v3937
  %v4445 = vmul.f32 %v2653, %v3939
  %v4446 = vmul.f32 %v2654, %v3941
  %v4447 = vmul.f32 %v2655, %v3943
  %v4448 = vmul.f32 %v2656, %v3945
  %v4449 = vmul.f32 %v2657, %v3947
  %v4450 = vmul.f32 %v2658, %v3949
  %v4451 = vmul.f32 %v2659, %v3951
  %v4452 = vmul.f32 %v2660, %v3953
  %v4453 = vmul.f32 %v2661, %v3955
  %v4454 = vmul.f32 %v2662, %v3957
  %v4455 = vmul.f32 %v2663, %v3959
  %v4456 = vmul.f32 %v2664, %v3961
  %v4457 = vmul.f32 %v2665, %v3963
  %v4458 = vmul.f32 %v2666, %v3965
  %v4459 = vmul.f32 %v2667, %v3967
  %v4460 = vmul.f32 %v2668, %v3969
  %v4461 = vmul.f32 %v2669, %v3971
  %v4462 = vmul.f32 %v2670, %v3973
  %v4463 = vmul.f32 %v2671, %v3975
  %v4464 = vmul.f32 %v2672, %v3977
  %v4465 = vmul.f32 %v2673, %v3979
  %v4466 = vmul.f32 %v2674, %v3981
  %v4467 = vmul.f32 %v2675, %v3983
  %v4468 = vmul.f32 %v2676, %v3985
  %v4469 = vmul.f32 %v2677, %v3987
  %v4470 = vmul.f32 %v2678, %v3989
  %v4471 = vmul.f32 %v2679, %v3991
  %v4472 = vmul.f32 %v2680, %v3993
  %v4473 = vmul.f32 %v2681, %v3995
  %v4474 = vmul.f32 %v2682, %v3997
  %v4475 = vmul.f32 %v2683, %v3999
  %v4476 = vmul.f32 %v2684, %v4001
  %v4477 = vmul.f32 %v2685, %v4003
  %v4478 = vmul.f32 %v2686, %v4005
  %v4479 = vmul.f32 %v2687, %v4007
  %v4480 = vmul.f32 %v2688, %v4009
  %v4481 = vmul.f32 %v2689, %v4011
  %v4482 = vmul.f32 %v2690, %v4013
  %v4483 = vmul.f32 %v2691, %v4015
  %v4484 = vmul.f32 %v2692, %v4017
  %v4485 = vmul.f32 %v2693, %v4019
  %v4486 = vmul.f32 %v2694, %v4021
  %v4487 = vmul.f32 %v2695, %v4023
  %v4488 = vmul.f32 %v2696, %v4025
  %v4489 = vmul.f32 %v2697, %v4027
  %v4490 = vmul.f32 %v2698, %v4029
  %v4491 = vmul.f32 %v2699, %v4031
  %v4492 = vmul.f32 %v2700, %v4033
  %v4493 = vmul.f32 %v2701, %v4035
  %v4494 = vmul.f32 %v2702, %v4037
  %v4495 = vmul.f32 %v2703, %v4039
  %v4496 = vmul.f32 %v2704, %v4041
  %v4497 = vmul.f32 %v2705, %v4043
  %v4498 = vmul.f32 %v2706, %v4045
  %v4499 = vmul.f32 %v2707, %v4047
  %v4500 = vmul.f32 %v2708, %v4049
  %v4501 = vmul.f32 %v2709, %v4051
  %v4502 = vmul.f32 %v2710, %v4053
  %v4503 = vmul.f32 %v2711, %v4055
  %v4504 = vmul.f32 %v2712, %v4057
  %v4505 = vmul.f32 %v2713, %v4059
  %v4506 = vmul.f32 %v2714, %v4061
  %v4507 = vmul.f32 %v2715, %v4063
  %v4508 = vmul.f32 %v2716, %v4065
  %v4509 = vmul.f32 %v2717, %v4067
  %v4510 = vmul.f32 %v2718, %v4069
  %v4511 = vmul.f32 %v2719, %v4071
  %v4512 = vmul.f32 %v2720, %v4073
  %v4513 = vmul.f32 %v2721, %v4075
  %v4514 = vmul.f32 %v2722, %v4077
  %v4515 = vmul.f32 %v2723, %v4079
  %v4516 = vmul.f32 %v2724, %v4081
  %v4517 = vmul.f32 %v2725, %v4083
  %v4518 = vmul.f32 %v2726, %v4085
  %v4519 = vmul.f32 %v2727, %v4087
  %v4520 = vmul.f32 %v2728, %v4089
  %v4521 = vmul.f32 %v2729, %v4091
  %v4522 = vmul.f32 %v2730, %v4093
  %v4523 = vmul.f32 %v2731, %v4095
  %v4524 = vmul.f32 %v2732, %v4097
  %v4525 = vmul.f32 %v2733, %v4099
  %v4526 = vmul.f32 %v2734, %v4101
  %v4527 = vmul.f32 %v2735, %v4103
  %v4528 = vmul.f32 %v2736, %v4105
  %v4529 = vmul.f32 %v2737, %v4107
  %v4530 = vmul.f32 %v2738, %v4109
  %v4531 = vmul.f32 %v2739, %v4111
  %v4532 = vmul.f32 %v2740, %v4113
  %v4533 = vmul.f32 %v2741, %v4115
  %v4534 = vmul.f32 %v2742, %v4117
  %v4535 = vmul.f32 %v2743, %v4119
  %v4536 = vmul.f32 %v2744, %v4121
  %v4537 = vmul.f32 %v2745, %v4123
  %v4538 = vmul.f32 %v2746, %v4125
  %v4539 = vmul.f32 %v2747, %v4127
  %v4540 = vmul.f32 %v2748, %v4129
  %v4541 = vmul.f32 %v2749, %v4131
  %v4542 = vmul.f32 %v2750, %v4133
  %v4543 = vmul.f32 %v2751, %v4135
  %v4544 = vmul.f32 %v2752, %v4137
  %v4545 = vmul.f32 %v2753, %v4139
  %v4546 = vmul.f32 %v2754, %v4141
  %v4547 = vmul.f32 %v2755, %v4143
  %v4548 = vmul.f32 %v2756, %v4145
  %v4549 = vmul.f32 %v2757, %v4147
  %v4550 = vmul.f32 %v2758, %v4149
  %v4551 = vmul.f32 %v2759, %v4151
  %v4552 = vmul.f32 %v2760, %v4153
  %v4553 = vmul.f32 %v2761, %v4155
  %v4554 = vmul.f32 %v2762, %v4157
  %v4555 = vmul.f32 %v2763, %v4159
  %v4556 = vmul.f32 %v2764, %v4161
  %v4557 = vmul.f32 %v2765, %v4163
  %v4558 = vmul.f32 %v2766, %v4165
  %v4559 = vmul.f32 %v2767, %v4167
  %v4560 = vmul.f32 %v2768, %v4169
  %v4561 = vmul.f32 %v2769, %v4171
  %v4562 = vmul.f32 %v2770, %v4173
  %v4563 = vmul.f32 %v2771, %v4175
  %v4564 = vmul.f32 %v2772, %v4177
  %v4565 = vmul.f32 %v2773, %v4179
  %v4566 = vmul.f32 %v2774, %v4181
  %v4567 = vmul.f32 %v2775, %v4183
  %v4568 = vmul.f32 %v2776, %v4185
  %v4569 = vmul.f32 %v2777, %v4187
  %v4570 = vmul.f32 %v2778, %v4189
  %v4571 = vmul.f32 %v2779, %v4191
  %v4572 = vmul.f32 %v2780, %v4193
  %v4573 = vmul.f32 %v2781, %v4195
  %v4574 = vmul.f32 %v2782, %v4197
  %v4575 = vmul.f32 %v2783, %v4199
  %v4576 = vmul.f32 %v2784, %v4201
  %v4577 = vmul.f32 %v2785, %v4203
  %v4578 = vmul.f32 %v2786, %v4205
  %v4579 = vmul.f32 %v2787, %v4207
  %v4580 = vmul.f32 %v2788, %v4209
  %v4581 = vmul.f32 %v2789, %v4211
  %v4582 = vmul.f32 %v2790, %v4213
  %v4583 = vmul.f32 %v2791, %v4215
  %v4584 = vmul.f32 %v2792, %v4217
  %v4585 = vmul.f32 %v2793, %v4219
  %v4586 = vmul.f32 %v2794, %v4221
  %v4587 = vmul.f32 %v2795, %v4223
  %v4588 = vmul.f32 %v2796, %v4225
  %v4589 = vmul.f32 %v2797, %v4227
  %v4590 = vmul.f32 %v2798, %v4229
  %v4591 = vmul.f32 %v2799, %v4231
  %v4592 = vmul.f32 %v2800, %v4233
  %v4593 = vmul.f32 %v2801, %v4235
  %v4594 = vmul.f32 %v2802, %v4237
  %v4595 = vmul.f32 %v2803, %v4239
  %v4596 = vmul.f32 %v2804, %v4241
  %v4597 = vmul.f32 %v2805, %v4243
  %v4598 = vmul.f32 %v2806, %v4245
  %v4599 = vmul.f32 %v2807, %v4247
  %v4600 = vmul.f32 %v2808, %v4249
  %v4601 = vmul.f32 %v2809, %v4251
  %v4602 = vmul.f32 %v2810, %v4253
  %v4603 = vmul.f32 %v2811, %v4255
  %v4604 = vmul.f32 %v2812, %v4257
  %v4605 = vmul.f32 %v2813, %v4259
  %v4606 = vmul.f32 %v2814, %v4261
  %v4607 = vmul.f32 %v2815, %v4263
  %v4608 = vmul.f32 %v2816, %v4265
  %v4609 = vmul.f32 %v2817, %v4267
  %v4610 = vmul.f32 %v2818, %v4269
  %v4611 = vmul.f32 %v2819, %v4271
  %v4612 = vmul.f32 %v2820, %v4273
  %v4613 = vmul.f32 %v2821, %v4275
  %v4614 = vmul.f32 %v2822, %v4277
  %v4615 = vmul.f32 %v2823, %v4279
  %v4616 = vmul.f32 %v2824, %v4281
  %v4617 = vmul.f32 %v2825, %v4283
  %v4618 = vmul.f32 %v2826, %v4285
  %v4619 = vmul.f32 %v2827, %v4287
  %v4620 = vmul.f32 %v2828, %v4289
  %v4621 = vmul.f32 %v2829, %v4291
  %v4622 = vmul.f32 %v2830, %v4293
  %v4623 = vmul.f32 %v2831, %v4295
  %v4624 = vmul.f32 %v2832, %v4297
  %v4625 = vmul.f32 %v2833, %v4299
  %v4626 = vmul.f32 %v2834, %v4301
  %v4627 = vmul.f32 %v2835, %v4303
  %v4628 = vmul.f32 %v2836, %v4305
  %v4629 = vmul.f32 %v2837, %v4307
  %v4630 = vmul.f32 %v2838, %v4309
  %v4631 = vmul.f32 %v2839, %v4311
  %v4632 = vmul.f32 %v2840, %v4313
  %v4633 = vmul.f32 %v2841, %v4315
  %v4634 = vmul.f32 %v2842, %v4317
  %v4635 = vmul.f32 %v2843, %v4319
  %v4636 = vmul.f32 %v2844, %v4321
  %v4637 = vmul.f32 %v2845, %v4323
  %v4638 = vmul.f32 %v2846, %v4325
  %v4639 = vmul.f32 %v2847, %v4327
  %v4640 = vmul.f32 %v2848, %v4329
  %v4641 = vmul.f32 %v2849, %v4331
  %v4642 = vmul.f32 %v2850, %v4333
  %v4643 = vmul.f32 %v2851, %v4335
  %v4644 = vmul.f32 %v2852, %v4337
  %v4645 = vmul.f32 %v2853, %v4339
  %v4646 = vmul.f32 %v2854, %v4341
  %v4647 = vmul.f32 %v2855, %v4343
  %v4648 = vmul.f32 %v2856, %v4345
  %v4649 = vmul.f32 %v2857, %v4347
  %v4650 = vmul.f32 %v2858, %v4349
  %v4651 = vmul.f32 %v2859, %v4351
  %v4652 = vmul.f32 %v2860, %v4353
  %v4653 = vmul.f32 %v2861, %v4355
  %v4654 = vmul.f32 %v2862, %v4357
  %v4655 = vmul.f32 %v2863, %v4359
  %v4656 = vmul.f32 %v2864, %v4361
  %v4657 = vmul.f32 %v2865, %v4363
  %v4658 = vmul.f32 %v2866, %v4365
  %v4659 = vmul.f32 %v2867, %v4367
  %v4660 = vmul.f32 %v2868, %v4369
  %v4661 = vmul.f32 %v2869, %v4371
  %v4662 = vmul.f32 %v2870, %v4373
  %v4663 = vmul.f32 %v2871, %v4375
  %v4664 = vmul.f32 %v2872, %v4377
  %v4665 = vmul.f32 %v2873, %v4379
  %v4666 = vmul.f32 %v2874, %v4381
  %v4667 = vmul.f32 %v2875, %v4383
  %v4668 = vmul.f32 %v2876, %v4385
  %v4669 = vmul.f32 %v2877, %v4387
  %v4670 = vmul.f32 %v2878, %v4389
  %v4671 = vmul.f32 %v2879, %v4391
  %v4672 = vmul.f32 %v2880, %v4393
  %v4673 = vmul.f32 %v2881, %v4395
  %v4674 = vmul.f32 %v2882, %v4397
  %v4675 = vmul.f32 %v2883, %v4399
  %v4676 = vmul.f32 %v2884, %v4401
  %v4677 = vmul.f32 %v2885, %v4403
  %v4678 = vmul.f32 %v2886, %v4405
  %v4679 = vmul.f32 %v2887, %v4407
  %v4680 = vmul.f32 %v2888, %v4409
  %v4681 = vmul.f32 %v2889, %v4411
  %v4682 = vmul.f32 %v2890, %v4413
  %v4683 = vmul.f32 %v2891, %v4415
  %v4684 = vmul.f32 %v2892, %v4417
  %v4685 = vmul.f32 %v2893, %v4419
  %v4686 = vmul.f32 %v2894, %v4421
  %v4687 = vmul.f32 %v2895, %v4423
  %v4688 = vmul.f32 %v2896, %v4425
  %v4689 = vmul.f32 %v2897, %v4427
  %v4690 = vmul.f32 %v2898, %v4429
  %v4691 = vmul.f32 %v2899, %v4431
  %v4692 = vmul.f32 %v2900, %v4433
  %v4693 = vmul.f32 %v2901, %v4435
  %v4694 = vmul.f32 %v2902, %v4437
  %v4695 = vmul.f32 %v2903, %v4439
  %v4696 = vpack.c.bf16 %v4441, %v4440
  %v4697 = vpack.c.bf16 %v4443, %v4442
  %v4698 = vpack.c.bf16 %v4445, %v4444
  %v4699 = vpack.c.bf16 %v4447, %v4446
  %v4700 = vpack.c.bf16 %v4449, %v4448
  %v4701 = vpack.c.bf16 %v4451, %v4450
  %v4702 = vpack.c.bf16 %v4453, %v4452
  %v4703 = vpack.c.bf16 %v4455, %v4454
  %v4704 = vpack.c.bf16 %v4457, %v4456
  %v4705 = vpack.c.bf16 %v4459, %v4458
  %v4706 = vpack.c.bf16 %v4461, %v4460
  %v4707 = vpack.c.bf16 %v4463, %v4462
  %v4708 = vpack.c.bf16 %v4465, %v4464
  %v4709 = vpack.c.bf16 %v4467, %v4466
  %v4710 = vpack.c.bf16 %v4469, %v4468
  %v4711 = vpack.c.bf16 %v4471, %v4470
  %v4712 = vpack.c.bf16 %v4473, %v4472
  %v4713 = vpack.c.bf16 %v4475, %v4474
  %v4714 = vpack.c.bf16 %v4477, %v4476
  %v4715 = vpack.c.bf16 %v4479, %v4478
  %v4716 = vpack.c.bf16 %v4481, %v4480
  %v4717 = vpack.c.bf16 %v4483, %v4482
  %v4718 = vpack.c.bf16 %v4485, %v4484
  %v4719 = vpack.c.bf16 %v4487, %v4486
  %v4720 = vpack.c.bf16 %v4489, %v4488
  %v4721 = vpack.c.bf16 %v4491, %v4490
  %v4722 = vpack.c.bf16 %v4493, %v4492
  %v4723 = vpack.c.bf16 %v4495, %v4494
  %v4724 = vpack.c.bf16 %v4497, %v4496
  %v4725 = vpack.c.bf16 %v4499, %v4498
  %v4726 = vpack.c.bf16 %v4501, %v4500
  %v4727 = vpack.c.bf16 %v4503, %v4502
  %v4728 = vpack.c.bf16 %v4505, %v4504
  %v4729 = vpack.c.bf16 %v4507, %v4506
  %v4730 = vpack.c.bf16 %v4509, %v4508
  %v4731 = vpack.c.bf16 %v4511, %v4510
  %v4732 = vpack.c.bf16 %v4513, %v4512
  %v4733 = vpack.c.bf16 %v4515, %v4514
  %v4734 = vpack.c.bf16 %v4517, %v4516
  %v4735 = vpack.c.bf16 %v4519, %v4518
  %v4736 = vpack.c.bf16 %v4521, %v4520
  %v4737 = vpack.c.bf16 %v4523, %v4522
  %v4738 = vpack.c.bf16 %v4525, %v4524
  %v4739 = vpack.c.bf16 %v4527, %v4526
  %v4740 = vpack.c.bf16 %v4529, %v4528
  %v4741 = vpack.c.bf16 %v4531, %v4530
  %v4742 = vpack.c.bf16 %v4533, %v4532
  %v4743 = vpack.c.bf16 %v4535, %v4534
  %v4744 = vpack.c.bf16 %v4537, %v4536
  %v4745 = vpack.c.bf16 %v4539, %v4538
  %v4746 = vpack.c.bf16 %v4541, %v4540
  %v4747 = vpack.c.bf16 %v4543, %v4542
  %v4748 = vpack.c.bf16 %v4545, %v4544
  %v4749 = vpack.c.bf16 %v4547, %v4546
  %v4750 = vpack.c.bf16 %v4549, %v4548
  %v4751 = vpack.c.bf16 %v4551, %v4550
  %v4752 = vpack.c.bf16 %v4553, %v4552
  %v4753 = vpack.c.bf16 %v4555, %v4554
  %v4754 = vpack.c.bf16 %v4557, %v4556
  %v4755 = vpack.c.bf16 %v4559, %v4558
  %v4756 = vpack.c.bf16 %v4561, %v4560
  %v4757 = vpack.c.bf16 %v4563, %v4562
  %v4758 = vpack.c.bf16 %v4565, %v4564
  %v4759 = vpack.c.bf16 %v4567, %v4566
  %v4760 = vpack.c.bf16 %v4569, %v4568
  %v4761 = vpack.c.bf16 %v4571, %v4570
  %v4762 = vpack.c.bf16 %v4573, %v4572
  %v4763 = vpack.c.bf16 %v4575, %v4574
  %v4764 = vpack.c.bf16 %v4577, %v4576
  %v4765 = vpack.c.bf16 %v4579, %v4578
  %v4766 = vpack.c.bf16 %v4581, %v4580
  %v4767 = vpack.c.bf16 %v4583, %v4582
  %v4768 = vpack.c.bf16 %v4585, %v4584
  %v4769 = vpack.c.bf16 %v4587, %v4586
  %v4770 = vpack.c.bf16 %v4589, %v4588
  %v4771 = vpack.c.bf16 %v4591, %v4590
  %v4772 = vpack.c.bf16 %v4593, %v4592
  %v4773 = vpack.c.bf16 %v4595, %v4594
  %v4774 = vpack.c.bf16 %v4597, %v4596
  %v4775 = vpack.c.bf16 %v4599, %v4598
  %v4776 = vpack.c.bf16 %v4601, %v4600
  %v4777 = vpack.c.bf16 %v4603, %v4602
  %v4778 = vpack.c.bf16 %v4605, %v4604
  %v4779 = vpack.c.bf16 %v4607, %v4606
  %v4780 = vpack.c.bf16 %v4609, %v4608
  %v4781 = vpack.c.bf16 %v4611, %v4610
  %v4782 = vpack.c.bf16 %v4613, %v4612
  %v4783 = vpack.c.bf16 %v4615, %v4614
  %v4784 = vpack.c.bf16 %v4617, %v4616
  %v4785 = vpack.c.bf16 %v4619, %v4618
  %v4786 = vpack.c.bf16 %v4621, %v4620
  %v4787 = vpack.c.bf16 %v4623, %v4622
  %v4788 = vpack.c.bf16 %v4625, %v4624
  %v4789 = vpack.c.bf16 %v4627, %v4626
  %v4790 = vpack.c.bf16 %v4629, %v4628
  %v4791 = vpack.c.bf16 %v4631, %v4630
  %v4792 = vpack.c.bf16 %v4633, %v4632
  %v4793 = vpack.c.bf16 %v4635, %v4634
  %v4794 = vpack.c.bf16 %v4637, %v4636
  %v4795 = vpack.c.bf16 %v4639, %v4638
  %v4796 = vpack.c.bf16 %v4641, %v4640
  %v4797 = vpack.c.bf16 %v4643, %v4642
  %v4798 = vpack.c.bf16 %v4645, %v4644
  %v4799 = vpack.c.bf16 %v4647, %v4646
  %v4800 = vpack.c.bf16 %v4649, %v4648
  %v4801 = vpack.c.bf16 %v4651, %v4650
  %v4802 = vpack.c.bf16 %v4653, %v4652
  %v4803 = vpack.c.bf16 %v4655, %v4654
  %v4804 = vpack.c.bf16 %v4657, %v4656
  %v4805 = vpack.c.bf16 %v4659, %v4658
  %v4806 = vpack.c.bf16 %v4661, %v4660
  %v4807 = vpack.c.bf16 %v4663, %v4662
  %v4808 = vpack.c.bf16 %v4665, %v4664
  %v4809 = vpack.c.bf16 %v4667, %v4666
  %v4810 = vpack.c.bf16 %v4669, %v4668
  %v4811 = vpack.c.bf16 %v4671, %v4670
  %v4812 = vpack.c.bf16 %v4673, %v4672
  %v4813 = vpack.c.bf16 %v4675, %v4674
  %v4814 = vpack.c.bf16 %v4677, %v4676
  %v4815 = vpack.c.bf16 %v4679, %v4678
  %v4816 = vpack.c.bf16 %v4681, %v4680
  %v4817 = vpack.c.bf16 %v4683, %v4682
  %v4818 = vpack.c.bf16 %v4685, %v4684
  %v4819 = vpack.c.bf16 %v4687, %v4686
  %v4820 = vpack.c.bf16 %v4689, %v4688
  %v4821 = vpack.c.bf16 %v4691, %v4690
  %v4822 = vpack.c.bf16 %v4693, %v4692
  %v4823 = vpack.c.bf16 %v4695, %v4694
  %v4952 = vunpack.c.l.b16 %v4696
  %v4953 = vunpack.c.h.b16 %v4696
  %v4954 = vunpack.c.l.b16 %v4697
  %v4955 = vunpack.c.h.b16 %v4697
  %v4956 = vunpack.c.l.b16 %v4698
  %v4957 = vunpack.c.h.b16 %v4698
  %v4958 = vunpack.c.l.b16 %v4699
  %v4959 = vunpack.c.h.b16 %v4699
  %v4960 = vunpack.c.l.b16 %v4700
  %v4961 = vunpack.c.h.b16 %v4700
  %v4962 = vunpack.c.l.b16 %v4701
  %v4963 = vunpack.c.h.b16 %v4701
  %v4964 = vunpack.c.l.b16 %v4702
  %v4965 = vunpack.c.h.b16 %v4702
  %v4966 = vunpack.c.l.b16 %v4703
  %v4967 = vunpack.c.h.b16 %v4703
  %v4968 = vunpack.c.l.b16 %v4704
  %v4969 = vunpack.c.h.b16 %v4704
  %v4970 = vunpack.c.l.b16 %v4705
  %v4971 = vunpack.c.h.b16 %v4705
  %v4972 = vunpack.c.l.b16 %v4706
  %v4973 = vunpack.c.h.b16 %v4706
  %v4974 = vunpack.c.l.b16 %v4707
  %v4975 = vunpack.c.h.b16 %v4707
  %v4976 = vunpack.c.l.b16 %v4708
  %v4977 = vunpack.c.h.b16 %v4708
  %v4978 = vunpack.c.l.b16 %v4709
  %v4979 = vunpack.c.h.b16 %v4709
  %v4980 = vunpack.c.l.b16 %v4710
  %v4981 = vunpack.c.h.b16 %v4710
  %v4982 = vunpack.c.l.b16 %v4711
  %v4983 = vunpack.c.h.b16 %v4711
  %v4984 = vunpack.c.l.b16 %v4712
  %v4985 = vunpack.c.h.b16 %v4712
  %v4986 = vunpack.c.l.b16 %v4713
  %v4987 = vunpack.c.h.b16 %v4713
  %v4988 = vunpack.c.l.b16 %v4714
  %v4989 = vunpack.c.h.b16 %v4714
  %v4990 = vunpack.c.l.b16 %v4715
  %v4991 = vunpack.c.h.b16 %v4715
  %v4992 = vunpack.c.l.b16 %v4716
  %v4993 = vunpack.c.h.b16 %v4716
  %v4994 = vunpack.c.l.b16 %v4717
  %v4995 = vunpack.c.h.b16 %v4717
  %v4996 = vunpack.c.l.b16 %v4718
  %v4997 = vunpack.c.h.b16 %v4718
  %v4998 = vunpack.c.l.b16 %v4719
  %v4999 = vunpack.c.h.b16 %v4719
  %v5000 = vunpack.c.l.b16 %v4720
  %v5001 = vunpack.c.h.b16 %v4720
  %v5002 = vunpack.c.l.b16 %v4721
  %v5003 = vunpack.c.h.b16 %v4721
  %v5004 = vunpack.c.l.b16 %v4722
  %v5005 = vunpack.c.h.b16 %v4722
  %v5006 = vunpack.c.l.b16 %v4723
  %v5007 = vunpack.c.h.b16 %v4723
  %v5008 = vunpack.c.l.b16 %v4724
  %v5009 = vunpack.c.h.b16 %v4724
  %v5010 = vunpack.c.l.b16 %v4725
  %v5011 = vunpack.c.h.b16 %v4725
  %v5012 = vunpack.c.l.b16 %v4726
  %v5013 = vunpack.c.h.b16 %v4726
  %v5014 = vunpack.c.l.b16 %v4727
  %v5015 = vunpack.c.h.b16 %v4727
  %v5016 = vunpack.c.l.b16 %v4728
  %v5017 = vunpack.c.h.b16 %v4728
  %v5018 = vunpack.c.l.b16 %v4729
  %v5019 = vunpack.c.h.b16 %v4729
  %v5020 = vunpack.c.l.b16 %v4730
  %v5021 = vunpack.c.h.b16 %v4730
  %v5022 = vunpack.c.l.b16 %v4731
  %v5023 = vunpack.c.h.b16 %v4731
  %v5024 = vunpack.c.l.b16 %v4732
  %v5025 = vunpack.c.h.b16 %v4732
  %v5026 = vunpack.c.l.b16 %v4733
  %v5027 = vunpack.c.h.b16 %v4733
  %v5028 = vunpack.c.l.b16 %v4734
  %v5029 = vunpack.c.h.b16 %v4734
  %v5030 = vunpack.c.l.b16 %v4735
  %v5031 = vunpack.c.h.b16 %v4735
  %v5032 = vunpack.c.l.b16 %v4736
  %v5033 = vunpack.c.h.b16 %v4736
  %v5034 = vunpack.c.l.b16 %v4737
  %v5035 = vunpack.c.h.b16 %v4737
  %v5036 = vunpack.c.l.b16 %v4738
  %v5037 = vunpack.c.h.b16 %v4738
  %v5038 = vunpack.c.l.b16 %v4739
  %v5039 = vunpack.c.h.b16 %v4739
  %v5040 = vunpack.c.l.b16 %v4740
  %v5041 = vunpack.c.h.b16 %v4740
  %v5042 = vunpack.c.l.b16 %v4741
  %v5043 = vunpack.c.h.b16 %v4741
  %v5044 = vunpack.c.l.b16 %v4742
  %v5045 = vunpack.c.h.b16 %v4742
  %v5046 = vunpack.c.l.b16 %v4743
  %v5047 = vunpack.c.h.b16 %v4743
  %v5048 = vunpack.c.l.b16 %v4744
  %v5049 = vunpack.c.h.b16 %v4744
  %v5050 = vunpack.c.l.b16 %v4745
  %v5051 = vunpack.c.h.b16 %v4745
  %v5052 = vunpack.c.l.b16 %v4746
  %v5053 = vunpack.c.h.b16 %v4746
  %v5054 = vunpack.c.l.b16 %v4747
  %v5055 = vunpack.c.h.b16 %v4747
  %v5056 = vunpack.c.l.b16 %v4748
  %v5057 = vunpack.c.h.b16 %v4748
  %v5058 = vunpack.c.l.b16 %v4749
  %v5059 = vunpack.c.h.b16 %v4749
  %v5060 = vunpack.c.l.b16 %v4750
  %v5061 = vunpack.c.h.b16 %v4750
  %v5062 = vunpack.c.l.b16 %v4751
  %v5063 = vunpack.c.h.b16 %v4751
  %v5064 = vunpack.c.l.b16 %v4752
  %v5065 = vunpack.c.h.b16 %v4752
  %v5066 = vunpack.c.l.b16 %v4753
  %v5067 = vunpack.c.h.b16 %v4753
  %v5068 = vunpack.c.l.b16 %v4754
  %v5069 = vunpack.c.h.b16 %v4754
  %v5070 = vunpack.c.l.b16 %v4755
  %v5071 = vunpack.c.h.b16 %v4755
  %v5072 = vunpack.c.l.b16 %v4756
  %v5073 = vunpack.c.h.b16 %v4756
  %v5074 = vunpack.c.l.b16 %v4757
  %v5075 = vunpack.c.h.b16 %v4757
  %v5076 = vunpack.c.l.b16 %v4758
  %v5077 = vunpack.c.h.b16 %v4758
  %v5078 = vunpack.c.l.b16 %v4759
  %v5079 = vunpack.c.h.b16 %v4759
  %v5080 = vunpack.c.l.b16 %v4760
  %v5081 = vunpack.c.h.b16 %v4760
  %v5082 = vunpack.c.l.b16 %v4761
  %v5083 = vunpack.c.h.b16 %v4761
  %v5084 = vunpack.c.l.b16 %v4762
  %v5085 = vunpack.c.h.b16 %v4762
  %v5086 = vunpack.c.l.b16 %v4763
  %v5087 = vunpack.c.h.b16 %v4763
  %v5088 = vunpack.c.l.b16 %v4764
  %v5089 = vunpack.c.h.b16 %v4764
  %v5090 = vunpack.c.l.b16 %v4765
  %v5091 = vunpack.c.h.b16 %v4765
  %v5092 = vunpack.c.l.b16 %v4766
  %v5093 = vunpack.c.h.b16 %v4766
  %v5094 = vunpack.c.l.b16 %v4767
  %v5095 = vunpack.c.h.b16 %v4767
  %v5096 = vunpack.c.l.b16 %v4768
  %v5097 = vunpack.c.h.b16 %v4768
  %v5098 = vunpack.c.l.b16 %v4769
  %v5099 = vunpack.c.h.b16 %v4769
  %v5100 = vunpack.c.l.b16 %v4770
  %v5101 = vunpack.c.h.b16 %v4770
  %v5102 = vunpack.c.l.b16 %v4771
  %v5103 = vunpack.c.h.b16 %v4771
  %v5104 = vunpack.c.l.b16 %v4772
  %v5105 = vunpack.c.h.b16 %v4772
  %v5106 = vunpack.c.l.b16 %v4773
  %v5107 = vunpack.c.h.b16 %v4773
  %v5108 = vunpack.c.l.b16 %v4774
  %v5109 = vunpack.c.h.b16 %v4774
  %v5110 = vunpack.c.l.b16 %v4775
  %v5111 = vunpack.c.h.b16 %v4775
  %v5112 = vunpack.c.l.b16 %v4776
  %v5113 = vunpack.c.h.b16 %v4776
  %v5114 = vunpack.c.l.b16 %v4777
  %v5115 = vunpack.c.h.b16 %v4777
  %v5116 = vunpack.c.l.b16 %v4778
  %v5117 = vunpack.c.h.b16 %v4778
  %v5118 = vunpack.c.l.b16 %v4779
  %v5119 = vunpack.c.h.b16 %v4779
  %v5120 = vunpack.c.l.b16 %v4780
  %v5121 = vunpack.c.h.b16 %v4780
  %v5122 = vunpack.c.l.b16 %v4781
  %v5123 = vunpack.c.h.b16 %v4781
  %v5124 = vunpack.c.l.b16 %v4782
  %v5125 = vunpack.c.h.b16 %v4782
  %v5126 = vunpack.c.l.b16 %v4783
  %v5127 = vunpack.c.h.b16 %v4783
  %v5128 = vunpack.c.l.b16 %v4784
  %v5129 = vunpack.c.h.b16 %v4784
  %v5130 = vunpack.c.l.b16 %v4785
  %v5131 = vunpack.c.h.b16 %v4785
  %v5132 = vunpack.c.l.b16 %v4786
  %v5133 = vunpack.c.h.b16 %v4786
  %v5134 = vunpack.c.l.b16 %v4787
  %v5135 = vunpack.c.h.b16 %v4787
  %v5136 = vunpack.c.l.b16 %v4788
  %v5137 = vunpack.c.h.b16 %v4788
  %v5138 = vunpack.c.l.b16 %v4789
  %v5139 = vunpack.c.h.b16 %v4789
  %v5140 = vunpack.c.l.b16 %v4790
  %v5141 = vunpack.c.h.b16 %v4790
  %v5142 = vunpack.c.l.b16 %v4791
  %v5143 = vunpack.c.h.b16 %v4791
  %v5144 = vunpack.c.l.b16 %v4792
  %v5145 = vunpack.c.h.b16 %v4792
  %v5146 = vunpack.c.l.b16 %v4793
  %v5147 = vunpack.c.h.b16 %v4793
  %v5148 = vunpack.c.l.b16 %v4794
  %v5149 = vunpack.c.h.b16 %v4794
  %v5150 = vunpack.c.l.b16 %v4795
  %v5151 = vunpack.c.h.b16 %v4795
  %v5152 = vunpack.c.l.b16 %v4796
  %v5153 = vunpack.c.h.b16 %v4796
  %v5154 = vunpack.c.l.b16 %v4797
  %v5155 = vunpack.c.h.b16 %v4797
  %v5156 = vunpack.c.l.b16 %v4798
  %v5157 = vunpack.c.h.b16 %v4798
  %v5158 = vunpack.c.l.b16 %v4799
  %v5159 = vunpack.c.h.b16 %v4799
  %v5160 = vunpack.c.l.b16 %v4800
  %v5161 = vunpack.c.h.b16 %v4800
  %v5162 = vunpack.c.l.b16 %v4801
  %v5163 = vunpack.c.h.b16 %v4801
  %v5164 = vunpack.c.l.b16 %v4802
  %v5165 = vunpack.c.h.b16 %v4802
  %v5166 = vunpack.c.l.b16 %v4803
  %v5167 = vunpack.c.h.b16 %v4803
  %v5168 = vunpack.c.l.b16 %v4804
  %v5169 = vunpack.c.h.b16 %v4804
  %v5170 = vunpack.c.l.b16 %v4805
  %v5171 = vunpack.c.h.b16 %v4805
  %v5172 = vunpack.c.l.b16 %v4806
  %v5173 = vunpack.c.h.b16 %v4806
  %v5174 = vunpack.c.l.b16 %v4807
  %v5175 = vunpack.c.h.b16 %v4807
  %v5176 = vunpack.c.l.b16 %v4808
  %v5177 = vunpack.c.h.b16 %v4808
  %v5178 = vunpack.c.l.b16 %v4809
  %v5179 = vunpack.c.h.b16 %v4809
  %v5180 = vunpack.c.l.b16 %v4810
  %v5181 = vunpack.c.h.b16 %v4810
  %v5182 = vunpack.c.l.b16 %v4811
  %v5183 = vunpack.c.h.b16 %v4811
  %v5184 = vunpack.c.l.b16 %v4812
  %v5185 = vunpack.c.h.b16 %v4812
  %v5186 = vunpack.c.l.b16 %v4813
  %v5187 = vunpack.c.h.b16 %v4813
  %v5188 = vunpack.c.l.b16 %v4814
  %v5189 = vunpack.c.h.b16 %v4814
  %v5190 = vunpack.c.l.b16 %v4815
  %v5191 = vunpack.c.h.b16 %v4815
  %v5192 = vunpack.c.l.b16 %v4816
  %v5193 = vunpack.c.h.b16 %v4816
  %v5194 = vunpack.c.l.b16 %v4817
  %v5195 = vunpack.c.h.b16 %v4817
  %v5196 = vunpack.c.l.b16 %v4818
  %v5197 = vunpack.c.h.b16 %v4818
  %v5198 = vunpack.c.l.b16 %v4819
  %v5199 = vunpack.c.h.b16 %v4819
  %v5200 = vunpack.c.l.b16 %v4820
  %v5201 = vunpack.c.h.b16 %v4820
  %v5202 = vunpack.c.l.b16 %v4821
  %v5203 = vunpack.c.h.b16 %v4821
  %v5204 = vunpack.c.l.b16 %v4822
  %v5205 = vunpack.c.h.b16 %v4822
  %v5206 = vunpack.c.l.b16 %v4823
  %v5207 = vunpack.c.h.b16 %v4823
  %v5208 = vpack.c.b16 %v4952, %v4952
  %v5209 = vpack.c.b16 %v4953, %v4953
  %v5210 = vpack.c.b16 %v4954, %v4954
  %v5211 = vpack.c.b16 %v4955, %v4955
  %v5212 = vpack.c.b16 %v4956, %v4956
  %v5213 = vpack.c.b16 %v4957, %v4957
  %v5214 = vpack.c.b16 %v4958, %v4958
  %v5215 = vpack.c.b16 %v4959, %v4959
  %v5216 = vpack.c.b16 %v4960, %v4960
  %v5217 = vpack.c.b16 %v4961, %v4961
  %v5218 = vpack.c.b16 %v4962, %v4962
  %v5219 = vpack.c.b16 %v4963, %v4963
  %v5220 = vpack.c.b16 %v4964, %v4964
  %v5221 = vpack.c.b16 %v4965, %v4965
  %v5222 = vpack.c.b16 %v4966, %v4966
  %v5223 = vpack.c.b16 %v4967, %v4967
  %v5224 = vpack.c.b16 %v4968, %v4968
  %v5225 = vpack.c.b16 %v4969, %v4969
  %v5226 = vpack.c.b16 %v4970, %v4970
  %v5227 = vpack.c.b16 %v4971, %v4971
  %v5228 = vpack.c.b16 %v4972, %v4972
  %v5229 = vpack.c.b16 %v4973, %v4973
  %v5230 = vpack.c.b16 %v4974, %v4974
  %v5231 = vpack.c.b16 %v4975, %v4975
  %v5232 = vpack.c.b16 %v4976, %v4976
  %v5233 = vpack.c.b16 %v4977, %v4977
  %v5234 = vpack.c.b16 %v4978, %v4978
  %v5235 = vpack.c.b16 %v4979, %v4979
  %v5236 = vpack.c.b16 %v4980, %v4980
  %v5237 = vpack.c.b16 %v4981, %v4981
  %v5238 = vpack.c.b16 %v4982, %v4982
  %v5239 = vpack.c.b16 %v4983, %v4983
  %v5240 = vpack.c.b16 %v4984, %v4984
  %v5241 = vpack.c.b16 %v4985, %v4985
  %v5242 = vpack.c.b16 %v4986, %v4986
  %v5243 = vpack.c.b16 %v4987, %v4987
  %v5244 = vpack.c.b16 %v4988, %v4988
  %v5245 = vpack.c.b16 %v4989, %v4989
  %v5246 = vpack.c.b16 %v4990, %v4990
  %v5247 = vpack.c.b16 %v4991, %v4991
  %v5248 = vpack.c.b16 %v4992, %v4992
  %v5249 = vpack.c.b16 %v4993, %v4993
  %v5250 = vpack.c.b16 %v4994, %v4994
  %v5251 = vpack.c.b16 %v4995, %v4995
  %v5252 = vpack.c.b16 %v4996, %v4996
  %v5253 = vpack.c.b16 %v4997, %v4997
  %v5254 = vpack.c.b16 %v4998, %v4998
  %v5255 = vpack.c.b16 %v4999, %v4999
  %v5256 = vpack.c.b16 %v5000, %v5000
  %v5257 = vpack.c.b16 %v5001, %v5001
  %v5258 = vpack.c.b16 %v5002, %v5002
  %v5259 = vpack.c.b16 %v5003, %v5003
  %v5260 = vpack.c.b16 %v5004, %v5004
  %v5261 = vpack.c.b16 %v5005, %v5005
  %v5262 = vpack.c.b16 %v5006, %v5006
  %v5263 = vpack.c.b16 %v5007, %v5007
  %v5264 = vpack.c.b16 %v5008, %v5008
  %v5265 = vpack.c.b16 %v5009, %v5009
  %v5266 = vpack.c.b16 %v5010, %v5010
  %v5267 = vpack.c.b16 %v5011, %v5011
  %v5268 = vpack.c.b16 %v5012, %v5012
  %v5269 = vpack.c.b16 %v5013, %v5013
  %v5270 = vpack.c.b16 %v5014, %v5014
  %v5271 = vpack.c.b16 %v5015, %v5015
  %v5272 = vpack.c.b16 %v5016, %v5016
  %v5273 = vpack.c.b16 %v5017, %v5017
  %v5274 = vpack.c.b16 %v5018, %v5018
  %v5275 = vpack.c.b16 %v5019, %v5019
  %v5276 = vpack.c.b16 %v5020, %v5020
  %v5277 = vpack.c.b16 %v5021, %v5021
  %v5278 = vpack.c.b16 %v5022, %v5022
  %v5279 = vpack.c.b16 %v5023, %v5023
  %v5280 = vpack.c.b16 %v5024, %v5024
  %v5281 = vpack.c.b16 %v5025, %v5025
  %v5282 = vpack.c.b16 %v5026, %v5026
  %v5283 = vpack.c.b16 %v5027, %v5027
  %v5284 = vpack.c.b16 %v5028, %v5028
  %v5285 = vpack.c.b16 %v5029, %v5029
  %v5286 = vpack.c.b16 %v5030, %v5030
  %v5287 = vpack.c.b16 %v5031, %v5031
  %v5288 = vpack.c.b16 %v5032, %v5032
  %v5289 = vpack.c.b16 %v5033, %v5033
  %v5290 = vpack.c.b16 %v5034, %v5034
  %v5291 = vpack.c.b16 %v5035, %v5035
  %v5292 = vpack.c.b16 %v5036, %v5036
  %v5293 = vpack.c.b16 %v5037, %v5037
  %v5294 = vpack.c.b16 %v5038, %v5038
  %v5295 = vpack.c.b16 %v5039, %v5039
  %v5296 = vpack.c.b16 %v5040, %v5040
  %v5297 = vpack.c.b16 %v5041, %v5041
  %v5298 = vpack.c.b16 %v5042, %v5042
  %v5299 = vpack.c.b16 %v5043, %v5043
  %v5300 = vpack.c.b16 %v5044, %v5044
  %v5301 = vpack.c.b16 %v5045, %v5045
  %v5302 = vpack.c.b16 %v5046, %v5046
  %v5303 = vpack.c.b16 %v5047, %v5047
  %v5304 = vpack.c.b16 %v5048, %v5048
  %v5305 = vpack.c.b16 %v5049, %v5049
  %v5306 = vpack.c.b16 %v5050, %v5050
  %v5307 = vpack.c.b16 %v5051, %v5051
  %v5308 = vpack.c.b16 %v5052, %v5052
  %v5309 = vpack.c.b16 %v5053, %v5053
  %v5310 = vpack.c.b16 %v5054, %v5054
  %v5311 = vpack.c.b16 %v5055, %v5055
  %v5312 = vpack.c.b16 %v5056, %v5056
  %v5313 = vpack.c.b16 %v5057, %v5057
  %v5314 = vpack.c.b16 %v5058, %v5058
  %v5315 = vpack.c.b16 %v5059, %v5059
  %v5316 = vpack.c.b16 %v5060, %v5060
  %v5317 = vpack.c.b16 %v5061, %v5061
  %v5318 = vpack.c.b16 %v5062, %v5062
  %v5319 = vpack.c.b16 %v5063, %v5063
  %v5320 = vpack.c.b16 %v5064, %v5064
  %v5321 = vpack.c.b16 %v5065, %v5065
  %v5322 = vpack.c.b16 %v5066, %v5066
  %v5323 = vpack.c.b16 %v5067, %v5067
  %v5324 = vpack.c.b16 %v5068, %v5068
  %v5325 = vpack.c.b16 %v5069, %v5069
  %v5326 = vpack.c.b16 %v5070, %v5070
  %v5327 = vpack.c.b16 %v5071, %v5071
  %v5328 = vpack.c.b16 %v5072, %v5072
  %v5329 = vpack.c.b16 %v5073, %v5073
  %v5330 = vpack.c.b16 %v5074, %v5074
  %v5331 = vpack.c.b16 %v5075, %v5075
  %v5332 = vpack.c.b16 %v5076, %v5076
  %v5333 = vpack.c.b16 %v5077, %v5077
  %v5334 = vpack.c.b16 %v5078, %v5078
  %v5335 = vpack.c.b16 %v5079, %v5079
  %v5336 = vpack.c.b16 %v5080, %v5080
  %v5337 = vpack.c.b16 %v5081, %v5081
  %v5338 = vpack.c.b16 %v5082, %v5082
  %v5339 = vpack.c.b16 %v5083, %v5083
  %v5340 = vpack.c.b16 %v5084, %v5084
  %v5341 = vpack.c.b16 %v5085, %v5085
  %v5342 = vpack.c.b16 %v5086, %v5086
  %v5343 = vpack.c.b16 %v5087, %v5087
  %v5344 = vpack.c.b16 %v5088, %v5088
  %v5345 = vpack.c.b16 %v5089, %v5089
  %v5346 = vpack.c.b16 %v5090, %v5090
  %v5347 = vpack.c.b16 %v5091, %v5091
  %v5348 = vpack.c.b16 %v5092, %v5092
  %v5349 = vpack.c.b16 %v5093, %v5093
  %v5350 = vpack.c.b16 %v5094, %v5094
  %v5351 = vpack.c.b16 %v5095, %v5095
  %v5352 = vpack.c.b16 %v5096, %v5096
  %v5353 = vpack.c.b16 %v5097, %v5097
  %v5354 = vpack.c.b16 %v5098, %v5098
  %v5355 = vpack.c.b16 %v5099, %v5099
  %v5356 = vpack.c.b16 %v5100, %v5100
  %v5357 = vpack.c.b16 %v5101, %v5101
  %v5358 = vpack.c.b16 %v5102, %v5102
  %v5359 = vpack.c.b16 %v5103, %v5103
  %v5360 = vpack.c.b16 %v5104, %v5104
  %v5361 = vpack.c.b16 %v5105, %v5105
  %v5362 = vpack.c.b16 %v5106, %v5106
  %v5363 = vpack.c.b16 %v5107, %v5107
  %v5364 = vpack.c.b16 %v5108, %v5108
  %v5365 = vpack.c.b16 %v5109, %v5109
  %v5366 = vpack.c.b16 %v5110, %v5110
  %v5367 = vpack.c.b16 %v5111, %v5111
  %v5368 = vpack.c.b16 %v5112, %v5112
  %v5369 = vpack.c.b16 %v5113, %v5113
  %v5370 = vpack.c.b16 %v5114, %v5114
  %v5371 = vpack.c.b16 %v5115, %v5115
  %v5372 = vpack.c.b16 %v5116, %v5116
  %v5373 = vpack.c.b16 %v5117, %v5117
  %v5374 = vpack.c.b16 %v5118, %v5118
  %v5375 = vpack.c.b16 %v5119, %v5119
  %v5376 = vpack.c.b16 %v5120, %v5120
  %v5377 = vpack.c.b16 %v5121, %v5121
  %v5378 = vpack.c.b16 %v5122, %v5122
  %v5379 = vpack.c.b16 %v5123, %v5123
  %v5380 = vpack.c.b16 %v5124, %v5124
  %v5381 = vpack.c.b16 %v5125, %v5125
  %v5382 = vpack.c.b16 %v5126, %v5126
  %v5383 = vpack.c.b16 %v5127, %v5127
  %v5384 = vpack.c.b16 %v5128, %v5128
  %v5385 = vpack.c.b16 %v5129, %v5129
  %v5386 = vpack.c.b16 %v5130, %v5130
  %v5387 = vpack.c.b16 %v5131, %v5131
  %v5388 = vpack.c.b16 %v5132, %v5132
  %v5389 = vpack.c.b16 %v5133, %v5133
  %v5390 = vpack.c.b16 %v5134, %v5134
  %v5391 = vpack.c.b16 %v5135, %v5135
  %v5392 = vpack.c.b16 %v5136, %v5136
  %v5393 = vpack.c.b16 %v5137, %v5137
  %v5394 = vpack.c.b16 %v5138, %v5138
  %v5395 = vpack.c.b16 %v5139, %v5139
  %v5396 = vpack.c.b16 %v5140, %v5140
  %v5397 = vpack.c.b16 %v5141, %v5141
  %v5398 = vpack.c.b16 %v5142, %v5142
  %v5399 = vpack.c.b16 %v5143, %v5143
  %v5400 = vpack.c.b16 %v5144, %v5144
  %v5401 = vpack.c.b16 %v5145, %v5145
  %v5402 = vpack.c.b16 %v5146, %v5146
  %v5403 = vpack.c.b16 %v5147, %v5147
  %v5404 = vpack.c.b16 %v5148, %v5148
  %v5405 = vpack.c.b16 %v5149, %v5149
  %v5406 = vpack.c.b16 %v5150, %v5150
  %v5407 = vpack.c.b16 %v5151, %v5151
  %v5408 = vpack.c.b16 %v5152, %v5152
  %v5409 = vpack.c.b16 %v5153, %v5153
  %v5410 = vpack.c.b16 %v5154, %v5154
  %v5411 = vpack.c.b16 %v5155, %v5155
  %v5412 = vpack.c.b16 %v5156, %v5156
  %v5413 = vpack.c.b16 %v5157, %v5157
  %v5414 = vpack.c.b16 %v5158, %v5158
  %v5415 = vpack.c.b16 %v5159, %v5159
  %v5416 = vpack.c.b16 %v5160, %v5160
  %v5417 = vpack.c.b16 %v5161, %v5161
  %v5418 = vpack.c.b16 %v5162, %v5162
  %v5419 = vpack.c.b16 %v5163, %v5163
  %v5420 = vpack.c.b16 %v5164, %v5164
  %v5421 = vpack.c.b16 %v5165, %v5165
  %v5422 = vpack.c.b16 %v5166, %v5166
  %v5423 = vpack.c.b16 %v5167, %v5167
  %v5424 = vpack.c.b16 %v5168, %v5168
  %v5425 = vpack.c.b16 %v5169, %v5169
  %v5426 = vpack.c.b16 %v5170, %v5170
  %v5427 = vpack.c.b16 %v5171, %v5171
  %v5428 = vpack.c.b16 %v5172, %v5172
  %v5429 = vpack.c.b16 %v5173, %v5173
  %v5430 = vpack.c.b16 %v5174, %v5174
  %v5431 = vpack.c.b16 %v5175, %v5175
  %v5432 = vpack.c.b16 %v5176, %v5176
  %v5433 = vpack.c.b16 %v5177, %v5177
  %v5434 = vpack.c.b16 %v5178, %v5178
  %v5435 = vpack.c.b16 %v5179, %v5179
  %v5436 = vpack.c.b16 %v5180, %v5180
  %v5437 = vpack.c.b16 %v5181, %v5181
  %v5438 = vpack.c.b16 %v5182, %v5182
  %v5439 = vpack.c.b16 %v5183, %v5183
  %v5440 = vpack.c.b16 %v5184, %v5184
  %v5441 = vpack.c.b16 %v5185, %v5185
  %v5442 = vpack.c.b16 %v5186, %v5186
  %v5443 = vpack.c.b16 %v5187, %v5187
  %v5444 = vpack.c.b16 %v5188, %v5188
  %v5445 = vpack.c.b16 %v5189, %v5189
  %v5446 = vpack.c.b16 %v5190, %v5190
  %v5447 = vpack.c.b16 %v5191, %v5191
  %v5448 = vpack.c.b16 %v5192, %v5192
  %v5449 = vpack.c.b16 %v5193, %v5193
  %v5450 = vpack.c.b16 %v5194, %v5194
  %v5451 = vpack.c.b16 %v5195, %v5195
  %v5452 = vpack.c.b16 %v5196, %v5196
  %v5453 = vpack.c.b16 %v5197, %v5197
  %v5454 = vpack.c.b16 %v5198, %v5198
  %v5455 = vpack.c.b16 %v5199, %v5199
  %v5456 = vpack.c.b16 %v5200, %v5200
  %v5457 = vpack.c.b16 %v5201, %v5201
  %v5458 = vpack.c.b16 %v5202, %v5202
  %v5459 = vpack.c.b16 %v5203, %v5203
  %v5460 = vpack.c.b16 %v5204, %v5204
  %v5461 = vpack.c.b16 %v5205, %v5205
  %v5462 = vpack.c.b16 %v5206, %v5206
  %v5463 = vpack.c.b16 %v5207, %v5207
  %vm5720 = vcmask 257024
  %5721 = vst.msk [vmem:[%s4] sm:$0xf] %vm5720, %v5208
  %5722 = vst.msk [vmem:[%s4 + $0x4] sm:$0xf] %vm5720, %v5209
  %5723 = vst.msk [vmem:[%s4 + $0x8] sm:$0xf] %vm5720, %v5210
  %5724 = vst.msk [vmem:[%s4 + $0xc] sm:$0xf] %vm5720, %v5211
  %5725 = vst.msk [vmem:[%s4 + $0x10] sm:$0xf] %vm5720, %v5212
  %5726 = vst.msk [vmem:[%s4 + $0x14] sm:$0xf] %vm5720, %v5213
  %5727 = vst.msk [vmem:[%s4 + $0x18] sm:$0xf] %vm5720, %v5214
  %5728 = vst.msk [vmem:[%s4 + $0x1c] sm:$0xf] %vm5720, %v5215
  %5729 = vst.msk [vmem:[%s4 + $0x20] sm:$0xf] %vm5720, %v5216
  %5730 = vst.msk [vmem:[%s4 + $0x24] sm:$0xf] %vm5720, %v5217
  %5731 = vst.msk [vmem:[%s4 + $0x28] sm:$0xf] %vm5720, %v5218
  %5732 = vst.msk [vmem:[%s4 + $0x2c] sm:$0xf] %vm5720, %v5219
  %5733 = vst.msk [vmem:[%s4 + $0x30] sm:$0xf] %vm5720, %v5220
  %5734 = vst.msk [vmem:[%s4 + $0x34] sm:$0xf] %vm5720, %v5221
  %5735 = vst.msk [vmem:[%s4 + $0x38] sm:$0xf] %vm5720, %v5222
  %5736 = vst.msk [vmem:[%s4 + $0x3c] sm:$0xf] %vm5720, %v5223
  %5737 = vst.msk [vmem:[%s4 + $0x40] sm:$0xf] %vm5720, %v5224
  %5738 = vst.msk [vmem:[%s4 + $0x44] sm:$0xf] %vm5720, %v5225
  %5739 = vst.msk [vmem:[%s4 + $0x48] sm:$0xf] %vm5720, %v5226
  %5740 = vst.msk [vmem:[%s4 + $0x4c] sm:$0xf] %vm5720, %v5227
  %5741 = vst.msk [vmem:[%s4 + $0x50] sm:$0xf] %vm5720, %v5228
  %5742 = vst.msk [vmem:[%s4 + $0x54] sm:$0xf] %vm5720, %v5229
  %5743 = vst.msk [vmem:[%s4 + $0x58] sm:$0xf] %vm5720, %v5230
  %5744 = vst.msk [vmem:[%s4 + $0x5c] sm:$0xf] %vm5720, %v5231
  %5745 = vst.msk [vmem:[%s4 + $0x60] sm:$0xf] %vm5720, %v5232
  %5746 = vst.msk [vmem:[%s4 + $0x64] sm:$0xf] %vm5720, %v5233
  %5747 = vst.msk [vmem:[%s4 + $0x68] sm:$0xf] %vm5720, %v5234
  %5748 = vst.msk [vmem:[%s4 + $0x6c] sm:$0xf] %vm5720, %v5235
  %5749 = vst.msk [vmem:[%s4 + $0x70] sm:$0xf] %vm5720, %v5236
  %5750 = vst.msk [vmem:[%s4 + $0x74] sm:$0xf] %vm5720, %v5237
  %5751 = vst.msk [vmem:[%s4 + $0x78] sm:$0xf] %vm5720, %v5238
  %5752 = vst.msk [vmem:[%s4 + $0x7c] sm:$0xf] %vm5720, %v5239
  %5753 = vst.msk [vmem:[%s4 + $0x80] sm:$0xf] %vm5720, %v5240
  %5754 = vst.msk [vmem:[%s4 + $0x84] sm:$0xf] %vm5720, %v5241
  %5755 = vst.msk [vmem:[%s4 + $0x88] sm:$0xf] %vm5720, %v5242
  %5756 = vst.msk [vmem:[%s4 + $0x8c] sm:$0xf] %vm5720, %v5243
  %5757 = vst.msk [vmem:[%s4 + $0x90] sm:$0xf] %vm5720, %v5244
  %5758 = vst.msk [vmem:[%s4 + $0x94] sm:$0xf] %vm5720, %v5245
  %5759 = vst.msk [vmem:[%s4 + $0x98] sm:$0xf] %vm5720, %v5246
  %5760 = vst.msk [vmem:[%s4 + $0x9c] sm:$0xf] %vm5720, %v5247
  %5761 = vst.msk [vmem:[%s4 + $0xa0] sm:$0xf] %vm5720, %v5248
  %5762 = vst.msk [vmem:[%s4 + $0xa4] sm:$0xf] %vm5720, %v5249
  %5763 = vst.msk [vmem:[%s4 + $0xa8] sm:$0xf] %vm5720, %v5250
  %5764 = vst.msk [vmem:[%s4 + $0xac] sm:$0xf] %vm5720, %v5251
  %5765 = vst.msk [vmem:[%s4 + $0xb0] sm:$0xf] %vm5720, %v5252
  %5766 = vst.msk [vmem:[%s4 + $0xb4] sm:$0xf] %vm5720, %v5253
  %5767 = vst.msk [vmem:[%s4 + $0xb8] sm:$0xf] %vm5720, %v5254
  %5768 = vst.msk [vmem:[%s4 + $0xbc] sm:$0xf] %vm5720, %v5255
  %5769 = vst.msk [vmem:[%s4 + $0xc0] sm:$0xf] %vm5720, %v5256
  %5770 = vst.msk [vmem:[%s4 + $0xc4] sm:$0xf] %vm5720, %v5257
  %5771 = vst.msk [vmem:[%s4 + $0xc8] sm:$0xf] %vm5720, %v5258
  %5772 = vst.msk [vmem:[%s4 + $0xcc] sm:$0xf] %vm5720, %v5259
  %5773 = vst.msk [vmem:[%s4 + $0xd0] sm:$0xf] %vm5720, %v5260
  %5774 = vst.msk [vmem:[%s4 + $0xd4] sm:$0xf] %vm5720, %v5261
  %5775 = vst.msk [vmem:[%s4 + $0xd8] sm:$0xf] %vm5720, %v5262
  %5776 = vst.msk [vmem:[%s4 + $0xdc] sm:$0xf] %vm5720, %v5263
  %5777 = vst.msk [vmem:[%s4 + $0xe0] sm:$0xf] %vm5720, %v5264
  %5778 = vst.msk [vmem:[%s4 + $0xe4] sm:$0xf] %vm5720, %v5265
  %5779 = vst.msk [vmem:[%s4 + $0xe8] sm:$0xf] %vm5720, %v5266
  %5780 = vst.msk [vmem:[%s4 + $0xec] sm:$0xf] %vm5720, %v5267
  %5781 = vst.msk [vmem:[%s4 + $0xf0] sm:$0xf] %vm5720, %v5268
  %5782 = vst.msk [vmem:[%s4 + $0xf4] sm:$0xf] %vm5720, %v5269
  %5783 = vst.msk [vmem:[%s4 + $0xf8] sm:$0xf] %vm5720, %v5270
  %5784 = vst.msk [vmem:[%s4 + $0xfc] sm:$0xf] %vm5720, %v5271
  %5785 = vst.msk [vmem:[%s4 + $0x100] sm:$0xf] %vm5720, %v5272
  %5786 = vst.msk [vmem:[%s4 + $0x104] sm:$0xf] %vm5720, %v5273
  %5787 = vst.msk [vmem:[%s4 + $0x108] sm:$0xf] %vm5720, %v5274
  %5788 = vst.msk [vmem:[%s4 + $0x10c] sm:$0xf] %vm5720, %v5275
  %5789 = vst.msk [vmem:[%s4 + $0x110] sm:$0xf] %vm5720, %v5276
  %5790 = vst.msk [vmem:[%s4 + $0x114] sm:$0xf] %vm5720, %v5277
  %5791 = vst.msk [vmem:[%s4 + $0x118] sm:$0xf] %vm5720, %v5278
  %5792 = vst.msk [vmem:[%s4 + $0x11c] sm:$0xf] %vm5720, %v5279
  %5793 = vst.msk [vmem:[%s4 + $0x120] sm:$0xf] %vm5720, %v5280
  %5794 = vst.msk [vmem:[%s4 + $0x124] sm:$0xf] %vm5720, %v5281
  %5795 = vst.msk [vmem:[%s4 + $0x128] sm:$0xf] %vm5720, %v5282
  %5796 = vst.msk [vmem:[%s4 + $0x12c] sm:$0xf] %vm5720, %v5283
  %5797 = vst.msk [vmem:[%s4 + $0x130] sm:$0xf] %vm5720, %v5284
  %5798 = vst.msk [vmem:[%s4 + $0x134] sm:$0xf] %vm5720, %v5285
  %5799 = vst.msk [vmem:[%s4 + $0x138] sm:$0xf] %vm5720, %v5286
  %5800 = vst.msk [vmem:[%s4 + $0x13c] sm:$0xf] %vm5720, %v5287
  %5801 = vst.msk [vmem:[%s4 + $0x140] sm:$0xf] %vm5720, %v5288
  %5802 = vst.msk [vmem:[%s4 + $0x144] sm:$0xf] %vm5720, %v5289
  %5803 = vst.msk [vmem:[%s4 + $0x148] sm:$0xf] %vm5720, %v5290
  %5804 = vst.msk [vmem:[%s4 + $0x14c] sm:$0xf] %vm5720, %v5291
  %5805 = vst.msk [vmem:[%s4 + $0x150] sm:$0xf] %vm5720, %v5292
  %5806 = vst.msk [vmem:[%s4 + $0x154] sm:$0xf] %vm5720, %v5293
  %5807 = vst.msk [vmem:[%s4 + $0x158] sm:$0xf] %vm5720, %v5294
  %5808 = vst.msk [vmem:[%s4 + $0x15c] sm:$0xf] %vm5720, %v5295
  %5809 = vst.msk [vmem:[%s4 + $0x160] sm:$0xf] %vm5720, %v5296
  %5810 = vst.msk [vmem:[%s4 + $0x164] sm:$0xf] %vm5720, %v5297
  %5811 = vst.msk [vmem:[%s4 + $0x168] sm:$0xf] %vm5720, %v5298
  %5812 = vst.msk [vmem:[%s4 + $0x16c] sm:$0xf] %vm5720, %v5299
  %5813 = vst.msk [vmem:[%s4 + $0x170] sm:$0xf] %vm5720, %v5300
  %5814 = vst.msk [vmem:[%s4 + $0x174] sm:$0xf] %vm5720, %v5301
  %5815 = vst.msk [vmem:[%s4 + $0x178] sm:$0xf] %vm5720, %v5302
  %5816 = vst.msk [vmem:[%s4 + $0x17c] sm:$0xf] %vm5720, %v5303
  %5817 = vst.msk [vmem:[%s4 + $0x180] sm:$0xf] %vm5720, %v5304
  %5818 = vst.msk [vmem:[%s4 + $0x184] sm:$0xf] %vm5720, %v5305
  %5819 = vst.msk [vmem:[%s4 + $0x188] sm:$0xf] %vm5720, %v5306
  %5820 = vst.msk [vmem:[%s4 + $0x18c] sm:$0xf] %vm5720, %v5307
  %5821 = vst.msk [vmem:[%s4 + $0x190] sm:$0xf] %vm5720, %v5308
  %5822 = vst.msk [vmem:[%s4 + $0x194] sm:$0xf] %vm5720, %v5309
  %5823 = vst.msk [vmem:[%s4 + $0x198] sm:$0xf] %vm5720, %v5310
  %5824 = vst.msk [vmem:[%s4 + $0x19c] sm:$0xf] %vm5720, %v5311
  %5825 = vst.msk [vmem:[%s4 + $0x1a0] sm:$0xf] %vm5720, %v5312
  %5826 = vst.msk [vmem:[%s4 + $0x1a4] sm:$0xf] %vm5720, %v5313
  %5827 = vst.msk [vmem:[%s4 + $0x1a8] sm:$0xf] %vm5720, %v5314
  %5828 = vst.msk [vmem:[%s4 + $0x1ac] sm:$0xf] %vm5720, %v5315
  %5829 = vst.msk [vmem:[%s4 + $0x1b0] sm:$0xf] %vm5720, %v5316
  %5830 = vst.msk [vmem:[%s4 + $0x1b4] sm:$0xf] %vm5720, %v5317
  %5831 = vst.msk [vmem:[%s4 + $0x1b8] sm:$0xf] %vm5720, %v5318
  %5832 = vst.msk [vmem:[%s4 + $0x1bc] sm:$0xf] %vm5720, %v5319
  %5833 = vst.msk [vmem:[%s4 + $0x1c0] sm:$0xf] %vm5720, %v5320
  %5834 = vst.msk [vmem:[%s4 + $0x1c4] sm:$0xf] %vm5720, %v5321
  %5835 = vst.msk [vmem:[%s4 + $0x1c8] sm:$0xf] %vm5720, %v5322
  %5836 = vst.msk [vmem:[%s4 + $0x1cc] sm:$0xf] %vm5720, %v5323
  %5837 = vst.msk [vmem:[%s4 + $0x1d0] sm:$0xf] %vm5720, %v5324
  %5838 = vst.msk [vmem:[%s4 + $0x1d4] sm:$0xf] %vm5720, %v5325
  %5839 = vst.msk [vmem:[%s4 + $0x1d8] sm:$0xf] %vm5720, %v5326
  %5840 = vst.msk [vmem:[%s4 + $0x1dc] sm:$0xf] %vm5720, %v5327
  %5841 = vst.msk [vmem:[%s4 + $0x1e0] sm:$0xf] %vm5720, %v5328
  %5842 = vst.msk [vmem:[%s4 + $0x1e4] sm:$0xf] %vm5720, %v5329
  %5843 = vst.msk [vmem:[%s4 + $0x1e8] sm:$0xf] %vm5720, %v5330
  %5844 = vst.msk [vmem:[%s4 + $0x1ec] sm:$0xf] %vm5720, %v5331
  %5845 = vst.msk [vmem:[%s4 + $0x1f0] sm:$0xf] %vm5720, %v5332
  %5846 = vst.msk [vmem:[%s4 + $0x1f4] sm:$0xf] %vm5720, %v5333
  %5847 = vst.msk [vmem:[%s4 + $0x1f8] sm:$0xf] %vm5720, %v5334
  %5848 = vst.msk [vmem:[%s4 + $0x1fc] sm:$0xf] %vm5720, %v5335
  %5849 = vst.msk [vmem:[%s4 + $0x200] sm:$0xf] %vm5720, %v5336
  %5850 = vst.msk [vmem:[%s4 + $0x204] sm:$0xf] %vm5720, %v5337
  %5851 = vst.msk [vmem:[%s4 + $0x208] sm:$0xf] %vm5720, %v5338
  %5852 = vst.msk [vmem:[%s4 + $0x20c] sm:$0xf] %vm5720, %v5339
  %5853 = vst.msk [vmem:[%s4 + $0x210] sm:$0xf] %vm5720, %v5340
  %5854 = vst.msk [vmem:[%s4 + $0x214] sm:$0xf] %vm5720, %v5341
  %5855 = vst.msk [vmem:[%s4 + $0x218] sm:$0xf] %vm5720, %v5342
  %5856 = vst.msk [vmem:[%s4 + $0x21c] sm:$0xf] %vm5720, %v5343
  %5857 = vst.msk [vmem:[%s4 + $0x220] sm:$0xf] %vm5720, %v5344
  %5858 = vst.msk [vmem:[%s4 + $0x224] sm:$0xf] %vm5720, %v5345
  %5859 = vst.msk [vmem:[%s4 + $0x228] sm:$0xf] %vm5720, %v5346
  %5860 = vst.msk [vmem:[%s4 + $0x22c] sm:$0xf] %vm5720, %v5347
  %5861 = vst.msk [vmem:[%s4 + $0x230] sm:$0xf] %vm5720, %v5348
  %5862 = vst.msk [vmem:[%s4 + $0x234] sm:$0xf] %vm5720, %v5349
  %5863 = vst.msk [vmem:[%s4 + $0x238] sm:$0xf] %vm5720, %v5350
  %5864 = vst.msk [vmem:[%s4 + $0x23c] sm:$0xf] %vm5720, %v5351
  %5865 = vst.msk [vmem:[%s4 + $0x240] sm:$0xf] %vm5720, %v5352
  %5866 = vst.msk [vmem:[%s4 + $0x244] sm:$0xf] %vm5720, %v5353
  %5867 = vst.msk [vmem:[%s4 + $0x248] sm:$0xf] %vm5720, %v5354
  %5868 = vst.msk [vmem:[%s4 + $0x24c] sm:$0xf] %vm5720, %v5355
  %5869 = vst.msk [vmem:[%s4 + $0x250] sm:$0xf] %vm5720, %v5356
  %5870 = vst.msk [vmem:[%s4 + $0x254] sm:$0xf] %vm5720, %v5357
  %5871 = vst.msk [vmem:[%s4 + $0x258] sm:$0xf] %vm5720, %v5358
  %5872 = vst.msk [vmem:[%s4 + $0x25c] sm:$0xf] %vm5720, %v5359
  %5873 = vst.msk [vmem:[%s4 + $0x260] sm:$0xf] %vm5720, %v5360
  %5874 = vst.msk [vmem:[%s4 + $0x264] sm:$0xf] %vm5720, %v5361
  %5875 = vst.msk [vmem:[%s4 + $0x268] sm:$0xf] %vm5720, %v5362
  %5876 = vst.msk [vmem:[%s4 + $0x26c] sm:$0xf] %vm5720, %v5363
  %5877 = vst.msk [vmem:[%s4 + $0x270] sm:$0xf] %vm5720, %v5364
  %5878 = vst.msk [vmem:[%s4 + $0x274] sm:$0xf] %vm5720, %v5365
  %5879 = vst.msk [vmem:[%s4 + $0x278] sm:$0xf] %vm5720, %v5366
  %5880 = vst.msk [vmem:[%s4 + $0x27c] sm:$0xf] %vm5720, %v5367
  %5881 = vst.msk [vmem:[%s4 + $0x280] sm:$0xf] %vm5720, %v5368
  %5882 = vst.msk [vmem:[%s4 + $0x284] sm:$0xf] %vm5720, %v5369
  %5883 = vst.msk [vmem:[%s4 + $0x288] sm:$0xf] %vm5720, %v5370
  %5884 = vst.msk [vmem:[%s4 + $0x28c] sm:$0xf] %vm5720, %v5371
  %5885 = vst.msk [vmem:[%s4 + $0x290] sm:$0xf] %vm5720, %v5372
  %5886 = vst.msk [vmem:[%s4 + $0x294] sm:$0xf] %vm5720, %v5373
  %5887 = vst.msk [vmem:[%s4 + $0x298] sm:$0xf] %vm5720, %v5374
  %5888 = vst.msk [vmem:[%s4 + $0x29c] sm:$0xf] %vm5720, %v5375
  %5889 = vst.msk [vmem:[%s4 + $0x2a0] sm:$0xf] %vm5720, %v5376
  %5890 = vst.msk [vmem:[%s4 + $0x2a4] sm:$0xf] %vm5720, %v5377
  %5891 = vst.msk [vmem:[%s4 + $0x2a8] sm:$0xf] %vm5720, %v5378
  %5892 = vst.msk [vmem:[%s4 + $0x2ac] sm:$0xf] %vm5720, %v5379
  %5893 = vst.msk [vmem:[%s4 + $0x2b0] sm:$0xf] %vm5720, %v5380
  %5894 = vst.msk [vmem:[%s4 + $0x2b4] sm:$0xf] %vm5720, %v5381
  %5895 = vst.msk [vmem:[%s4 + $0x2b8] sm:$0xf] %vm5720, %v5382
  %5896 = vst.msk [vmem:[%s4 + $0x2bc] sm:$0xf] %vm5720, %v5383
  %5897 = vst.msk [vmem:[%s4 + $0x2c0] sm:$0xf] %vm5720, %v5384
  %5898 = vst.msk [vmem:[%s4 + $0x2c4] sm:$0xf] %vm5720, %v5385
  %5899 = vst.msk [vmem:[%s4 + $0x2c8] sm:$0xf] %vm5720, %v5386
  %5900 = vst.msk [vmem:[%s4 + $0x2cc] sm:$0xf] %vm5720, %v5387
  %5901 = vst.msk [vmem:[%s4 + $0x2d0] sm:$0xf] %vm5720, %v5388
  %5902 = vst.msk [vmem:[%s4 + $0x2d4] sm:$0xf] %vm5720, %v5389
  %5903 = vst.msk [vmem:[%s4 + $0x2d8] sm:$0xf] %vm5720, %v5390
  %5904 = vst.msk [vmem:[%s4 + $0x2dc] sm:$0xf] %vm5720, %v5391
  %5905 = vst.msk [vmem:[%s4 + $0x2e0] sm:$0xf] %vm5720, %v5392
  %5906 = vst.msk [vmem:[%s4 + $0x2e4] sm:$0xf] %vm5720, %v5393
  %5907 = vst.msk [vmem:[%s4 + $0x2e8] sm:$0xf] %vm5720, %v5394
  %5908 = vst.msk [vmem:[%s4 + $0x2ec] sm:$0xf] %vm5720, %v5395
  %5909 = vst.msk [vmem:[%s4 + $0x2f0] sm:$0xf] %vm5720, %v5396
  %5910 = vst.msk [vmem:[%s4 + $0x2f4] sm:$0xf] %vm5720, %v5397
  %5911 = vst.msk [vmem:[%s4 + $0x2f8] sm:$0xf] %vm5720, %v5398
  %5912 = vst.msk [vmem:[%s4 + $0x2fc] sm:$0xf] %vm5720, %v5399
  %5913 = vst.msk [vmem:[%s4 + $0x300] sm:$0xf] %vm5720, %v5400
  %5914 = vst.msk [vmem:[%s4 + $0x304] sm:$0xf] %vm5720, %v5401
  %5915 = vst.msk [vmem:[%s4 + $0x308] sm:$0xf] %vm5720, %v5402
  %5916 = vst.msk [vmem:[%s4 + $0x30c] sm:$0xf] %vm5720, %v5403
  %5917 = vst.msk [vmem:[%s4 + $0x310] sm:$0xf] %vm5720, %v5404
  %5918 = vst.msk [vmem:[%s4 + $0x314] sm:$0xf] %vm5720, %v5405
  %5919 = vst.msk [vmem:[%s4 + $0x318] sm:$0xf] %vm5720, %v5406
  %5920 = vst.msk [vmem:[%s4 + $0x31c] sm:$0xf] %vm5720, %v5407
  %5921 = vst.msk [vmem:[%s4 + $0x320] sm:$0xf] %vm5720, %v5408
  %5922 = vst.msk [vmem:[%s4 + $0x324] sm:$0xf] %vm5720, %v5409
  %5923 = vst.msk [vmem:[%s4 + $0x328] sm:$0xf] %vm5720, %v5410
  %5924 = vst.msk [vmem:[%s4 + $0x32c] sm:$0xf] %vm5720, %v5411
  %5925 = vst.msk [vmem:[%s4 + $0x330] sm:$0xf] %vm5720, %v5412
  %5926 = vst.msk [vmem:[%s4 + $0x334] sm:$0xf] %vm5720, %v5413
  %5927 = vst.msk [vmem:[%s4 + $0x338] sm:$0xf] %vm5720, %v5414
  %5928 = vst.msk [vmem:[%s4 + $0x33c] sm:$0xf] %vm5720, %v5415
  %5929 = vst.msk [vmem:[%s4 + $0x340] sm:$0xf] %vm5720, %v5416
  %5930 = vst.msk [vmem:[%s4 + $0x344] sm:$0xf] %vm5720, %v5417
  %5931 = vst.msk [vmem:[%s4 + $0x348] sm:$0xf] %vm5720, %v5418
  %5932 = vst.msk [vmem:[%s4 + $0x34c] sm:$0xf] %vm5720, %v5419
  %5933 = vst.msk [vmem:[%s4 + $0x350] sm:$0xf] %vm5720, %v5420
  %5934 = vst.msk [vmem:[%s4 + $0x354] sm:$0xf] %vm5720, %v5421
  %5935 = vst.msk [vmem:[%s4 + $0x358] sm:$0xf] %vm5720, %v5422
  %5936 = vst.msk [vmem:[%s4 + $0x35c] sm:$0xf] %vm5720, %v5423
  %5937 = vst.msk [vmem:[%s4 + $0x360] sm:$0xf] %vm5720, %v5424
  %5938 = vst.msk [vmem:[%s4 + $0x364] sm:$0xf] %vm5720, %v5425
  %5939 = vst.msk [vmem:[%s4 + $0x368] sm:$0xf] %vm5720, %v5426
  %5940 = vst.msk [vmem:[%s4 + $0x36c] sm:$0xf] %vm5720, %v5427
  %5941 = vst.msk [vmem:[%s4 + $0x370] sm:$0xf] %vm5720, %v5428
  %5942 = vst.msk [vmem:[%s4 + $0x374] sm:$0xf] %vm5720, %v5429
  %5943 = vst.msk [vmem:[%s4 + $0x378] sm:$0xf] %vm5720, %v5430
  %5944 = vst.msk [vmem:[%s4 + $0x37c] sm:$0xf] %vm5720, %v5431
  %5945 = vst.msk [vmem:[%s4 + $0x380] sm:$0xf] %vm5720, %v5432
  %5946 = vst.msk [vmem:[%s4 + $0x384] sm:$0xf] %vm5720, %v5433
  %5947 = vst.msk [vmem:[%s4 + $0x388] sm:$0xf] %vm5720, %v5434
  %5948 = vst.msk [vmem:[%s4 + $0x38c] sm:$0xf] %vm5720, %v5435
  %5949 = vst.msk [vmem:[%s4 + $0x390] sm:$0xf] %vm5720, %v5436
  %5950 = vst.msk [vmem:[%s4 + $0x394] sm:$0xf] %vm5720, %v5437
  %5951 = vst.msk [vmem:[%s4 + $0x398] sm:$0xf] %vm5720, %v5438
  %5952 = vst.msk [vmem:[%s4 + $0x39c] sm:$0xf] %vm5720, %v5439
  %5953 = vst.msk [vmem:[%s4 + $0x3a0] sm:$0xf] %vm5720, %v5440
  %5954 = vst.msk [vmem:[%s4 + $0x3a4] sm:$0xf] %vm5720, %v5441
  %5955 = vst.msk [vmem:[%s4 + $0x3a8] sm:$0xf] %vm5720, %v5442
  %5956 = vst.msk [vmem:[%s4 + $0x3ac] sm:$0xf] %vm5720, %v5443
  %5957 = vst.msk [vmem:[%s4 + $0x3b0] sm:$0xf] %vm5720, %v5444
  %5958 = vst.msk [vmem:[%s4 + $0x3b4] sm:$0xf] %vm5720, %v5445
  %5959 = vst.msk [vmem:[%s4 + $0x3b8] sm:$0xf] %vm5720, %v5446
  %5960 = vst.msk [vmem:[%s4 + $0x3bc] sm:$0xf] %vm5720, %v5447
  %5961 = vst.msk [vmem:[%s4 + $0x3c0] sm:$0xf] %vm5720, %v5448
  %5962 = vst.msk [vmem:[%s4 + $0x3c4] sm:$0xf] %vm5720, %v5449
  %5963 = vst.msk [vmem:[%s4 + $0x3c8] sm:$0xf] %vm5720, %v5450
  %5964 = vst.msk [vmem:[%s4 + $0x3cc] sm:$0xf] %vm5720, %v5451
  %5965 = vst.msk [vmem:[%s4 + $0x3d0] sm:$0xf] %vm5720, %v5452
  %5966 = vst.msk [vmem:[%s4 + $0x3d4] sm:$0xf] %vm5720, %v5453
  %5967 = vst.msk [vmem:[%s4 + $0x3d8] sm:$0xf] %vm5720, %v5454
  %5968 = vst.msk [vmem:[%s4 + $0x3dc] sm:$0xf] %vm5720, %v5455
  %5969 = vst.msk [vmem:[%s4 + $0x3e0] sm:$0xf] %vm5720, %v5456
  %5970 = vst.msk [vmem:[%s4 + $0x3e4] sm:$0xf] %vm5720, %v5457
  %5971 = vst.msk [vmem:[%s4 + $0x3e8] sm:$0xf] %vm5720, %v5458
  %5972 = vst.msk [vmem:[%s4 + $0x3ec] sm:$0xf] %vm5720, %v5459
  %5973 = vst.msk [vmem:[%s4 + $0x3f0] sm:$0xf] %vm5720, %v5460
  %5974 = vst.msk [vmem:[%s4 + $0x3f4] sm:$0xf] %vm5720, %v5461
  %5975 = vst.msk [vmem:[%s4 + $0x3f8] sm:$0xf] %vm5720, %v5462
  %5976 = vst.msk [vmem:[%s4 + $0x3fc] sm:$0xf] %vm5720, %v5463
  // Predicated region
  $region18: #{tpu_custom_call.1} parent=0 // pred_check
    _
  $region19: #{tpu_custom_call.1} parent=0 // pred_check_branch
    %5978 = sbr.rel (0) target = $region21
  $region20: #{tpu_custom_call.1} parent=0 // pred_region
    _
  $region21: #{tpu_custom_call.1} parent=0 // pred_fallthru
    _
  // Predicated region
  $region22: #{tpu_custom_call.1} parent=0 // pred_check
    _
  $region23: #{tpu_custom_call.1} parent=0 // pred_check_branch
    %5980 = sbr.rel (0) target = $region25
  $region24: #{tpu_custom_call.1} parent=0 // pred_region
    _
  $region25: #{tpu_custom_call.1} parent=0 // pred_fallthru
    _

</llo_original>
